<compile_context>
chip_gen: v5e
topology: v5e:2x2
jax: 0.10.0
libtpu: 0.0.40
codegen_flags: <defaults>
</compile_context>

<pallas_src>
import functools

import jax
import jax.numpy as jnp
from jax.experimental import pallas as pl
from jax.experimental.pallas import tpu as pltpu

NEG_SLOPE = 0.01    # GATEConv leaky_relu_ and both GATConvs (negative_slope=0.01)
NEG_BIG = -1e30     # finite -inf substitute (keeps softmax NaN-free in f32)
CP = 128            # padded channel width (lane-dense)


def _round_up(v, m):
    return (v + m - 1) // m * m


def _leaky(y):
    return jnp.where(y > 0, y, NEG_SLOPE * y)


def _elu(y):
    return jnp.where(y > 0, y, jnp.exp(jnp.minimum(y, 0.0)) - 1.0)


# --------------------------- kernels -----------------------------------------

def _lin1_fused_kernel(x_ref, w1_ref, b1_ref, wa_ref, ba_ref, attr_ref,
                       x1_ref, linx_ref, ai_ref):
    """x1 = leaky(lin1(x)) (bf16 out), lin_x = leaky(atom_lin(x1)),
    a_i = att_r . x1 per node.  Node-tiled, 'parallel'."""
    f32, bf16 = jnp.float32, jnp.bfloat16
    x1 = jnp.dot(x_ref[...], w1_ref[...], preferred_element_type=f32) + b1_ref[...]
    x1 = _leaky(x1)                                     # [NT, CP] f32
    x1_ref[...] = x1.astype(bf16)
    linx = jnp.dot(x1.astype(bf16), wa_ref[...],
                   preferred_element_type=f32) + ba_ref[...]
    linx_ref[...] = _leaky(linx)
    ai_ref[...] = jax.lax.dot_general(attr_ref[...], x1, (((1,), (1,)), ((), ())),
                                      preferred_element_type=f32)   # [1, NT]


def _atom_stage_kernel(dst_ref, aie_ref, xj_ref, ea_ref,
                       w1a_ref, w1b_ref, w2_ref, attl_ref, gb_ref, linx_ref,
                       o_ref, acc_ref, m_ref, l_ref, *, n_nodes):
    """Fused GATEConv (edge transform + online segment softmax + scatter) with
    the hoisted atom_lin epilogue.  Grid: edge tiles ('arbitrary')."""
    f32, bf16 = jnp.float32, jnp.bfloat16
    t = pl.program_id(0)

    @pl.when(t == 0)
    def _init():
        acc_ref[...] = jnp.zeros_like(acc_ref)
        m_ref[...] = jnp.full_like(m_ref, NEG_BIG)
        l_ref[...] = jnp.zeros_like(l_ref)

    xj = xj_ref[...]                                   # [TE, CP]  bf16
    ea = ea_ref[...]                                   # [TE, EDP] bf16
    dst = dst_ref[...]                                 # [1, TE]   int32

    # x_j' = leaky(lin1([x_j || e])) as a split matmul (no concat).
    xjt = jnp.dot(xj, w1a_ref[...], preferred_element_type=f32)
    xjt = xjt + jnp.dot(ea, w1b_ref[...], preferred_element_type=f32)
    xjt = _leaky(xjt)                                  # [TE, CP] f32

    # msg = lin2(x_j')  (fused, never round-trips HBM)
    msg = jnp.dot(xjt.astype(bf16), w2_ref[...], preferred_element_type=f32)

    # per-edge attention logits, lane-oriented [1, TE]; a_i[dst] precomputed.
    aj = jax.lax.dot_general(attl_ref[...], xjt, (((1,), (1,)), ((), ())),
                             preferred_element_type=f32)            # [1, TE]
    a = jnp.where(dst >= 0, _leaky(aj + aie_ref[...]), NEG_BIG)     # [1, TE]

    npad = acc_ref.shape[0]
    te = xj.shape[0]
    node_ids = jax.lax.broadcasted_iota(jnp.int32, (npad, te), 0)
    mask = dst == node_ids                             # [NP, TE]; padded edges dst=-1

    # online segment softmax over dst nodes; exp only on [NP,1] + [1,TE].
    tmax = jnp.max(jnp.where(mask, a, NEG_BIG), axis=-1, keepdims=True)   # [NP, 1]
    m_new = jnp.maximum(m_ref[...], tmax)
    scale = jnp.exp(m_ref[...] - m_new)                # [NP, 1]   (NP exps)
    # gather each edge's destination running max (exact masked max)
    m_edge = jnp.max(jnp.where(mask, m_new, NEG_BIG), axis=0, keepdims=True)  # [1, TE]
    p_row = jnp.exp(a - m_edge)                        # [1, TE]   (TE exps)
    p = jnp.where(mask, p_row, 0.0)                    # [NP, TE]  (no exp lattice)

    l_ref[...] = scale * l_ref[...] + jnp.sum(p, axis=-1, keepdims=True)
    acc_ref[...] = scale * acc_ref[...] + jnp.dot(
        p.astype(bf16), msg.astype(bf16), preferred_element_type=f32)
    m_ref[...] = m_new

    @pl.when(t == pl.num_programs(0) - 1)
    def _finalize():
        l = l_ref[...]
        l_safe = jnp.where(l > 0.0, l, 1.0)
        m_node = _elu(acc_ref[...] / l_safe + gb_ref[...])   # elu(GATEConv + bias)
        y = jnp.maximum(linx_ref[...] + m_node, 0.0)         # leaky(atom_lin(x)) + m, relu
        rows = jax.lax.broadcasted_iota(jnp.int32, y.shape, 0)
        o_ref[...] = jnp.where(rows < n_nodes, y, 0.0)       # zero padded node rows


def _mol_stage_kernel(x_ref, batch_ref, wmol_ref, asrc_ref, adst_ref, mbias_ref,
                      wih_ref, whh_ref, bih_ref, bhh_ref, w2_ref, b2_ref,
                      fp_ref, ov_ref, *, num_passing):
    """global_add_pool + num_passing x (bipartite GATConv + GRUCell + relu) + lin2,
    one kernel; `out` never leaves VMEM between passing steps."""
    f32, bf16 = jnp.float32, jnp.bfloat16
    x = x_ref[...]                                     # [NP, CP]
    wmol = wmol_ref[...]
    adst = adst_ref[...]
    mbias = mbias_ref[...]
    wih = wih_ref[...]
    whh = whh_ref[...]
    bih = bih_ref[...]
    bhh = bhh_ref[...]

    bp = fp_ref.shape[0]
    npad, cp = x.shape

    # TODO(synk): tile the [BP,NP] membership lattice over node tiles for large N.
    mol_ids = jax.lax.broadcasted_iota(jnp.int32, (bp, npad), 0)
    member = batch_ref[...] == mol_ids                 # [BP, NP]; padded nodes batch=-1
    member_f = member.astype(f32)
    valid = batch_ref[...] >= 0                        # [1, NP]

    # out = relu(global_add_pool(x, batch))
    out0 = jnp.maximum(
        jnp.dot(member_f.astype(bf16), x.astype(bf16), preferred_element_type=f32),
        0.0)                                           # [BP, CP]

    xs = jnp.dot(x.astype(bf16), wmol, preferred_element_type=f32)        # [NP, CP]
    a_src = jax.lax.dot_general(asrc_ref[...], xs, (((1,), (1,)), ((), ())),
                                preferred_element_type=f32)               # [1, NP]
    xs_b = xs.astype(bf16)

    def step(_, out):
        out_lin = jnp.dot(out.astype(bf16), wmol, preferred_element_type=f32)  # [BP, CP]
        a_dst = jnp.sum(out_lin * adst, axis=-1, keepdims=True)                # [BP, 1]
        # gather each node's molecule a_dst / max through the one-hot membership
        a_dst_n = jnp.sum(member_f * a_dst, axis=0, keepdims=True)             # [1, NP]
        a_row = jnp.where(valid, _leaky(a_src + a_dst_n), NEG_BIG)             # [1, NP]
        mmax = jnp.max(jnp.where(member, a_row, NEG_BIG), axis=-1, keepdims=True)  # [BP,1]
        m_n = jnp.max(jnp.where(member, mmax, NEG_BIG), axis=0, keepdims=True)     # [1,NP]
        p_row = jnp.exp(a_row - m_n)                   # [1, NP]  (NP exps per step)
        p = jnp.where(member, p_row, 0.0)              # [BP, NP]
        l = jnp.sum(p, axis=-1, keepdims=True)
        l = jnp.where(l > 0.0, l, 1.0)
        h = jnp.dot(p.astype(bf16), xs_b, preferred_element_type=f32) / l
        h = _elu(h + mbias)                            # elu(GATConv + bias)
        # GRUCell(h, out) then relu; gates ordered (r, z, n), wide [C,3C] matmuls
        gi = jnp.dot(h.astype(bf16), wih, preferred_element_type=f32) + bih
        gh = jnp.dot(out.astype(bf16), whh, preferred_element_type=f32) + bhh
        r = jax.nn.sigmoid(gi[:, :cp] + gh[:, :cp])
        z = jax.nn.sigmoid(gi[:, cp:2 * cp] + gh[:, cp:2 * cp])
        n = jnp.tanh(gi[:, 2 * cp:] + r * gh[:, 2 * cp:])
        return jnp.maximum((1.0 - z) * n + z * out, 0.0)

    out = jax.lax.fori_loop(0, num_passing, step, out0, unroll=True)

    fp_ref[...] = out
    ov_ref[...] = jnp.dot(out.astype(bf16), w2_ref[...],
                          preferred_element_type=f32) + b2_ref[...]


# --------------------------- parameters --------------------------------------

def init_params(key, in_channels, channels, out_channels, edge_dim):
    C = channels
    ks = jax.random.split(key, 17)

    def glorot_u(k, shape):
        s = (6.0 / (shape[-2] + shape[-1])) ** 0.5
        return jax.random.uniform(k, shape, jnp.float32, -s, s)

    def lin_u(k, shape, fan_in):
        s = 1.0 / (fan_in ** 0.5)
        return jax.random.uniform(k, shape, jnp.float32, -s, s)

    p = {}
    p["lin1_w_t"] = lin_u(ks[0], (in_channels, C), in_channels)
    p["lin1_b"] = lin_u(ks[1], (C,), in_channels)
    p["atom_lin_w_t"] = lin_u(ks[2], (C, C), C)
    p["atom_lin_b"] = lin_u(ks[3], (C,), C)
    # GATEConv (atom_convs[0]); res_lin params omitted: res0 is statically unused.
    p["gate_att_l"] = glorot_u(ks[4], (1, C))
    p["gate_att_r"] = glorot_u(ks[5], (1, C))
    p["gate_lin1_w_t"] = glorot_u(ks[6], (C + edge_dim, C))   # no bias
    p["gate_lin2_w_t"] = glorot_u(ks[7], (C, C))              # no bias
    p["gate_bias"] = jnp.zeros((C,), jnp.float32)
    # molecule GATConv (lin_src == lin_dst)
    p["mol_w_t"] = glorot_u(ks[8], (C, C))
    p["mol_att_src"] = glorot_u(ks[9], (1, C))
    p["mol_att_dst"] = glorot_u(ks[10], (1, C))
    p["mol_bias"] = jnp.zeros((C,), jnp.float32)
    # GRUCell: per-gate transposed weights, gates ordered (r, z, n)
    p["gru_wih"] = lin_u(ks[11], (3, C, C), C)
    p["gru_whh"] = lin_u(ks[12], (3, C, C), C)
    p["gru_bih"] = lin_u(ks[13], (3, C), C)
    p["gru_bhh"] = lin_u(ks[14], (3, C), C)
    # lin2
    p["lin2_w_t"] = lin_u(ks[15], (C, out_channels), C)
    p["lin2_b"] = lin_u(ks[16], (out_channels,), C)
    return p


def _pad2d(a, rows, cols, dtype):
    a = jnp.asarray(a)
    out = jnp.zeros((rows, cols), dtype)
    return out.at[:a.shape[0], :a.shape[1]].set(a.astype(dtype))


def prepare_params(p, channels, edge_dim, in_channels, out_channels):
    """Pad weights to lane-dense (128) shapes; MXU weights in bf16, the rest f32."""
    C = channels
    INP = _round_up(in_channels, 128)
    EDP = _round_up(edge_dim, 128)
    OUTP = _round_up(out_channels, 128)
    bf, f32 = jnp.bfloat16, jnp.float32
    kp = {}
    kp["lin1_w"] = _pad2d(p["lin1_w_t"], INP, CP, bf)
    kp["lin1_b"] = _pad2d(p["lin1_b"].reshape(1, -1), 1, CP, f32)
    w1 = p["gate_lin1_w_t"]                                   # [C+edge_dim, C]
    kp["gate_w1a"] = _pad2d(w1[:C], CP, CP, bf)               # node part
    kp["gate_w1b"] = _pad2d(w1[C:], EDP, CP, bf)              # edge-attr part
    kp["gate_w2"] = _pad2d(p["gate_lin2_w_t"], CP, CP, bf)
    kp["gate_att_l"] = _pad2d(p["gate_att_l"], 1, CP, f32)
    kp["gate_att_r"] = _pad2d(p["gate_att_r"], 1, CP, f32)
    kp["gate_bias"] = _pad2d(p["gate_bias"].reshape(1, -1), 1, CP, f32)
    kp["atom_w"] = _pad2d(p["atom_lin_w_t"], CP, CP, bf)
    kp["atom_b"] = _pad2d(p["atom_lin_b"].reshape(1, -1), 1, CP, f32)
    kp["mol_w"] = _pad2d(p["mol_w_t"], CP, CP, bf)
    kp["mol_att_src"] = _pad2d(p["mol_att_src"], 1, CP, f32)
    kp["mol_att_dst"] = _pad2d(p["mol_att_dst"], 1, CP, f32)
    kp["mol_bias"] = _pad2d(p["mol_bias"].reshape(1, -1), 1, CP, f32)
    kp["gru_wih"] = jnp.concatenate(
        [_pad2d(p["gru_wih"][g], CP, CP, bf) for g in range(3)], axis=1)
    kp["gru_whh"] = jnp.concatenate(
        [_pad2d(p["gru_whh"][g], CP, CP, bf) for g in range(3)], axis=1)
    kp["gru_bih"] = jnp.concatenate(
        [_pad2d(p["gru_bih"][g].reshape(1, -1), 1, CP, f32) for g in range(3)], axis=1)
    kp["gru_bhh"] = jnp.concatenate(
        [_pad2d(p["gru_bhh"][g].reshape(1, -1), 1, CP, f32) for g in range(3)], axis=1)
    kp["lin2_w"] = _pad2d(p["lin2_w_t"], CP, OUTP, bf)
    kp["lin2_b"] = _pad2d(p["lin2_b"].reshape(1, -1), 1, OUTP, f32)
    return kp


# --------------------------- forward ------------------------------------------

def gnn_forward(kp, x, edge_index, edge_attr, batch, num_mols, channels,
                out_channels, num_passing_mol=2, edge_tile=256):
    N = x.shape[0]
    E = edge_index.shape[1]
    B = num_mols
    NP = _round_up(max(N, 8), 8)
    BP = _round_up(max(B, 8), 8)
    EP = _round_up(max(E, edge_tile), edge_tile)
    INP = kp["lin1_w"].shape[0]
    EDP = kp["gate_w1b"].shape[0]
    OUTP = kp["lin2_w"].shape[1]

    # ---- pad inputs (glue); big streams go to HBM in bf16 ----
    xp = _pad2d(x, NP, INP, jnp.bfloat16)
    eap = _pad2d(edge_attr, EP, EDP, jnp.bfloat16)
    src = jnp.zeros((EP,), jnp.int32).at[:E].set(edge_index[0].astype(jnp.int32))
    dst = jnp.full((EP,), -1, jnp.int32).at[:E].set(edge_index[1].astype(jnp.int32))
    batch_p = jnp.full((1, NP), -1, jnp.int32).at[0, :N].set(batch.astype(jnp.int32))

    # node tile for stage 1 (collapses to a single block for small graphs)
    if NP % 256 == 0:
        nt = 256
    elif NP % 128 == 0:
        nt = 128
    else:
        nt = NP

    # ---- stage 1: x1 = leaky(lin1(x)) [bf16], lin_x = leaky(atom_lin(x1)),
    #               a_i = att_r . x1 per node ----
    x1_bf, lin_x, ai_row = pl.pallas_call(
        _lin1_fused_kernel,
        out_shape=(jax.ShapeDtypeStruct((NP, CP), jnp.bfloat16),
                   jax.ShapeDtypeStruct((NP, CP), jnp.float32),
                   jax.ShapeDtypeStruct((1, NP), jnp.float32)),
        grid=(NP // nt,),
        in_specs=[
            pl.BlockSpec((nt, INP), lambda i: (i, 0)),          # x (bf16)
            pl.BlockSpec((INP, CP), lambda i: (0, 0)),          # lin1 w
            pl.BlockSpec((1, CP), lambda i: (0, 0)),            # lin1 b
            pl.BlockSpec((CP, CP), lambda i: (0, 0)),           # atom_lin w
            pl.BlockSpec((1, CP), lambda i: (0, 0)),            # atom_lin b
            pl.BlockSpec((1, CP), lambda i: (0, 0)),            # gate att_r
        ],
        out_specs=(pl.BlockSpec((nt, CP), lambda i: (i, 0)),
                   pl.BlockSpec((nt, CP), lambda i: (i, 0)),
                   pl.BlockSpec((1, nt), lambda i: (0, i))),
        compiler_params=pltpu.CompilerParams(dimension_semantics=("parallel",)),
    )(xp, kp["lin1_w"], kp["lin1_b"], kp["atom_w"], kp["atom_b"], kp["gate_att_r"])

    # res0 (atom_res_lins[0]) of the reference is statically unused for the
    # default num_passing_atom=2 and is therefore not computed.

    # ---- stage 2: fused GATEConv + hoisted atom_lin epilogue, edge-tiled ----
    # TODO(synk): x[src]/a_i[dst] gathers are XLA glue (jnp.take); a CSR /
    #             scalar-prefetch in-kernel gather would remove the [E,C] HBM
    #             round trip and enable node tiling + dual-TC sharding (v7x).
    xj = jnp.take(x1_bf, src, axis=0)                              # [EP, CP] bf16
    ai_e = jnp.take(ai_row[0], jnp.maximum(dst, 0)).reshape(1, EP)  # [1, EP] f32
    dst2 = dst.reshape(1, EP)
    n_tiles = EP // edge_tile

    flops = (2 * EP * CP * (2 * CP + EDP)      # gate lin1 (split) + gate lin2
             + 2 * EP * NP * CP                # p @ msg scatter
             + 2 * EP * (CP + NP)              # logits + running-max gather
             + 4 * NP * CP)                    # finalize epilogue
    ce = pl.CostEstimate(
        flops=flops,
        transcendentals=n_tiles * (NP + edge_tile) + NP * CP,
        bytes_accessed=2 * (EP * CP + EP * EDP) + 4 * (2 * EP + 3 * NP * CP))

    x2 = pl.pallas_call(
        functools.partial(_atom_stage_kernel, n_nodes=N),
        out_shape=jax.ShapeDtypeStruct((NP, CP), jnp.float32),
        grid=(n_tiles,),
        in_specs=[
            pl.BlockSpec((1, edge_tile), lambda e: (0, e)),     # dst indices
            pl.BlockSpec((1, edge_tile), lambda e: (0, e)),     # a_i[dst]
            pl.BlockSpec((edge_tile, CP), lambda e: (e, 0)),    # x1[src] (bf16)
            pl.BlockSpec((edge_tile, EDP), lambda e: (e, 0)),   # edge_attr (bf16)
            pl.BlockSpec((CP, CP), lambda e: (0, 0)),           # gate_w1a
            pl.BlockSpec((EDP, CP), lambda e: (0, 0)),          # gate_w1b
            pl.BlockSpec((CP, CP), lambda e: (0, 0)),           # gate_w2
            pl.BlockSpec((1, CP), lambda e: (0, 0)),            # att_l
            pl.BlockSpec((1, CP), lambda e: (0, 0)),            # gate bias
            pl.BlockSpec((NP, CP), lambda e: (0, 0)),           # leaky(atom_lin(x)) resident
        ],
        out_specs=pl.BlockSpec((NP, CP), lambda e: (0, 0)),
        scratch_shapes=[pltpu.VMEM((NP, CP), jnp.float32),      # acc
                        pltpu.VMEM((NP, 1), jnp.float32),       # running max
                        pltpu.VMEM((NP, 1), jnp.float32)],      # running sum
        compiler_params=pltpu.CompilerParams(
            dimension_semantics=("arbitrary",),
            vmem_limit_bytes=32 * 1024 * 1024),
        cost_estimate=ce,
    )(dst2, ai_e, xj, eap,
      kp["gate_w1a"], kp["gate_w1b"], kp["gate_w2"],
      kp["gate_att_l"], kp["gate_bias"], lin_x)

    # ---- stage 3: pool + num_passing_mol x (GATConv + GRU) + lin2, one kernel ----
    fp_p, ov_p = pl.pallas_call(
        functools.partial(_mol_stage_kernel, num_passing=num_passing_mol),
        out_shape=(jax.ShapeDtypeStruct((BP, CP), jnp.float32),
                   jax.ShapeDtypeStruct((BP, OUTP), jnp.float32)),
        in_specs=[pl.BlockSpec(memory_space=pltpu.MemorySpace.VMEM)] * 12,
        out_specs=(pl.BlockSpec(memory_space=pltpu.MemorySpace.VMEM),
                   pl.BlockSpec(memory_space=pltpu.MemorySpace.VMEM)),
        compiler_params=pltpu.CompilerParams(vmem_limit_bytes=32 * 1024 * 1024),
    )(x2, batch_p, kp["mol_w"], kp["mol_att_src"], kp["mol_att_dst"], kp["mol_bias"],
      kp["gru_wih"], kp["gru_whh"], kp["gru_bih"], kp["gru_bhh"],
      kp["lin2_w"], kp["lin2_b"])

    fp = fp_p[:B, :channels]
    out_vec = ov_p[:B, :out_channels].reshape(-1)
    return out_vec, fp


# --------------------------- main ------------------------------------------------

if __name__ == "__main__":
    in_channels, channels, out_channels, edge_dim = 16, 32, 1, 8
    n_per_mol, n_mols = 6, 2
    N = n_per_mol * n_mols

    # two molecules, ring graphs, both edge directions
    srcs, dsts = [], []
    for mol in range(n_mols):
        base = mol * n_per_mol
        for i in range(n_per_mol):
            a, b = base + i, base + (i + 1) % n_per_mol
            srcs += [a, b]
            dsts += [b, a]
    edge_index = jnp.array([srcs, dsts], dtype=jnp.int32)               # [2, E]
    E = edge_index.shape[1]
    batch = jnp.repeat(jnp.arange(n_mols, dtype=jnp.int32), n_per_mol)  # [N]

    key = jax.random.PRNGKey(0)
    kx, ke, kprm = jax.random.split(key, 3)
    x = jax.random.normal(kx, (N, in_channels), jnp.float32)
    edge_attr = jax.random.normal(ke, (E, edge_dim), jnp.float32)
    params = init_params(kprm, in_channels, channels, out_channels, edge_dim)
    kparams = prepare_params(params, channels, edge_dim, in_channels, out_channels)

    fwd = jax.jit(gnn_forward,
                  static_argnames=("num_mols", "channels", "out_channels",
                                   "num_passing_mol", "edge_tile"))
    # rg_data is an unused argument of the reference forward; not needed here.
    out_vec, fp = fwd(kparams, x, edge_index, edge_attr, batch,
                      num_mols=n_mols, channels=channels,
                      out_channels=out_channels, num_passing_mol=2)
    jax.block_until_ready((out_vec, fp))

    assert out_vec.shape == (n_mols * out_channels,)
    assert fp.shape == (n_mols, channels)
    assert bool(jnp.all(jnp.isfinite(out_vec))) and bool(jnp.all(jnp.isfinite(fp)))
    print("KERNEL_OK")
</pallas_src>

<mosaic_0001>
module attributes {stable_mosaic.version = 11 : i64} {
  func.func @_lin1_fused_kernel(%arg0: i32, %arg1: memref<16x128xbf16, #tpu.memory_space<vmem>>, %arg2: memref<128x128xbf16, #tpu.memory_space<vmem>>, %arg3: memref<1x128xf32, #tpu.memory_space<vmem>>, %arg4: memref<128x128xbf16, #tpu.memory_space<vmem>>, %arg5: memref<1x128xf32, #tpu.memory_space<vmem>>, %arg6: memref<1x128xf32, #tpu.memory_space<vmem>>, %arg7: memref<16x128xbf16, #tpu.memory_space<vmem>>, %arg8: memref<16x128xf32, #tpu.memory_space<vmem>>, %arg9: memref<1x16xf32, #tpu.memory_space<vmem>>) attributes {dimension_semantics = [#tpu.dimension_semantics<parallel>], iteration_bounds = array<i64: 1>, scalar_prefetch = 0 : i64, scratch_operands = 0 : i64, tpu.core_type = #tpu.core_type<tc>, window_params = [{transform_indices = @transform_0, window_bounds = array<i64: 16, 128>}, {pipeline_mode = #tpu.pipeline_mode<synchronous>, transform_indices = @transform_1, window_bounds = array<i64: 128, 128>}, {pipeline_mode = #tpu.pipeline_mode<synchronous>, transform_indices = @transform_2, window_bounds = array<i64: 1, 128>}, {pipeline_mode = #tpu.pipeline_mode<synchronous>, transform_indices = @transform_3, window_bounds = array<i64: 128, 128>}, {pipeline_mode = #tpu.pipeline_mode<synchronous>, transform_indices = @transform_4, window_bounds = array<i64: 1, 128>}, {pipeline_mode = #tpu.pipeline_mode<synchronous>, transform_indices = @transform_5, window_bounds = array<i64: 1, 128>}, {transform_indices = @transform_6, window_bounds = array<i64: 16, 128>}, {transform_indices = @transform_7, window_bounds = array<i64: 16, 128>}, {transform_indices = @transform_8, window_bounds = array<i64: 1, 16>}]} {
    %c0 = arith.constant 0 : index
    %c0_0 = arith.constant 0 : index
    %0 = vector.load %arg1[%c0, %c0_0] : memref<16x128xbf16, #tpu.memory_space<vmem>>, vector<16x128xbf16>
    %c0_1 = arith.constant 0 : index
    %c0_2 = arith.constant 0 : index
    %1 = vector.load %arg2[%c0_1, %c0_2] : memref<128x128xbf16, #tpu.memory_space<vmem>>, vector<128x128xbf16>
    %cst = arith.constant dense<0.000000e+00> : vector<16x128xf32>
    %2 = tpu.matmul %0, %1, %cst {dimension_numbers = #tpu.dot_dimension_numbers<[1], [0], [0], [1], [0, 0, 1, 1], [], []>} : vector<16x128xbf16>, vector<128x128xbf16>, vector<16x128xf32> -> vector<16x128xf32>
    %c0_3 = arith.constant 0 : index
    %c0_4 = arith.constant 0 : index
    %3 = vector.load %arg3[%c0_3, %c0_4] : memref<1x128xf32, #tpu.memory_space<vmem>>, vector<1x128xf32>
    %4 = vector.broadcast %3 : vector<1x128xf32> to vector<16x128xf32>
    %5 = arith.addf %2, %4 : vector<16x128xf32>
    %cst_5 = arith.constant 0.000000e+00 : f32
    %6 = vector.broadcast %cst_5 : f32 to vector<16x128xf32>
    %7 = arith.cmpf ogt, %5, %6 : vector<16x128xf32>
    %cst_6 = arith.constant 0.00999999977 : f32
    %8 = vector.broadcast %cst_6 : f32 to vector<16x128xf32>
    %9 = arith.mulf %8, %5 : vector<16x128xf32>
    %10 = arith.select %7, %5, %9 : vector<16x128xi1>, vector<16x128xf32>
    %11 = arith.truncf %10 : vector<16x128xf32> to vector<16x128xbf16>
    %c0_7 = arith.constant 0 : index
    %c0_8 = arith.constant 0 : index
    %12 = vector.load %arg7[%c0_7, %c0_8] : memref<16x128xbf16, #tpu.memory_space<vmem>>, vector<16x128xbf16>
    tpu.vector_store %arg7[%c0_7, %c0_8], %11 {strides = array<i32>} : memref<16x128xbf16, #tpu.memory_space<vmem>>, vector<16x128xbf16>,
    %13 = arith.truncf %10 : vector<16x128xf32> to vector<16x128xbf16>
    %c0_9 = arith.constant 0 : index
    %c0_10 = arith.constant 0 : index
    %14 = vector.load %arg4[%c0_9, %c0_10] : memref<128x128xbf16, #tpu.memory_space<vmem>>, vector<128x128xbf16>
    %cst_11 = arith.constant dense<0.000000e+00> : vector<16x128xf32>
    %15 = tpu.matmul %13, %14, %cst_11 {dimension_numbers = #tpu.dot_dimension_numbers<[1], [0], [0], [1], [0, 0, 1, 1], [], []>} : vector<16x128xbf16>, vector<128x128xbf16>, vector<16x128xf32> -> vector<16x128xf32>
    %c0_12 = arith.constant 0 : index
    %c0_13 = arith.constant 0 : index
    %16 = vector.load %arg5[%c0_12, %c0_13] : memref<1x128xf32, #tpu.memory_space<vmem>>, vector<1x128xf32>
    %17 = vector.broadcast %16 : vector<1x128xf32> to vector<16x128xf32>
    %18 = arith.addf %15, %17 : vector<16x128xf32>
    %cst_14 = arith.constant 0.000000e+00 : f32
    %19 = vector.broadcast %cst_14 : f32 to vector<16x128xf32>
    %20 = arith.cmpf ogt, %18, %19 : vector<16x128xf32>
    %cst_15 = arith.constant 0.00999999977 : f32
    %21 = vector.broadcast %cst_15 : f32 to vector<16x128xf32>
    %22 = arith.mulf %21, %18 : vector<16x128xf32>
    %23 = arith.select %20, %18, %22 : vector<16x128xi1>, vector<16x128xf32>
    %c0_16 = arith.constant 0 : index
    %c0_17 = arith.constant 0 : index
    %24 = vector.load %arg8[%c0_16, %c0_17] : memref<16x128xf32, #tpu.memory_space<vmem>>, vector<16x128xf32>
    tpu.vector_store %arg8[%c0_16, %c0_17], %23 {strides = array<i32>} : memref<16x128xf32, #tpu.memory_space<vmem>>, vector<16x128xf32>,
    %c0_18 = arith.constant 0 : index
    %c0_19 = arith.constant 0 : index
    %25 = vector.load %arg6[%c0_18, %c0_19] : memref<1x128xf32, #tpu.memory_space<vmem>>, vector<1x128xf32>
    %cst_20 = arith.constant dense<0.000000e+00> : vector<1x16xf32>
    %26 = tpu.matmul %25, %10, %cst_20 {dimension_numbers = #tpu.dot_dimension_numbers<[1], [1], [0], [0], [0, 0, 1, 0], [], []>} : vector<1x128xf32>, vector<16x128xf32>, vector<1x16xf32> -> vector<1x16xf32>
    %c0_21 = arith.constant 0 : index
    %c0_22 = arith.constant 0 : index
    %27 = vector.load %arg9[%c0_21, %c0_22] : memref<1x16xf32, #tpu.memory_space<vmem>>, vector<1x16xf32>
    tpu.vector_store %arg9[%c0_21, %c0_22], %26 {strides = array<i32>} : memref<1x16xf32, #tpu.memory_space<vmem>>, vector<1x16xf32>,
    return
  }
  func.func @transform_0(%arg0: i32) -> (i32, i32) {
    %c0_i32 = arith.constant 0 : i32
    %c0_i32_0 = arith.constant 0 : i32
    return %arg0, %c0_i32 : i32, i32
  }
  func.func @transform_1(%arg0: i32) -> (i32, i32) {
    %c0_i32 = arith.constant 0 : i32
    %c0_i32_0 = arith.constant 0 : i32
    %c0_i32_1 = arith.constant 0 : i32
    return %c0_i32, %c0_i32_0 : i32, i32
  }
  func.func @transform_2(%arg0: i32) -> (i32, i32) {
    %c0_i32 = arith.constant 0 : i32
    %c0_i32_0 = arith.constant 0 : i32
    %c0_i32_1 = arith.constant 0 : i32
    return %c0_i32, %c0_i32_0 : i32, i32
  }
  func.func @transform_3(%arg0: i32) -> (i32, i32) {
    %c0_i32 = arith.constant 0 : i32
    %c0_i32_0 = arith.constant 0 : i32
    %c0_i32_1 = arith.constant 0 : i32
    return %c0_i32, %c0_i32_0 : i32, i32
  }
  func.func @transform_4(%arg0: i32) -> (i32, i32) {
    %c0_i32 = arith.constant 0 : i32
    %c0_i32_0 = arith.constant 0 : i32
    %c0_i32_1 = arith.constant 0 : i32
    return %c0_i32, %c0_i32_0 : i32, i32
  }
  func.func @transform_5(%arg0: i32) -> (i32, i32) {
    %c0_i32 = arith.constant 0 : i32
    %c0_i32_0 = arith.constant 0 : i32
    %c0_i32_1 = arith.constant 0 : i32
    return %c0_i32, %c0_i32_0 : i32, i32
  }
  func.func @transform_6(%arg0: i32) -> (i32, i32) {
    %c0_i32 = arith.constant 0 : i32
    %c0_i32_0 = arith.constant 0 : i32
    return %arg0, %c0_i32 : i32, i32
  }
  func.func @transform_7(%arg0: i32) -> (i32, i32) {
    %c0_i32 = arith.constant 0 : i32
    %c0_i32_0 = arith.constant 0 : i32
    return %arg0, %c0_i32 : i32, i32
  }
  func.func @transform_8(%arg0: i32) -> (i32, i32) {
    %c0_i32 = arith.constant 0 : i32
    %c0_i32_0 = arith.constant 0 : i32
    return %c0_i32, %arg0 : i32, i32
  }
}

module attributes {stable_mosaic.version = 11 : i64} {
  func.func @_atom_stage_kernel(%arg0: i32, %arg1: memref<1x256xi32, #tpu.memory_space<vmem>>, %arg2: memref<1x256xf32, #tpu.memory_space<vmem>>, %arg3: memref<256x128xbf16, #tpu.memory_space<vmem>>, %arg4: memref<256x128xbf16, #tpu.memory_space<vmem>>, %arg5: memref<128x128xbf16, #tpu.memory_space<vmem>>, %arg6: memref<128x128xbf16, #tpu.memory_space<vmem>>, %arg7: memref<128x128xbf16, #tpu.memory_space<vmem>>, %arg8: memref<1x128xf32, #tpu.memory_space<vmem>>, %arg9: memref<1x128xf32, #tpu.memory_space<vmem>>, %arg10: memref<16x128xf32, #tpu.memory_space<vmem>>, %arg11: memref<16x128xf32, #tpu.memory_space<vmem>>, %arg12: memref<16x128xf32, #tpu.memory_space<vmem>>, %arg13: memref<16x1xf32, #tpu.memory_space<vmem>>, %arg14: memref<16x1xf32, #tpu.memory_space<vmem>>) attributes {dimension_semantics = [#tpu.dimension_semantics<arbitrary>], iteration_bounds = array<i64: 1>, scalar_prefetch = 0 : i64, scratch_operands = 3 : i64, tpu.core_type = #tpu.core_type<tc>, window_params = [{transform_indices = @transform_0, window_bounds = array<i64: 1, 256>}, {transform_indices = @transform_1, window_bounds = array<i64: 1, 256>}, {transform_indices = @transform_2, window_bounds = array<i64: 256, 128>}, {transform_indices = @transform_3, window_bounds = array<i64: 256, 128>}, {pipeline_mode = #tpu.pipeline_mode<synchronous>, transform_indices = @transform_4, window_bounds = array<i64: 128, 128>}, {pipeline_mode = #tpu.pipeline_mode<synchronous>, transform_indices = @transform_5, window_bounds = array<i64: 128, 128>}, {pipeline_mode = #tpu.pipeline_mode<synchronous>, transform_indices = @transform_6, window_bounds = array<i64: 128, 128>}, {pipeline_mode = #tpu.pipeline_mode<synchronous>, transform_indices = @transform_7, window_bounds = array<i64: 1, 128>}, {pipeline_mode = #tpu.pipeline_mode<synchronous>, transform_indices = @transform_8, window_bounds = array<i64: 1, 128>}, {pipeline_mode = #tpu.pipeline_mode<synchronous>, transform_indices = @transform_9, window_bounds = array<i64: 16, 128>}, {pipeline_mode = #tpu.pipeline_mode<synchronous>, transform_indices = @transform_10, window_bounds = array<i64: 16, 128>}]} {
    %c0_i32 = arith.constant 0 : i32
    %0 = arith.cmpi eq, %arg0, %c0_i32 : i32
    %1 = arith.extui %0 : i1 to i32
    %c0_i32_0 = arith.constant 0 : i32
    %2 = arith.cmpi ne, %1, %c0_i32_0 : i32
    scf.if %2 {
      %cst_48 = arith.constant 0.000000e+00 : f32
      %76 = vector.broadcast %cst_48 : f32 to vector<16x128xf32>
      %c0_49 = arith.constant 0 : index
      %c0_50 = arith.constant 0 : index
      %77 = vector.load %arg12[%c0_49, %c0_50] : memref<16x128xf32, #tpu.memory_space<vmem>>, vector<16x128xf32>
      tpu.vector_store %arg12[%c0_49, %c0_50], %76 {strides = array<i32>} : memref<16x128xf32, #tpu.memory_space<vmem>>, vector<16x128xf32>,
      %cst_51 = arith.constant -1.000000e+30 : f32
      %78 = vector.broadcast %cst_51 : f32 to vector<16x1xf32>
      %c0_52 = arith.constant 0 : index
      %c0_53 = arith.constant 0 : index
      %79 = vector.load %arg13[%c0_52, %c0_53] : memref<16x1xf32, #tpu.memory_space<vmem>>, vector<16x1xf32>
      tpu.vector_store %arg13[%c0_52, %c0_53], %78 {strides = array<i32>} : memref<16x1xf32, #tpu.memory_space<vmem>>, vector<16x1xf32>,
      %cst_54 = arith.constant 0.000000e+00 : f32
      %80 = vector.broadcast %cst_54 : f32 to vector<16x1xf32>
      %c0_55 = arith.constant 0 : index
      %c0_56 = arith.constant 0 : index
      %81 = vector.load %arg14[%c0_55, %c0_56] : memref<16x1xf32, #tpu.memory_space<vmem>>, vector<16x1xf32>
      tpu.vector_store %arg14[%c0_55, %c0_56], %80 {strides = array<i32>} : memref<16x1xf32, #tpu.memory_space<vmem>>, vector<16x1xf32>,
    } else {
    }
    %c0 = arith.constant 0 : index
    %c0_1 = arith.constant 0 : index
    %3 = vector.load %arg3[%c0, %c0_1] : memref<256x128xbf16, #tpu.memory_space<vmem>>, vector<256x128xbf16>
    %c0_2 = arith.constant 0 : index
    %c0_3 = arith.constant 0 : index
    %4 = vector.load %arg4[%c0_2, %c0_3] : memref<256x128xbf16, #tpu.memory_space<vmem>>, vector<256x128xbf16>
    %c0_4 = arith.constant 0 : index
    %c0_5 = arith.constant 0 : index
    %5 = vector.load %arg1[%c0_4, %c0_5] : memref<1x256xi32, #tpu.memory_space<vmem>>, vector<1x256xi32>
    %c0_6 = arith.constant 0 : index
    %c0_7 = arith.constant 0 : index
    %6 = vector.load %arg5[%c0_6, %c0_7] : memref<128x128xbf16, #tpu.memory_space<vmem>>, vector<128x128xbf16>
    %cst = arith.constant dense<0.000000e+00> : vector<256x128xf32>
    %7 = tpu.matmul %3, %6, %cst {dimension_numbers = #tpu.dot_dimension_numbers<[1], [0], [0], [1], [0, 0, 1, 1], [], []>} : vector<256x128xbf16>, vector<128x128xbf16>, vector<256x128xf32> -> vector<256x128xf32>
    %c0_8 = arith.constant 0 : index
    %c0_9 = arith.constant 0 : index
    %8 = vector.load %arg6[%c0_8, %c0_9] : memref<128x128xbf16, #tpu.memory_space<vmem>>, vector<128x128xbf16>
    %cst_10 = arith.constant dense<0.000000e+00> : vector<256x128xf32>
    %9 = tpu.matmul %4, %8, %cst_10 {dimension_numbers = #tpu.dot_dimension_numbers<[1], [0], [0], [1], [0, 0, 1, 1], [], []>} : vector<256x128xbf16>, vector<128x128xbf16>, vector<256x128xf32> -> vector<256x128xf32>
    %10 = arith.addf %7, %9 : vector<256x128xf32>
    %cst_11 = arith.constant 0.000000e+00 : f32
    %11 = vector.broadcast %cst_11 : f32 to vector<256x128xf32>
    %12 = arith.cmpf ogt, %10, %11 : vector<256x128xf32>
    %cst_12 = arith.constant 0.00999999977 : f32
    %13 = vector.broadcast %cst_12 : f32 to vector<256x128xf32>
    %14 = arith.mulf %13, %10 : vector<256x128xf32>
    %15 = arith.select %12, %10, %14 : vector<256x128xi1>, vector<256x128xf32>
    %16 = arith.truncf %15 : vector<256x128xf32> to vector<256x128xbf16>
    %c0_13 = arith.constant 0 : index
    %c0_14 = arith.constant 0 : index
    %17 = vector.load %arg7[%c0_13, %c0_14] : memref<128x128xbf16, #tpu.memory_space<vmem>>, vector<128x128xbf16>
    %cst_15 = arith.constant dense<0.000000e+00> : vector<256x128xf32>
    %18 = tpu.matmul %16, %17, %cst_15 {dimension_numbers = #tpu.dot_dimension_numbers<[1], [0], [0], [1], [0, 0, 1, 1], [], []>} : vector<256x128xbf16>, vector<128x128xbf16>, vector<256x128xf32> -> vector<256x128xf32>
    %c0_16 = arith.constant 0 : index
    %c0_17 = arith.constant 0 : index
    %19 = vector.load %arg8[%c0_16, %c0_17] : memref<1x128xf32, #tpu.memory_space<vmem>>, vector<1x128xf32>
    %cst_18 = arith.constant dense<0.000000e+00> : vector<1x256xf32>
    %20 = tpu.matmul %19, %15, %cst_18 {dimension_numbers = #tpu.dot_dimension_numbers<[1], [1], [0], [0], [0, 0, 1, 0], [], []>} : vector<1x128xf32>, vector<256x128xf32>, vector<1x256xf32> -> vector<1x256xf32>
    %c0_i32_19 = arith.constant 0 : i32
    %21 = vector.broadcast %c0_i32_19 : i32 to vector<1x256xi32>
    %22 = arith.cmpi sge, %5, %21 : vector<1x256xi32>
    %c0_20 = arith.constant 0 : index
    %c0_21 = arith.constant 0 : index
    %23 = vector.load %arg2[%c0_20, %c0_21] : memref<1x256xf32, #tpu.memory_space<vmem>>, vector<1x256xf32>
    %24 = arith.addf %20, %23 : vector<1x256xf32>
    %cst_22 = arith.constant 0.000000e+00 : f32
    %25 = vector.broadcast %cst_22 : f32 to vector<1x256xf32>
    %26 = arith.cmpf ogt, %24, %25 : vector<1x256xf32>
    %cst_23 = arith.constant 0.00999999977 : f32
    %27 = vector.broadcast %cst_23 : f32 to vector<1x256xf32>
    %28 = arith.mulf %27, %24 : vector<1x256xf32>
    %29 = arith.select %26, %24, %28 : vector<1x256xi1>, vector<1x256xf32>
    %cst_24 = arith.constant -1.000000e+30 : f32
    %30 = vector.broadcast %cst_24 : f32 to vector<1x256xf32>
    %31 = arith.select %22, %29, %30 : vector<1x256xi1>, vector<1x256xf32>
    %32 = tpu.iota {dimensions = array<i32: 0>} : vector<16x256xi32>
    %33 = vector.broadcast %5 : vector<1x256xi32> to vector<16x256xi32>
    %34 = arith.cmpi eq, %33, %32 : vector<16x256xi32>
    %cst_25 = arith.constant -1.000000e+30 : f32
    %35 = vector.shape_cast %31 : vector<1x256xf32> to vector<1x256xf32>
    %36 = vector.broadcast %35 : vector<1x256xf32> to vector<16x256xf32>
    %37 = vector.broadcast %cst_25 : f32 to vector<16x256xf32>
    %38 = arith.select %34, %36, %37 : vector<16x256xi1>, vector<16x256xf32>
    %cst_26 = arith.constant dense<0xFF800000> : vector<16xf32>
    %39 = vector.multi_reduction <maximumf>, %38, %cst_26 [1] : vector<16x256xf32> to vector<16xf32>
    %40 = vector.shape_cast %39 : vector<16xf32> to vector<16x1xf32>
    %c0_27 = arith.constant 0 : index
    %c0_28 = arith.constant 0 : index
    %41 = vector.load %arg13[%c0_27, %c0_28] : memref<16x1xf32, #tpu.memory_space<vmem>>, vector<16x1xf32>
    %42 = arith.maximumf %41, %40 : vector<16x1xf32>
    %c0_29 = arith.constant 0 : index
    %c0_30 = arith.constant 0 : index
    %43 = vector.load %arg13[%c0_29, %c0_30] : memref<16x1xf32, #tpu.memory_space<vmem>>, vector<16x1xf32>
    %44 = arith.subf %43, %42 : vector<16x1xf32>
    %45 = math.exp %44 : vector<16x1xf32>
    %cst_31 = arith.constant -1.000000e+30 : f32
    %46 = vector.shape_cast %42 : vector<16x1xf32> to vector<16x1xf32>
    %47 = vector.broadcast %46 : vector<16x1xf32> to vector<16x256xf32>
    %48 = vector.broadcast %cst_31 : f32 to vector<16x256xf32>
    %49 = arith.select %34, %47, %48 : vector<16x256xi1>, vector<16x256xf32>
    %cst_32 = arith.constant dense<0xFF800000> : vector<256xf32>
    %50 = vector.multi_reduction <maximumf>, %49, %cst_32 [0] : vector<16x256xf32> to vector<256xf32>
    %51 = vector.shape_cast %50 : vector<256xf32> to vector<1x256xf32>
    %52 = arith.subf %31, %51 : vector<1x256xf32>
    %53 = math.exp %52 : vector<1x256xf32>
    %cst_33 = arith.constant 0.000000e+00 : f32
    %54 = vector.shape_cast %53 : vector<1x256xf32> to vector<1x256xf32>
    %55 = vector.broadcast %54 : vector<1x256xf32> to vector<16x256xf32>
    %56 = vector.broadcast %cst_33 : f32 to vector<16x256xf32>
    %57 = arith.select %34, %55, %56 : vector<16x256xi1>, vector<16x256xf32>
    %c0_34 = arith.constant 0 : index
    %c0_35 = arith.constant 0 : index
    %58 = vector.load %arg14[%c0_34, %c0_35] : memref<16x1xf32, #tpu.memory_space<vmem>>, vector<16x1xf32>
    %59 = arith.mulf %45, %58 : vector<16x1xf32>
    %cst_36 = arith.constant dense<0.000000e+00> : vector<16xf32>
    %60 = vector.multi_reduction <add>, %57, %cst_36 [1] : vector<16x256xf32> to vector<16xf32>
    %61 = vector.shape_cast %60 : vector<16xf32> to vector<16x1xf32>
    %62 = arith.addf %59, %61 : vector<16x1xf32>
    %c0_37 = arith.constant 0 : index
    %c0_38 = arith.constant 0 : index
    %63 = vector.load %arg14[%c0_37, %c0_38] : memref<16x1xf32, #tpu.memory_space<vmem>>, vector<16x1xf32>
    tpu.vector_store %arg14[%c0_37, %c0_38], %62 {strides = array<i32>} : memref<16x1xf32, #tpu.memory_space<vmem>>, vector<16x1xf32>,
    %c0_39 = arith.constant 0 : index
    %c0_40 = arith.constant 0 : index
    %64 = vector.load %arg12[%c0_39, %c0_40] : memref<16x128xf32, #tpu.memory_space<vmem>>, vector<16x128xf32>
    %65 = vector.broadcast %45 : vector<16x1xf32> to vector<16x128xf32>
    %66 = arith.mulf %65, %64 : vector<16x128xf32>
    %67 = arith.truncf %57 : vector<16x256xf32> to vector<16x256xbf16>
    %68 = arith.truncf %18 : vector<256x128xf32> to vector<256x128xbf16>
    %cst_41 = arith.constant dense<0.000000e+00> : vector<16x128xf32>
    %69 = tpu.matmul %67, %68, %cst_41 {dimension_numbers = #tpu.dot_dimension_numbers<[1], [0], [0], [1], [0, 0, 1, 1], [], []>} : vector<16x256xbf16>, vector<256x128xbf16>, vector<16x128xf32> -> vector<16x128xf32>
    %70 = arith.addf %66, %69 : vector<16x128xf32>
    %c0_42 = arith.constant 0 : index
    %c0_43 = arith.constant 0 : index
    %71 = vector.load %arg12[%c0_42, %c0_43] : memref<16x128xf32, #tpu.memory_space<vmem>>, vector<16x128xf32>
    tpu.vector_store %arg12[%c0_42, %c0_43], %70 {strides = array<i32>} : memref<16x128xf32, #tpu.memory_space<vmem>>, vector<16x128xf32>,
    %c0_44 = arith.constant 0 : index
    %c0_45 = arith.constant 0 : index
    %72 = vector.load %arg13[%c0_44, %c0_45] : memref<16x1xf32, #tpu.memory_space<vmem>>, vector<16x1xf32>
    tpu.vector_store %arg13[%c0_44, %c0_45], %42 {strides = array<i32>} : memref<16x1xf32, #tpu.memory_space<vmem>>, vector<16x1xf32>,
    %c0_i32_46 = arith.constant 0 : i32
    %73 = arith.cmpi eq, %arg0, %c0_i32_46 : i32
    %74 = arith.extui %73 : i1 to i32
    %c0_i32_47 = arith.constant 0 : i32
    %75 = arith.cmpi ne, %74, %c0_i32_47 : i32
    scf.if %75 {
      %c0_48 = arith.constant 0 : index
      %c0_49 = arith.constant 0 : index
      %76 = vector.load %arg14[%c0_48, %c0_49] : memref<16x1xf32, #tpu.memory_space<vmem>>, vector<16x1xf32>
      %cst_50 = arith.constant 0.000000e+00 : f32
      %77 = vector.broadcast %cst_50 : f32 to vector<16x1xf32>
      %78 = arith.cmpf ogt, %76, %77 : vector<16x1xf32>
      %cst_51 = arith.constant 1.000000e+00 : f32
      %79 = vector.broadcast %cst_51 : f32 to vector<16x1xf32>
      %80 = arith.select %78, %76, %79 : vector<16x1xi1>, vector<16x1xf32>
      %c0_52 = arith.constant 0 : index
      %c0_53 = arith.constant 0 : index
      %81 = vector.load %arg12[%c0_52, %c0_53] : memref<16x128xf32, #tpu.memory_space<vmem>>, vector<16x128xf32>
      %82 = vector.broadcast %80 : vector<16x1xf32> to vector<16x128xf32>
      %83 = arith.divf %81, %82 : vector<16x128xf32>
      %c0_54 = arith.constant 0 : index
      %c0_55 = arith.constant 0 : index
      %84 = vector.load %arg9[%c0_54, %c0_55] : memref<1x128xf32, #tpu.memory_space<vmem>>, vector<1x128xf32>
      %85 = vector.broadcast %84 : vector<1x128xf32> to vector<16x128xf32>
      %86 = arith.addf %83, %85 : vector<16x128xf32>
      %cst_56 = arith.constant 0.000000e+00 : f32
      %87 = vector.broadcast %cst_56 : f32 to vector<16x128xf32>
      %88 = arith.cmpf ogt, %86, %87 : vector<16x128xf32>
      %cst_57 = arith.constant 0.000000e+00 : f32
      %89 = vector.broadcast %cst_57 : f32 to vector<16x128xf32>
      %90 = arith.minimumf %86, %89 : vector<16x128xf32>
      %91 = math.exp %90 : vector<16x128xf32>
      %cst_58 = arith.constant 1.000000e+00 : f32
      %92 = vector.broadcast %cst_58 : f32 to vector<16x128xf32>
      %93 = arith.subf %91, %92 : vector<16x128xf32>
      %94 = arith.select %88, %86, %93 : vector<16x128xi1>, vector<16x128xf32>
      %c0_59 = arith.constant 0 : index
      %c0_60 = arith.constant 0 : index
      %95 = vector.load %arg10[%c0_59, %c0_60] : memref<16x128xf32, #tpu.memory_space<vmem>>, vector<16x128xf32>
      %96 = arith.addf %95, %94 : vector<16x128xf32>
      %cst_61 = arith.constant 0.000000e+00 : f32
      %97 = vector.broadcast %cst_61 : f32 to vector<16x128xf32>
      %98 = arith.maximumf %96, %97 : vector<16x128xf32>
      %99 = tpu.iota {dimensions = array<i32: 0>} : vector<16x128xi32>
      %c12_i32 = arith.constant 12 : i32
      %100 = vector.broadcast %c12_i32 : i32 to vector<16x128xi32>
      %101 = arith.cmpi slt, %99, %100 : vector<16x128xi32>
      %cst_62 = arith.constant 0.000000e+00 : f32
      %102 = vector.broadcast %cst_62 : f32 to vector<16x128xf32>
      %103 = arith.select %101, %98, %102 : vector<16x128xi1>, vector<16x128xf32>
      %c0_63 = arith.constant 0 : index
      %c0_64 = arith.constant 0 : index
      %104 = vector.load %arg11[%c0_63, %c0_64] : memref<16x128xf32, #tpu.memory_space<vmem>>, vector<16x128xf32>
      tpu.vector_store %arg11[%c0_63, %c0_64], %103 {strides = array<i32>} : memref<16x128xf32, #tpu.memory_space<vmem>>, vector<16x128xf32>,
    } else {
    }
    return
  }
  func.func @transform_0(%arg0: i32) -> (i32, i32) {
    %c0_i32 = arith.constant 0 : i32
    %c0_i32_0 = arith.constant 0 : i32
    return %c0_i32, %arg0 : i32, i32
  }
  func.func @transform_1(%arg0: i32) -> (i32, i32) {
    %c0_i32 = arith.constant 0 : i32
    %c0_i32_0 = arith.constant 0 : i32
    return %c0_i32, %arg0 : i32, i32
  }
  func.func @transform_2(%arg0: i32) -> (i32, i32) {
    %c0_i32 = arith.constant 0 : i32
    %c0_i32_0 = arith.constant 0 : i32
    return %arg0, %c0_i32 : i32, i32
  }
  func.func @transform_3(%arg0: i32) -> (i32, i32) {
    %c0_i32 = arith.constant 0 : i32
    %c0_i32_0 = arith.constant 0 : i32
    return %arg0, %c0_i32 : i32, i32
  }
  func.func @transform_4(%arg0: i32) -> (i32, i32) {
    %c0_i32 = arith.constant 0 : i32
    %c0_i32_0 = arith.constant 0 : i32
    %c0_i32_1 = arith.constant 0 : i32
    return %c0_i32, %c0_i32_0 : i32, i32
  }
  func.func @transform_5(%arg0: i32) -> (i32, i32) {
    %c0_i32 = arith.constant 0 : i32
    %c0_i32_0 = arith.constant 0 : i32
    %c0_i32_1 = arith.constant 0 : i32
    return %c0_i32, %c0_i32_0 : i32, i32
  }
  func.func @transform_6(%arg0: i32) -> (i32, i32) {
    %c0_i32 = arith.constant 0 : i32
    %c0_i32_0 = arith.constant 0 : i32
    %c0_i32_1 = arith.constant 0 : i32
    return %c0_i32, %c0_i32_0 : i32, i32
  }
  func.func @transform_7(%arg0: i32) -> (i32, i32) {
    %c0_i32 = arith.constant 0 : i32
    %c0_i32_0 = arith.constant 0 : i32
    %c0_i32_1 = arith.constant 0 : i32
    return %c0_i32, %c0_i32_0 : i32, i32
  }
  func.func @transform_8(%arg0: i32) -> (i32, i32) {
    %c0_i32 = arith.constant 0 : i32
    %c0_i32_0 = arith.constant 0 : i32
    %c0_i32_1 = arith.constant 0 : i32
    return %c0_i32, %c0_i32_0 : i32, i32
  }
  func.func @transform_9(%arg0: i32) -> (i32, i32) {
    %c0_i32 = arith.constant 0 : i32
    %c0_i32_0 = arith.constant 0 : i32
    %c0_i32_1 = arith.constant 0 : i32
    return %c0_i32, %c0_i32_0 : i32, i32
  }
  func.func @transform_10(%arg0: i32) -> (i32, i32) {
    %c0_i32 = arith.constant 0 : i32
    %c0_i32_0 = arith.constant 0 : i32
    %c0_i32_1 = arith.constant 0 : i32
    return %c0_i32, %c0_i32_0 : i32, i32
  }
}

module attributes {stable_mosaic.version = 11 : i64} {
  func.func @_mol_stage_kernel(%arg0: memref<16x128xf32, #tpu.memory_space<vmem>>, %arg1: memref<1x16xi32, #tpu.memory_space<vmem>>, %arg2: memref<128x128xbf16, #tpu.memory_space<vmem>>, %arg3: memref<1x128xf32, #tpu.memory_space<vmem>>, %arg4: memref<1x128xf32, #tpu.memory_space<vmem>>, %arg5: memref<1x128xf32, #tpu.memory_space<vmem>>, %arg6: memref<128x384xbf16, #tpu.memory_space<vmem>>, %arg7: memref<128x384xbf16, #tpu.memory_space<vmem>>, %arg8: memref<1x384xf32, #tpu.memory_space<vmem>>, %arg9: memref<1x384xf32, #tpu.memory_space<vmem>>, %arg10: memref<128x128xbf16, #tpu.memory_space<vmem>>, %arg11: memref<1x128xf32, #tpu.memory_space<vmem>>, %arg12: memref<8x128xf32, #tpu.memory_space<vmem>>, %arg13: memref<8x128xf32, #tpu.memory_space<vmem>>) attributes {dimension_semantics = [], scalar_prefetch = 0 : i64, scratch_operands = 0 : i64, tpu.core_type = #tpu.core_type<tc>} {
    %c0 = arith.constant 0 : index
    %c0_0 = arith.constant 0 : index
    %0 = vector.load %arg0[%c0, %c0_0] : memref<16x128xf32, #tpu.memory_space<vmem>>, vector<16x128xf32>
    %c0_1 = arith.constant 0 : index
    %c0_2 = arith.constant 0 : index
    %1 = vector.load %arg2[%c0_1, %c0_2] : memref<128x128xbf16, #tpu.memory_space<vmem>>, vector<128x128xbf16>
    %c0_3 = arith.constant 0 : index
    %c0_4 = arith.constant 0 : index
    %2 = vector.load %arg4[%c0_3, %c0_4] : memref<1x128xf32, #tpu.memory_space<vmem>>, vector<1x128xf32>
    %c0_5 = arith.constant 0 : index
    %c0_6 = arith.constant 0 : index
    %3 = vector.load %arg5[%c0_5, %c0_6] : memref<1x128xf32, #tpu.memory_space<vmem>>, vector<1x128xf32>
    %c0_7 = arith.constant 0 : index
    %c0_8 = arith.constant 0 : index
    %4 = vector.load %arg6[%c0_7, %c0_8] : memref<128x384xbf16, #tpu.memory_space<vmem>>, vector<128x384xbf16>
    %c0_9 = arith.constant 0 : index
    %c0_10 = arith.constant 0 : index
    %5 = vector.load %arg7[%c0_9, %c0_10] : memref<128x384xbf16, #tpu.memory_space<vmem>>, vector<128x384xbf16>
    %c0_11 = arith.constant 0 : index
    %c0_12 = arith.constant 0 : index
    %6 = vector.load %arg8[%c0_11, %c0_12] : memref<1x384xf32, #tpu.memory_space<vmem>>, vector<1x384xf32>
    %c0_13 = arith.constant 0 : index
    %c0_14 = arith.constant 0 : index
    %7 = vector.load %arg9[%c0_13, %c0_14] : memref<1x384xf32, #tpu.memory_space<vmem>>, vector<1x384xf32>
    %8 = tpu.iota {dimensions = array<i32: 0>} : vector<8x16xi32>
    %c0_15 = arith.constant 0 : index
    %c0_16 = arith.constant 0 : index
    %9 = vector.load %arg1[%c0_15, %c0_16] : memref<1x16xi32, #tpu.memory_space<vmem>>, vector<1x16xi32>
    %10 = vector.broadcast %9 : vector<1x16xi32> to vector<8x16xi32>
    %11 = arith.cmpi eq, %10, %8 : vector<8x16xi32>
    %12 = arith.extui %11 : vector<8x16xi1> to vector<8x16xi32>
    %13 = arith.sitofp %12 : vector<8x16xi32> to vector<8x16xf32>
    %c0_17 = arith.constant 0 : index
    %c0_18 = arith.constant 0 : index
    %14 = vector.load %arg1[%c0_17, %c0_18] : memref<1x16xi32, #tpu.memory_space<vmem>>, vector<1x16xi32>
    %c0_i32 = arith.constant 0 : i32
    %15 = vector.broadcast %c0_i32 : i32 to vector<1x16xi32>
    %16 = arith.cmpi sge, %14, %15 : vector<1x16xi32>
    %17 = arith.truncf %13 : vector<8x16xf32> to vector<8x16xbf16>
    %18 = arith.truncf %0 : vector<16x128xf32> to vector<16x128xbf16>
    %cst = arith.constant dense<0.000000e+00> : vector<8x128xf32>
    %19 = tpu.matmul %17, %18, %cst {dimension_numbers = #tpu.dot_dimension_numbers<[1], [0], [0], [1], [0, 0, 1, 1], [], []>} : vector<8x16xbf16>, vector<16x128xbf16>, vector<8x128xf32> -> vector<8x128xf32>
    %cst_19 = arith.constant 0.000000e+00 : f32
    %20 = vector.broadcast %cst_19 : f32 to vector<8x128xf32>
    %21 = arith.maximumf %19, %20 : vector<8x128xf32>
    %22 = arith.truncf %0 : vector<16x128xf32> to vector<16x128xbf16>
    %cst_20 = arith.constant dense<0.000000e+00> : vector<16x128xf32>
    %23 = tpu.matmul %22, %1, %cst_20 {dimension_numbers = #tpu.dot_dimension_numbers<[1], [0], [0], [1], [0, 0, 1, 1], [], []>} : vector<16x128xbf16>, vector<128x128xbf16>, vector<16x128xf32> -> vector<16x128xf32>
    %c0_21 = arith.constant 0 : index
    %c0_22 = arith.constant 0 : index
    %24 = vector.load %arg3[%c0_21, %c0_22] : memref<1x128xf32, #tpu.memory_space<vmem>>, vector<1x128xf32>
    %cst_23 = arith.constant dense<0.000000e+00> : vector<1x16xf32>
    %25 = tpu.matmul %24, %23, %cst_23 {dimension_numbers = #tpu.dot_dimension_numbers<[1], [1], [0], [0], [0, 0, 1, 0], [], []>} : vector<1x128xf32>, vector<16x128xf32>, vector<1x16xf32> -> vector<1x16xf32>
    %26 = arith.truncf %23 : vector<16x128xf32> to vector<16x128xbf16>
    %c0_i32_24 = arith.constant 0 : i32
    %27 = arith.truncf %21 : vector<8x128xf32> to vector<8x128xbf16>
    %cst_25 = arith.constant dense<0.000000e+00> : vector<8x128xf32>
    %28 = tpu.matmul %27, %1, %cst_25 {dimension_numbers = #tpu.dot_dimension_numbers<[1], [0], [0], [1], [0, 0, 1, 1], [], []>} : vector<8x128xbf16>, vector<128x128xbf16>, vector<8x128xf32> -> vector<8x128xf32>
    %29 = vector.broadcast %2 : vector<1x128xf32> to vector<8x128xf32>
    %30 = arith.mulf %28, %29 : vector<8x128xf32>
    %cst_26 = arith.constant dense<0.000000e+00> : vector<8xf32>
    %31 = vector.multi_reduction <add>, %30, %cst_26 [1] : vector<8x128xf32> to vector<8xf32>
    %32 = vector.shape_cast %31 : vector<8xf32> to vector<8x1xf32>
    %33 = vector.broadcast %32 : vector<8x1xf32> to vector<8x16xf32>
    %34 = arith.mulf %13, %33 : vector<8x16xf32>
    %cst_27 = arith.constant dense<0.000000e+00> : vector<16xf32>
    %35 = vector.multi_reduction <add>, %34, %cst_27 [0] : vector<8x16xf32> to vector<16xf32>
    %36 = vector.shape_cast %35 : vector<16xf32> to vector<1x16xf32>
    %37 = arith.addf %25, %36 : vector<1x16xf32>
    %cst_28 = arith.constant 0.000000e+00 : f32
    %38 = vector.broadcast %cst_28 : f32 to vector<1x16xf32>
    %39 = arith.cmpf ogt, %37, %38 : vector<1x16xf32>
    %cst_29 = arith.constant 0.00999999977 : f32
    %40 = vector.broadcast %cst_29 : f32 to vector<1x16xf32>
    %41 = arith.mulf %40, %37 : vector<1x16xf32>
    %42 = arith.select %39, %37, %41 : vector<1x16xi1>, vector<1x16xf32>
    %cst_30 = arith.constant -1.000000e+30 : f32
    %43 = vector.broadcast %cst_30 : f32 to vector<1x16xf32>
    %44 = arith.select %16, %42, %43 : vector<1x16xi1>, vector<1x16xf32>
    %cst_31 = arith.constant -1.000000e+30 : f32
    %45 = vector.shape_cast %44 : vector<1x16xf32> to vector<1x16xf32>
    %46 = vector.broadcast %45 : vector<1x16xf32> to vector<8x16xf32>
    %47 = vector.broadcast %cst_31 : f32 to vector<8x16xf32>
    %48 = arith.select %11, %46, %47 : vector<8x16xi1>, vector<8x16xf32>
    %cst_32 = arith.constant dense<0xFF800000> : vector<8xf32>
    %49 = vector.multi_reduction <maximumf>, %48, %cst_32 [1] : vector<8x16xf32> to vector<8xf32>
    %50 = vector.shape_cast %49 : vector<8xf32> to vector<8x1xf32>
    %cst_33 = arith.constant -1.000000e+30 : f32
    %51 = vector.shape_cast %50 : vector<8x1xf32> to vector<8x1xf32>
    %52 = vector.broadcast %51 : vector<8x1xf32> to vector<8x16xf32>
    %53 = vector.broadcast %cst_33 : f32 to vector<8x16xf32>
    %54 = arith.select %11, %52, %53 : vector<8x16xi1>, vector<8x16xf32>
    %cst_34 = arith.constant dense<0xFF800000> : vector<16xf32>
    %55 = vector.multi_reduction <maximumf>, %54, %cst_34 [0] : vector<8x16xf32> to vector<16xf32>
    %56 = vector.shape_cast %55 : vector<16xf32> to vector<1x16xf32>
    %57 = arith.subf %44, %56 : vector<1x16xf32>
    %58 = math.exp %57 : vector<1x16xf32>
    %cst_35 = arith.constant 0.000000e+00 : f32
    %59 = vector.shape_cast %58 : vector<1x16xf32> to vector<1x16xf32>
    %60 = vector.broadcast %59 : vector<1x16xf32> to vector<8x16xf32>
    %61 = vector.broadcast %cst_35 : f32 to vector<8x16xf32>
    %62 = arith.select %11, %60, %61 : vector<8x16xi1>, vector<8x16xf32>
    %cst_36 = arith.constant dense<0.000000e+00> : vector<8xf32>
    %63 = vector.multi_reduction <add>, %62, %cst_36 [1] : vector<8x16xf32> to vector<8xf32>
    %64 = vector.shape_cast %63 : vector<8xf32> to vector<8x1xf32>
    %cst_37 = arith.constant 0.000000e+00 : f32
    %65 = vector.broadcast %cst_37 : f32 to vector<8x1xf32>
    %66 = arith.cmpf ogt, %64, %65 : vector<8x1xf32>
    %cst_38 = arith.constant 1.000000e+00 : f32
    %67 = vector.broadcast %cst_38 : f32 to vector<8x1xf32>
    %68 = arith.select %66, %64, %67 : vector<8x1xi1>, vector<8x1xf32>
    %69 = arith.truncf %62 : vector<8x16xf32> to vector<8x16xbf16>
    %cst_39 = arith.constant dense<0.000000e+00> : vector<8x128xf32>
    %70 = tpu.matmul %69, %26, %cst_39 {dimension_numbers = #tpu.dot_dimension_numbers<[1], [0], [0], [1], [0, 0, 1, 1], [], []>} : vector<8x16xbf16>, vector<16x128xbf16>, vector<8x128xf32> -> vector<8x128xf32>
    %71 = vector.broadcast %68 : vector<8x1xf32> to vector<8x128xf32>
    %72 = arith.divf %70, %71 : vector<8x128xf32>
    %73 = vector.broadcast %3 : vector<1x128xf32> to vector<8x128xf32>
    %74 = arith.addf %72, %73 : vector<8x128xf32>
    %cst_40 = arith.constant 0.000000e+00 : f32
    %75 = vector.broadcast %cst_40 : f32 to vector<8x128xf32>
    %76 = arith.cmpf ogt, %74, %75 : vector<8x128xf32>
    %cst_41 = arith.constant 0.000000e+00 : f32
    %77 = vector.broadcast %cst_41 : f32 to vector<8x128xf32>
    %78 = arith.minimumf %74, %77 : vector<8x128xf32>
    %79 = math.exp %78 : vector<8x128xf32>
    %cst_42 = arith.constant 1.000000e+00 : f32
    %80 = vector.broadcast %cst_42 : f32 to vector<8x128xf32>
    %81 = arith.subf %79, %80 : vector<8x128xf32>
    %82 = arith.select %76, %74, %81 : vector<8x128xi1>, vector<8x128xf32>
    %83 = arith.truncf %82 : vector<8x128xf32> to vector<8x128xbf16>
    %cst_43 = arith.constant dense<0.000000e+00> : vector<8x384xf32>
    %84 = tpu.matmul %83, %4, %cst_43 {dimension_numbers = #tpu.dot_dimension_numbers<[1], [0], [0], [1], [0, 0, 1, 1], [], []>} : vector<8x128xbf16>, vector<128x384xbf16>, vector<8x384xf32> -> vector<8x384xf32>
    %85 = vector.broadcast %6 : vector<1x384xf32> to vector<8x384xf32>
    %86 = arith.addf %84, %85 : vector<8x384xf32>
    %87 = arith.truncf %21 : vector<8x128xf32> to vector<8x128xbf16>
    %cst_44 = arith.constant dense<0.000000e+00> : vector<8x384xf32>
    %88 = tpu.matmul %87, %5, %cst_44 {dimension_numbers = #tpu.dot_dimension_numbers<[1], [0], [0], [1], [0, 0, 1, 1], [], []>} : vector<8x128xbf16>, vector<128x384xbf16>, vector<8x384xf32> -> vector<8x384xf32>
    %89 = vector.broadcast %7 : vector<1x384xf32> to vector<8x384xf32>
    %90 = arith.addf %88, %89 : vector<8x384xf32>
    %91 = vector.extract_strided_slice %86 {offsets = [0, 0], sizes = [8, 128], strides = [1, 1]} : vector<8x384xf32> to vector<8x128xf32>
    %92 = vector.extract_strided_slice %90 {offsets = [0, 0], sizes = [8, 128], strides = [1, 1]} : vector<8x384xf32> to vector<8x128xf32>
    %93 = arith.addf %91, %92 : vector<8x128xf32>
    %94 = arith.negf %93 : vector<8x128xf32>
    %95 = math.exp %94 : vector<8x128xf32>
    %cst_45 = arith.constant 1.000000e+00 : f32
    %96 = vector.broadcast %cst_45 : f32 to vector<8x128xf32>
    %97 = arith.addf %96, %95 : vector<8x128xf32>
    %98 = arith.divf %96, %97 : vector<8x128xf32>
    %99 = vector.extract_strided_slice %86 {offsets = [0, 128], sizes = [8, 128], strides = [1, 1]} : vector<8x384xf32> to vector<8x128xf32>
    %100 = vector.extract_strided_slice %90 {offsets = [0, 128], sizes = [8, 128], strides = [1, 1]} : vector<8x384xf32> to vector<8x128xf32>
    %101 = arith.addf %99, %100 : vector<8x128xf32>
    %102 = arith.negf %101 : vector<8x128xf32>
    %103 = math.exp %102 : vector<8x128xf32>
    %cst_46 = arith.constant 1.000000e+00 : f32
    %104 = vector.broadcast %cst_46 : f32 to vector<8x128xf32>
    %105 = arith.addf %104, %103 : vector<8x128xf32>
    %106 = arith.divf %104, %105 : vector<8x128xf32>
    %107 = vector.extract_strided_slice %86 {offsets = [0, 256], sizes = [8, 128], strides = [1, 1]} : vector<8x384xf32> to vector<8x128xf32>
    %108 = vector.extract_strided_slice %90 {offsets = [0, 256], sizes = [8, 128], strides = [1, 1]} : vector<8x384xf32> to vector<8x128xf32>
    %109 = arith.mulf %98, %108 : vector<8x128xf32>
    %110 = arith.addf %107, %109 : vector<8x128xf32>
    %111 = math.tanh %110 : vector<8x128xf32>
    %cst_47 = arith.constant 1.000000e+00 : f32
    %112 = vector.broadcast %cst_47 : f32 to vector<8x128xf32>
    %113 = arith.subf %112, %106 : vector<8x128xf32>
    %114 = arith.mulf %113, %111 : vector<8x128xf32>
    %115 = arith.mulf %106, %21 : vector<8x128xf32>
    %116 = arith.addf %114, %115 : vector<8x128xf32>
    %cst_48 = arith.constant 0.000000e+00 : f32
    %117 = vector.broadcast %cst_48 : f32 to vector<8x128xf32>
    %118 = arith.maximumf %116, %117 : vector<8x128xf32>
    %c1_i32 = arith.constant 1 : i32
    %119 = arith.truncf %118 : vector<8x128xf32> to vector<8x128xbf16>
    %cst_49 = arith.constant dense<0.000000e+00> : vector<8x128xf32>
    %120 = tpu.matmul %119, %1, %cst_49 {dimension_numbers = #tpu.dot_dimension_numbers<[1], [0], [0], [1], [0, 0, 1, 1], [], []>} : vector<8x128xbf16>, vector<128x128xbf16>, vector<8x128xf32> -> vector<8x128xf32>
    %121 = vector.broadcast %2 : vector<1x128xf32> to vector<8x128xf32>
    %122 = arith.mulf %120, %121 : vector<8x128xf32>
    %cst_50 = arith.constant dense<0.000000e+00> : vector<8xf32>
    %123 = vector.multi_reduction <add>, %122, %cst_50 [1] : vector<8x128xf32> to vector<8xf32>
    %124 = vector.shape_cast %123 : vector<8xf32> to vector<8x1xf32>
    %125 = vector.broadcast %124 : vector<8x1xf32> to vector<8x16xf32>
    %126 = arith.mulf %13, %125 : vector<8x16xf32>
    %cst_51 = arith.constant dense<0.000000e+00> : vector<16xf32>
    %127 = vector.multi_reduction <add>, %126, %cst_51 [0] : vector<8x16xf32> to vector<16xf32>
    %128 = vector.shape_cast %127 : vector<16xf32> to vector<1x16xf32>
    %129 = arith.addf %25, %128 : vector<1x16xf32>
    %cst_52 = arith.constant 0.000000e+00 : f32
    %130 = vector.broadcast %cst_52 : f32 to vector<1x16xf32>
    %131 = arith.cmpf ogt, %129, %130 : vector<1x16xf32>
    %cst_53 = arith.constant 0.00999999977 : f32
    %132 = vector.broadcast %cst_53 : f32 to vector<1x16xf32>
    %133 = arith.mulf %132, %129 : vector<1x16xf32>
    %134 = arith.select %131, %129, %133 : vector<1x16xi1>, vector<1x16xf32>
    %cst_54 = arith.constant -1.000000e+30 : f32
    %135 = vector.broadcast %cst_54 : f32 to vector<1x16xf32>
    %136 = arith.select %16, %134, %135 : vector<1x16xi1>, vector<1x16xf32>
    %cst_55 = arith.constant -1.000000e+30 : f32
    %137 = vector.shape_cast %136 : vector<1x16xf32> to vector<1x16xf32>
    %138 = vector.broadcast %137 : vector<1x16xf32> to vector<8x16xf32>
    %139 = vector.broadcast %cst_55 : f32 to vector<8x16xf32>
    %140 = arith.select %11, %138, %139 : vector<8x16xi1>, vector<8x16xf32>
    %cst_56 = arith.constant dense<0xFF800000> : vector<8xf32>
    %141 = vector.multi_reduction <maximumf>, %140, %cst_56 [1] : vector<8x16xf32> to vector<8xf32>
    %142 = vector.shape_cast %141 : vector<8xf32> to vector<8x1xf32>
    %cst_57 = arith.constant -1.000000e+30 : f32
    %143 = vector.shape_cast %142 : vector<8x1xf32> to vector<8x1xf32>
    %144 = vector.broadcast %143 : vector<8x1xf32> to vector<8x16xf32>
    %145 = vector.broadcast %cst_57 : f32 to vector<8x16xf32>
    %146 = arith.select %11, %144, %145 : vector<8x16xi1>, vector<8x16xf32>
    %cst_58 = arith.constant dense<0xFF800000> : vector<16xf32>
    %147 = vector.multi_reduction <maximumf>, %146, %cst_58 [0] : vector<8x16xf32> to vector<16xf32>
    %148 = vector.shape_cast %147 : vector<16xf32> to vector<1x16xf32>
    %149 = arith.subf %136, %148 : vector<1x16xf32>
    %150 = math.exp %149 : vector<1x16xf32>
    %cst_59 = arith.constant 0.000000e+00 : f32
    %151 = vector.shape_cast %150 : vector<1x16xf32> to vector<1x16xf32>
    %152 = vector.broadcast %151 : vector<1x16xf32> to vector<8x16xf32>
    %153 = vector.broadcast %cst_59 : f32 to vector<8x16xf32>
    %154 = arith.select %11, %152, %153 : vector<8x16xi1>, vector<8x16xf32>
    %cst_60 = arith.constant dense<0.000000e+00> : vector<8xf32>
    %155 = vector.multi_reduction <add>, %154, %cst_60 [1] : vector<8x16xf32> to vector<8xf32>
    %156 = vector.shape_cast %155 : vector<8xf32> to vector<8x1xf32>
    %cst_61 = arith.constant 0.000000e+00 : f32
    %157 = vector.broadcast %cst_61 : f32 to vector<8x1xf32>
    %158 = arith.cmpf ogt, %156, %157 : vector<8x1xf32>
    %cst_62 = arith.constant 1.000000e+00 : f32
    %159 = vector.broadcast %cst_62 : f32 to vector<8x1xf32>
    %160 = arith.select %158, %156, %159 : vector<8x1xi1>, vector<8x1xf32>
    %161 = arith.truncf %154 : vector<8x16xf32> to vector<8x16xbf16>
    %cst_63 = arith.constant dense<0.000000e+00> : vector<8x128xf32>
    %162 = tpu.matmul %161, %26, %cst_63 {dimension_numbers = #tpu.dot_dimension_numbers<[1], [0], [0], [1], [0, 0, 1, 1], [], []>} : vector<8x16xbf16>, vector<16x128xbf16>, vector<8x128xf32> -> vector<8x128xf32>
    %163 = vector.broadcast %160 : vector<8x1xf32> to vector<8x128xf32>
    %164 = arith.divf %162, %163 : vector<8x128xf32>
    %165 = vector.broadcast %3 : vector<1x128xf32> to vector<8x128xf32>
    %166 = arith.addf %164, %165 : vector<8x128xf32>
    %cst_64 = arith.constant 0.000000e+00 : f32
    %167 = vector.broadcast %cst_64 : f32 to vector<8x128xf32>
    %168 = arith.cmpf ogt, %166, %167 : vector<8x128xf32>
    %cst_65 = arith.constant 0.000000e+00 : f32
    %169 = vector.broadcast %cst_65 : f32 to vector<8x128xf32>
    %170 = arith.minimumf %166, %169 : vector<8x128xf32>
    %171 = math.exp %170 : vector<8x128xf32>
    %cst_66 = arith.constant 1.000000e+00 : f32
    %172 = vector.broadcast %cst_66 : f32 to vector<8x128xf32>
    %173 = arith.subf %171, %172 : vector<8x128xf32>
    %174 = arith.select %168, %166, %173 : vector<8x128xi1>, vector<8x128xf32>
    %175 = arith.truncf %174 : vector<8x128xf32> to vector<8x128xbf16>
    %cst_67 = arith.constant dense<0.000000e+00> : vector<8x384xf32>
    %176 = tpu.matmul %175, %4, %cst_67 {dimension_numbers = #tpu.dot_dimension_numbers<[1], [0], [0], [1], [0, 0, 1, 1], [], []>} : vector<8x128xbf16>, vector<128x384xbf16>, vector<8x384xf32> -> vector<8x384xf32>
    %177 = vector.broadcast %6 : vector<1x384xf32> to vector<8x384xf32>
    %178 = arith.addf %176, %177 : vector<8x384xf32>
    %179 = arith.truncf %118 : vector<8x128xf32> to vector<8x128xbf16>
    %cst_68 = arith.constant dense<0.000000e+00> : vector<8x384xf32>
    %180 = tpu.matmul %179, %5, %cst_68 {dimension_numbers = #tpu.dot_dimension_numbers<[1], [0], [0], [1], [0, 0, 1, 1], [], []>} : vector<8x128xbf16>, vector<128x384xbf16>, vector<8x384xf32> -> vector<8x384xf32>
    %181 = vector.broadcast %7 : vector<1x384xf32> to vector<8x384xf32>
    %182 = arith.addf %180, %181 : vector<8x384xf32>
    %183 = vector.extract_strided_slice %178 {offsets = [0, 0], sizes = [8, 128], strides = [1, 1]} : vector<8x384xf32> to vector<8x128xf32>
    %184 = vector.extract_strided_slice %182 {offsets = [0, 0], sizes = [8, 128], strides = [1, 1]} : vector<8x384xf32> to vector<8x128xf32>
    %185 = arith.addf %183, %184 : vector<8x128xf32>
    %186 = arith.negf %185 : vector<8x128xf32>
    %187 = math.exp %186 : vector<8x128xf32>
    %cst_69 = arith.constant 1.000000e+00 : f32
    %188 = vector.broadcast %cst_69 : f32 to vector<8x128xf32>
    %189 = arith.addf %188, %187 : vector<8x128xf32>
    %190 = arith.divf %188, %189 : vector<8x128xf32>
    %191 = vector.extract_strided_slice %178 {offsets = [0, 128], sizes = [8, 128], strides = [1, 1]} : vector<8x384xf32> to vector<8x128xf32>
    %192 = vector.extract_strided_slice %182 {offsets = [0, 128], sizes = [8, 128], strides = [1, 1]} : vector<8x384xf32> to vector<8x128xf32>
    %193 = arith.addf %191, %192 : vector<8x128xf32>
    %194 = arith.negf %193 : vector<8x128xf32>
    %195 = math.exp %194 : vector<8x128xf32>
    %cst_70 = arith.constant 1.000000e+00 : f32
    %196 = vector.broadcast %cst_70 : f32 to vector<8x128xf32>
    %197 = arith.addf %196, %195 : vector<8x128xf32>
    %198 = arith.divf %196, %197 : vector<8x128xf32>
    %199 = vector.extract_strided_slice %178 {offsets = [0, 256], sizes = [8, 128], strides = [1, 1]} : vector<8x384xf32> to vector<8x128xf32>
    %200 = vector.extract_strided_slice %182 {offsets = [0, 256], sizes = [8, 128], strides = [1, 1]} : vector<8x384xf32> to vector<8x128xf32>
    %201 = arith.mulf %190, %200 : vector<8x128xf32>
    %202 = arith.addf %199, %201 : vector<8x128xf32>
    %203 = math.tanh %202 : vector<8x128xf32>
    %cst_71 = arith.constant 1.000000e+00 : f32
    %204 = vector.broadcast %cst_71 : f32 to vector<8x128xf32>
    %205 = arith.subf %204, %198 : vector<8x128xf32>
    %206 = arith.mulf %205, %203 : vector<8x128xf32>
    %207 = arith.mulf %198, %118 : vector<8x128xf32>
    %208 = arith.addf %206, %207 : vector<8x128xf32>
    %cst_72 = arith.constant 0.000000e+00 : f32
    %209 = vector.broadcast %cst_72 : f32 to vector<8x128xf32>
    %210 = arith.maximumf %208, %209 : vector<8x128xf32>
    %c0_73 = arith.constant 0 : index
    %c0_74 = arith.constant 0 : index
    %211 = vector.load %arg12[%c0_73, %c0_74] : memref<8x128xf32, #tpu.memory_space<vmem>>, vector<8x128xf32>
    tpu.vector_store %arg12[%c0_73, %c0_74], %210 {strides = array<i32>} : memref<8x128xf32, #tpu.memory_space<vmem>>, vector<8x128xf32>,
    %212 = arith.truncf %210 : vector<8x128xf32> to vector<8x128xbf16>
    %c0_75 = arith.constant 0 : index
    %c0_76 = arith.constant 0 : index
    %213 = vector.load %arg10[%c0_75, %c0_76] : memref<128x128xbf16, #tpu.memory_space<vmem>>, vector<128x128xbf16>
    %cst_77 = arith.constant dense<0.000000e+00> : vector<8x128xf32>
    %214 = tpu.matmul %212, %213, %cst_77 {dimension_numbers = #tpu.dot_dimension_numbers<[1], [0], [0], [1], [0, 0, 1, 1], [], []>} : vector<8x128xbf16>, vector<128x128xbf16>, vector<8x128xf32> -> vector<8x128xf32>
    %c0_78 = arith.constant 0 : index
    %c0_79 = arith.constant 0 : index
    %215 = vector.load %arg11[%c0_78, %c0_79] : memref<1x128xf32, #tpu.memory_space<vmem>>, vector<1x128xf32>
    %216 = vector.broadcast %215 : vector<1x128xf32> to vector<8x128xf32>
    %217 = arith.addf %214, %216 : vector<8x128xf32>
    %c0_80 = arith.constant 0 : index
    %c0_81 = arith.constant 0 : index
    %218 = vector.load %arg13[%c0_80, %c0_81] : memref<8x128xf32, #tpu.memory_space<vmem>>, vector<8x128xf32>
    tpu.vector_store %arg13[%c0_80, %c0_81], %217 {strides = array<i32>} : memref<8x128xf32, #tpu.memory_space<vmem>>, vector<8x128xf32>,
    return
  }
}

</mosaic_0001>

<llo_original>
// kernel: gnn_forward.3
$region0: #{gnn_forward.3}
  #allocation0 [shape = 'u32[]', space=smem, size = 0x4, offset = 0x4, fixed_abs, tag = 'smem constant byte address 0x4 - core index']
  #allocation1 [shape = 'u32[72,128]{1,0:T(1,128)}', space=vmem, size = 0x9000, scoped, tag = 'internal scratch']
  %s0 = inlined_call_operand.vmem [shape: bf16[16,128], index: 0, kind: input, shape index: {}]
  %s1 = inlined_call_operand.hbm [shape: bf16[128,128], index: 1, kind: input, shape index: {}]
  %s2 = inlined_call_operand.vmem [shape: f32[1,128], index: 2, kind: input, shape index: {}]
  %s3 = inlined_call_operand.hbm [shape: bf16[128,128], index: 3, kind: input, shape index: {}]
  %s4 = inlined_call_operand.vmem [shape: f32[1,128], index: 4, kind: input, shape index: {}]
  %s5 = inlined_call_operand.vmem [shape: f32[1,128], index: 5, kind: input, shape index: {}]
  %s6 = inlined_call_operand.vmem [shape: bf16[16,128], index: 6, kind: output, shape index: {0}]
  %s7 = inlined_call_operand.vmem [shape: f32[16,128], index: 7, kind: output, shape index: {1}]
  %s8 = inlined_call_operand.vmem [shape: f32[1,16], index: 8, kind: output, shape index: {2}]
  %9 = xla_tuple %s6, %s7, %s8
  %s10 = sld [smem:[#allocation0]]
  $region58: #{gnn_forward.3} parent=0
    _
  %s12 = ssub.s32 1, %s10
  %s13 = scalar_select 0, %s12, %s10
  $region1: #{gnn_forward.3} parent=0
    #allocation2 [shape = 'u8[32768]{0}', space=vmem, size = 0x8000, scoped, tag = 'input window, operand 1, single buffered']
    #allocation3 [shape = 's32[1]{0}', space=sflag, size = 0x4, scoped, tag = 'scoped memory for gnn_forward.3']
    #allocation4 [shape = 'u8[32768]{0}', space=vmem, size = 0x8000, scoped, tag = 'input window, operand 3, single buffered']
    #allocation5 [shape = 's32[1]{0}', space=sflag, size = 0x4, scoped, tag = 'scoped memory for gnn_forward.3']
    %14 = vsyncpa [#allocation3], 0
    %15 = vsyncpa [#allocation5], 0
    // Predicated region
    $region2: #{gnn_forward.3} parent=1 // pred_check
      _
    $region3: #{gnn_forward.3} parent=1 // pred_check_branch
      %17 = sbr.rel (0) target = $region5
    $region4: #{gnn_forward.3} parent=1 // pred_region
      _
    $region5: #{gnn_forward.3} parent=1 // pred_fallthru
      _
    // Predicated region
    $region6: #{gnn_forward.3} parent=1 // pred_check
      _
    $region7: #{gnn_forward.3} parent=1 // pred_check_branch
      %19 = sbr.rel (0) target = $region9
    $region8: #{gnn_forward.3} parent=1 // pred_region
      %21 = vsyncadd [#allocation3], 0
      %s22 = sshll.u32 %s1, 4
      %s23 = int_to_ptr.hbm [resolvable:$true] %s22
      %s24 = sshll.u32 [#allocation2], 4
      %s25 = int_to_ptr.vmem [resolvable:$true] %s24
      %30 = dma.hbm_to_vmem [thread:$0]  %s23, 1024, %s25, [#allocation3], 64, 64, 4
    $region9: #{gnn_forward.3} parent=1 // pred_fallthru
      _
    // Predicated region
    $region10: #{gnn_forward.3} parent=1 // pred_check
      _
    $region11: #{gnn_forward.3} parent=1 // pred_check_branch
      %32 = sbr.rel (0) target = $region13
    $region12: #{gnn_forward.3} parent=1 // pred_region
      _
    $region13: #{gnn_forward.3} parent=1 // pred_fallthru
      _
    // Predicated region
    $region14: #{gnn_forward.3} parent=1 // pred_check
      _
    $region15: #{gnn_forward.3} parent=1 // pred_check_branch
      %34 = sbr.rel (0) target = $region17
    $region16: #{gnn_forward.3} parent=1 // pred_region
      %36 = vsyncadd [#allocation5], 0
      %s37 = sshll.u32 %s3, 4
      %s38 = int_to_ptr.hbm [resolvable:$true] %s37
      %s39 = sshll.u32 [#allocation4], 4
      %s40 = int_to_ptr.vmem [resolvable:$true] %s39
      %45 = dma.hbm_to_vmem [thread:$0]  %s38, 1024, %s40, [#allocation5], 64, 64, 4
    $region17: #{gnn_forward.3} parent=1 // pred_fallthru
      _
    // Predicated region
    $region18: #{gnn_forward.3} parent=1 // pred_check
      _
    $region19: #{gnn_forward.3} parent=1 // pred_check_branch
      %47 = sbr.rel (0) target = $region21
    $region20: #{gnn_forward.3} parent=1 // pred_region
      _
    $region21: #{gnn_forward.3} parent=1 // pred_fallthru
      _
    // Predicated region
    $region22: #{gnn_forward.3} parent=1 // pred_check
      _
    $region23: #{gnn_forward.3} parent=1 // pred_check_branch
      %49 = sbr.rel (0) target = $region25
    $region24: #{gnn_forward.3} parent=1 // pred_region
      _
    $region25: #{gnn_forward.3} parent=1 // pred_fallthru
      _
    // Predicated region
    $region26: #{gnn_forward.3} parent=1 // pred_check
      _
    $region27: #{gnn_forward.3} parent=1 // pred_check_branch
      %51 = sbr.rel (0) target = $region29
    $region28: #{gnn_forward.3} parent=1 // pred_region
      %53 = dma.done [#allocation3], 1024
    $region29: #{gnn_forward.3} parent=1 // pred_fallthru
      _
    // Predicated region
    $region30: #{gnn_forward.3} parent=1 // pred_check
      _
    $region31: #{gnn_forward.3} parent=1 // pred_check_branch
      %55 = sbr.rel (0) target = $region33
    $region32: #{gnn_forward.3} parent=1 // pred_region
      %57 = dma.done [#allocation5], 1024
    $region33: #{gnn_forward.3} parent=1 // pred_fallthru
      _
    %v58 = vld [vmem:[%s0] sm:$0xf]
    %v59 = vld [vmem:[%s0 + $0x4] sm:$0xf]
    %v60 = vld [vmem:[#allocation2] sm:$0xf]
    %v61 = vld [vmem:[#allocation2 + $0x4] sm:$0xf]
    %v62 = vld [vmem:[#allocation2 + $0x8] sm:$0xf]
    %v63 = vld [vmem:[#allocation2 + $0xc] sm:$0xf]
    %v64 = vld [vmem:[#allocation2 + $0x10] sm:$0xf]
    %v65 = vld [vmem:[#allocation2 + $0x14] sm:$0xf]
    %v66 = vld [vmem:[#allocation2 + $0x18] sm:$0xf]
    %v67 = vld [vmem:[#allocation2 + $0x1c] sm:$0xf]
    %v68 = vld [vmem:[#allocation2 + $0x20] sm:$0xf]
    %v69 = vld [vmem:[#allocation2 + $0x24] sm:$0xf]
    %v70 = vld [vmem:[#allocation2 + $0x28] sm:$0xf]
    %v71 = vld [vmem:[#allocation2 + $0x2c] sm:$0xf]
    %v72 = vld [vmem:[#allocation2 + $0x30] sm:$0xf]
    %v73 = vld [vmem:[#allocation2 + $0x34] sm:$0xf]
    %v74 = vld [vmem:[#allocation2 + $0x38] sm:$0xf]
    %v75 = vld [vmem:[#allocation2 + $0x3c] sm:$0xf]
    %v76 = vld [vmem:[%s2] sm:$0x1]
    %v78 = vperm.slane %v76, 0
    %v82 = vunpack.c.l.b16 %v58
    %v83 = vunpack.c.l.b16 %v59
    %v84 = vpack.c.b16 %v83, %v82
    %v102 = vunpack.c.l.b16 %v60
    %v103 = vunpack.c.l.b16 %v61
    %v104 = vunpack.c.l.b16 %v62
    %v105 = vunpack.c.l.b16 %v63
    %v106 = vunpack.c.l.b16 %v64
    %v107 = vunpack.c.l.b16 %v65
    %v108 = vunpack.c.l.b16 %v66
    %v109 = vunpack.c.l.b16 %v67
    %v110 = vunpack.c.l.b16 %v68
    %v111 = vunpack.c.l.b16 %v69
    %v112 = vunpack.c.l.b16 %v70
    %v113 = vunpack.c.l.b16 %v71
    %v114 = vunpack.c.l.b16 %v72
    %v115 = vunpack.c.l.b16 %v73
    %v116 = vunpack.c.l.b16 %v74
    %v117 = vunpack.c.l.b16 %v75
    %v118 = vpack.c.b16 %v103, %v102
    %v119 = vpack.c.b16 %v105, %v104
    %v120 = vpack.c.b16 %v107, %v106
    %v121 = vpack.c.b16 %v109, %v108
    %v122 = vpack.c.b16 %v111, %v110
    %v123 = vpack.c.b16 %v113, %v112
    %v124 = vpack.c.b16 %v115, %v114
    %v125 = vpack.c.b16 %v117, %v116
    %134 = vmatpush.bf16.msra.mxu0 %v125
    %135 = vmatpush.bf16.msra.mxu0 %v124
    %136 = vmatpush.bf16.msra.mxu0 %v123
    %137 = vmatpush.bf16.msra.mxu0 %v122
    %138 = vmatpush.bf16.msra.mxu0 %v121
    %139 = vmatpush.bf16.msra.mxu0 %v120
    %140 = vmatpush.bf16.msra.mxu0 %v119
    %141 = vmatpush.bf16.msra.mxu0 %v118
    %142 = vmatmul.bf16.gmra.mxu0 %v84
    %v143 = vpop.f32.mrf.mxu0
    %v144 = vadd.f32 %v78, %v143
    %v145 = vpop.f32.mrf.mxu0
    %v146 = vadd.f32 %v78, %v145
    %147 = vdwg.mxu0
    %vm148 = vcmp.gt.f32.partialorder %v144, 0.0
    %vm149 = vcmp.gt.f32.partialorder %v146, 0.0
    %v150 = vmul.f32 %v144, 0.01
    %v151 = vmul.f32 %v146, 0.01
    %v152 = vsel %vm148, %v144, %v150
    %v153 = vsel %vm149, %v146, %v151
    %v154 = vpack.c.bf16 %v152, %v152
    %v155 = vpack.c.bf16 %v153, %v153
    %156 = vst [vmem:[%s6] sm:$0xf] %v154
    %157 = vst [vmem:[%s6 + $0x4] sm:$0xf] %v155
    %v158 = vld [vmem:[#allocation4] sm:$0xf]
    %v159 = vld [vmem:[#allocation4 + $0x4] sm:$0xf]
    %v160 = vld [vmem:[#allocation4 + $0x8] sm:$0xf]
    %v161 = vld [vmem:[#allocation4 + $0xc] sm:$0xf]
    %v162 = vld [vmem:[#allocation4 + $0x10] sm:$0xf]
    %v163 = vld [vmem:[#allocation4 + $0x14] sm:$0xf]
    %v164 = vld [vmem:[#allocation4 + $0x18] sm:$0xf]
    %v165 = vld [vmem:[#allocation4 + $0x1c] sm:$0xf]
    %v166 = vld [vmem:[#allocation4 + $0x20] sm:$0xf]
    %v167 = vld [vmem:[#allocation4 + $0x24] sm:$0xf]
    %v168 = vld [vmem:[#allocation4 + $0x28] sm:$0xf]
    %v169 = vld [vmem:[#allocation4 + $0x2c] sm:$0xf]
    %v170 = vld [vmem:[#allocation4 + $0x30] sm:$0xf]
    %v171 = vld [vmem:[#allocation4 + $0x34] sm:$0xf]
    %v172 = vld [vmem:[#allocation4 + $0x38] sm:$0xf]
    %v173 = vld [vmem:[#allocation4 + $0x3c] sm:$0xf]
    %v174 = vld [vmem:[%s4] sm:$0x1]
    %v176 = vperm.slane %v174, 0
    %v180 = vunpack.c.l.b16 %v154
    %v181 = vunpack.c.l.b16 %v155
    %v182 = vpack.c.b16 %v181, %v180
    %v200 = vunpack.c.l.b16 %v158
    %v201 = vunpack.c.l.b16 %v159
    %v202 = vunpack.c.l.b16 %v160
    %v203 = vunpack.c.l.b16 %v161
    %v204 = vunpack.c.l.b16 %v162
    %v205 = vunpack.c.l.b16 %v163
    %v206 = vunpack.c.l.b16 %v164
    %v207 = vunpack.c.l.b16 %v165
    %v208 = vunpack.c.l.b16 %v166
    %v209 = vunpack.c.l.b16 %v167
    %v210 = vunpack.c.l.b16 %v168
    %v211 = vunpack.c.l.b16 %v169
    %v212 = vunpack.c.l.b16 %v170
    %v213 = vunpack.c.l.b16 %v171
    %v214 = vunpack.c.l.b16 %v172
    %v215 = vunpack.c.l.b16 %v173
    %v216 = vpack.c.b16 %v201, %v200
    %v217 = vpack.c.b16 %v203, %v202
    %v218 = vpack.c.b16 %v205, %v204
    %v219 = vpack.c.b16 %v207, %v206
    %v220 = vpack.c.b16 %v209, %v208
    %v221 = vpack.c.b16 %v211, %v210
    %v222 = vpack.c.b16 %v213, %v212
    %v223 = vpack.c.b16 %v215, %v214
    %232 = vmatpush.bf16.msra.mxu0 %v223
    %233 = vmatpush.bf16.msra.mxu0 %v222
    %234 = vmatpush.bf16.msra.mxu0 %v221
    %235 = vmatpush.bf16.msra.mxu0 %v220
    %236 = vmatpush.bf16.msra.mxu0 %v219
    %237 = vmatpush.bf16.msra.mxu0 %v218
    %238 = vmatpush.bf16.msra.mxu0 %v217
    %239 = vmatpush.bf16.msra.mxu0 %v216
    %240 = vmatmul.bf16.gmra.mxu0 %v182
    %v241 = vpop.f32.mrf.mxu0
    %v242 = vadd.f32 %v176, %v241
    %v243 = vpop.f32.mrf.mxu0
    %v244 = vadd.f32 %v176, %v243
    %245 = vdwg.mxu0
    %vm246 = vcmp.gt.f32.partialorder %v242, 0.0
    %vm247 = vcmp.gt.f32.partialorder %v244, 0.0
    %v248 = vmul.f32 %v242, 0.01
    %v249 = vmul.f32 %v244, 0.01
    %v250 = vsel %vm246, %v242, %v248
    %v251 = vsel %vm247, %v244, %v249
    %252 = vst [vmem:[%s7] sm:$0xff] %v250
    %253 = vst [vmem:[%s7 + $0x8] sm:$0xff] %v251
    %v254 = vld [vmem:[%s5] sm:$0x1]
    %255 = vmatpush.xpose.msra.mxu0 0.0
    %256 = vmatpush.xpose.msra.mxu0 0.0
    %257 = vmatpush.xpose.msra.mxu0 0.0
    %258 = vmatpush.xpose.msra.mxu0 0.0
    %259 = vmatpush.xpose.msra.mxu0 0.0
    %260 = vmatpush.xpose.msra.mxu0 0.0
    %261 = vmatpush.xpose.msra.mxu0 0.0
    %262 = vmatpush.xpose.msra.mxu0 0.0
    %263 = vmatpush.xpose.msra.mxu0 0.0
    %264 = vmatpush.xpose.msra.mxu0 0.0
    %265 = vmatpush.xpose.msra.mxu0 0.0
    %266 = vmatpush.xpose.msra.mxu0 0.0
    %267 = vmatpush.xpose.msra.mxu0 0.0
    %268 = vmatpush.xpose.msra.mxu0 0.0
    %269 = vmatpush.xpose.msra.mxu0 %v153
    %270 = vmatpush.xpose.msra.mxu0 %v152
    %271 = vmatmul.f32.gmra.mxu0 %v254
    %v272 = vpop.f32.mrf.mxu0
    %v273 = vadd.f32 0.0, %v272
    %274 = vdwg.mxu0
    %vm275 = vcmask 122880
    %276 = vst.msk [vmem:[%s8] sm:$0x1] %vm275, %v273
    // Predicated region
    $region34: #{gnn_forward.3} parent=1 // pred_check
      _
    $region35: #{gnn_forward.3} parent=1 // pred_check_branch
      %278 = sbr.rel (0) target = $region37
    $region36: #{gnn_forward.3} parent=1 // pred_region
      _
    $region37: #{gnn_forward.3} parent=1 // pred_fallthru
      _
    // Predicated region
    $region38: #{gnn_forward.3} parent=1 // pred_check
      _
    $region39: #{gnn_forward.3} parent=1 // pred_check_branch
      %280 = sbr.rel (0) target = $region41
    $region40: #{gnn_forward.3} parent=1 // pred_region
      _
    $region41: #{gnn_forward.3} parent=1 // pred_fallthru
      _
    // Predicated region
    $region42: #{gnn_forward.3} parent=1 // pred_check
      _
    $region43: #{gnn_forward.3} parent=1 // pred_check_branch
      %282 = sbr.rel (0) target = $region45
    $region44: #{gnn_forward.3} parent=1 // pred_region
      _
    $region45: #{gnn_forward.3} parent=1 // pred_fallthru
      _
    // Predicated region
    $region46: #{gnn_forward.3} parent=1 // pred_check
      _
    $region47: #{gnn_forward.3} parent=1 // pred_check_branch
      %284 = sbr.rel (0) target = $region49
    $region48: #{gnn_forward.3} parent=1 // pred_region
      _
    $region49: #{gnn_forward.3} parent=1 // pred_fallthru
      _
    // Predicated region
    $region50: #{gnn_forward.3} parent=1 // pred_check
      _
    $region51: #{gnn_forward.3} parent=1 // pred_check_branch
      %286 = sbr.rel (0) target = $region53
    $region52: #{gnn_forward.3} parent=1 // pred_region
      _
    $region53: #{gnn_forward.3} parent=1 // pred_fallthru
      _
    // Predicated region
    $region54: #{gnn_forward.3} parent=1 // pred_check
      _
    $region55: #{gnn_forward.3} parent=1 // pred_check_branch
      %288 = sbr.rel (0) target = $region57
    $region56: #{gnn_forward.3} parent=1 // pred_region
      _
    $region57: #{gnn_forward.3} parent=1 // pred_fallthru
      _
    %289 = vsyncpa [#allocation3], 1
    %290 = vsyncpa [#allocation5], 1

// kernel: gnn_forward.4
$region0: #{gnn_forward.4}
  #allocation0 [shape = 'u32[]', space=smem, size = 0x4, offset = 0x4, fixed_abs, tag = 'smem constant byte address 0x4 - core index']
  #allocation1 [shape = 'u32[72,128]{1,0:T(1,128)}', space=vmem, size = 0x9000, scoped, tag = 'internal scratch']
  #allocation2 [shape = 'f32[16,128]{1,0:T(8,128)}', space=vmem, size = 0x2000, scoped, tag = 'scratch operand']
  #allocation3 [shape = 'f32[16,1]{1,0:T(8,128)}', space=vmem, size = 0x2000, scoped, tag = 'scratch operand']
  #allocation4 [shape = 'f32[16,1]{1,0:T(8,128)}', space=vmem, size = 0x2000, scoped, tag = 'scratch operand']
  %s0 = inlined_call_operand.vmem [shape: s32[1,256], index: 0, kind: input, shape index: {}]
  %s1 = inlined_call_operand.vmem [shape: f32[1,256], index: 1, kind: input, shape index: {}]
  %s2 = inlined_call_operand.vmem [shape: bf16[256,128], index: 2, kind: input, shape index: {}]
  %s3 = inlined_call_operand.vmem [shape: bf16[256,128], index: 3, kind: input, shape index: {}]
  %s4 = inlined_call_operand.vmem [shape: bf16[128,128], index: 4, kind: input, shape index: {}]
  %s5 = inlined_call_operand.vmem [shape: bf16[128,128], index: 5, kind: input, shape index: {}]
  %s6 = inlined_call_operand.vmem [shape: bf16[128,128], index: 6, kind: input, shape index: {}]
  %s7 = inlined_call_operand.vmem [shape: f32[1,128], index: 7, kind: input, shape index: {}]
  %s8 = inlined_call_operand.vmem [shape: f32[1,128], index: 8, kind: input, shape index: {}]
  %s9 = inlined_call_operand.vmem [shape: f32[16,128], index: 9, kind: input, shape index: {}]
  %s10 = inlined_call_operand.vmem [shape: f32[16,128], index: 10, kind: output, shape index: {}]
  %s11 = sld [smem:[#allocation0]]
  $region58: #{gnn_forward.4} parent=0
    _
  %s13 = ssub.s32 1, %s11
  %s14 = scalar_select 0, %s13, %s11
  // Predicated region
  $region2: #{gnn_forward.4} parent=0 // pred_check
    _
  $region3: #{gnn_forward.4} parent=0 // pred_check_branch
    %16 = sbr.rel (0) target = $region5
  $region4: #{gnn_forward.4} parent=0 // pred_region
    _
  $region5: #{gnn_forward.4} parent=0 // pred_fallthru
    _
  // Predicated region
  $region6: #{gnn_forward.4} parent=0 // pred_check
    _
  $region7: #{gnn_forward.4} parent=0 // pred_check_branch
    %18 = sbr.rel (0) target = $region9
  $region8: #{gnn_forward.4} parent=0 // pred_region
    _
  $region9: #{gnn_forward.4} parent=0 // pred_fallthru
    _
  // Predicated region
  $region10: #{gnn_forward.4} parent=0 // pred_check
    _
  $region11: #{gnn_forward.4} parent=0 // pred_check_branch
    %20 = sbr.rel (0) target = $region13
  $region12: #{gnn_forward.4} parent=0 // pred_region
    _
  $region13: #{gnn_forward.4} parent=0 // pred_fallthru
    _
  // Predicated region
  $region14: #{gnn_forward.4} parent=0 // pred_check
    _
  $region15: #{gnn_forward.4} parent=0 // pred_check_branch
    %22 = sbr.rel (0) target = $region17
  $region16: #{gnn_forward.4} parent=0 // pred_region
    _
  $region17: #{gnn_forward.4} parent=0 // pred_fallthru
    _
  // Predicated region
  $region18: #{gnn_forward.4} parent=0 // pred_check
    _
  $region19: #{gnn_forward.4} parent=0 // pred_check_branch
    %24 = sbr.rel (0) target = $region21
  $region20: #{gnn_forward.4} parent=0 // pred_region
    _
  $region21: #{gnn_forward.4} parent=0 // pred_fallthru
    _
  // Predicated region
  $region22: #{gnn_forward.4} parent=0 // pred_check
    _
  $region23: #{gnn_forward.4} parent=0 // pred_check_branch
    %26 = sbr.rel (0) target = $region25
  $region24: #{gnn_forward.4} parent=0 // pred_region
    _
  $region25: #{gnn_forward.4} parent=0 // pred_fallthru
    _
  // Predicated region
  $region26: #{gnn_forward.4} parent=0 // pred_check
    _
  $region27: #{gnn_forward.4} parent=0 // pred_check_branch
    %28 = sbr.rel (0) target = $region29
  $region28: #{gnn_forward.4} parent=0 // pred_region
    _
  $region29: #{gnn_forward.4} parent=0 // pred_fallthru
    _
  // Predicated region
  $region30: #{gnn_forward.4} parent=0 // pred_check
    _
  $region31: #{gnn_forward.4} parent=0 // pred_check_branch
    %30 = sbr.rel (0) target = $region33
  $region32: #{gnn_forward.4} parent=0 // pred_region
    _
  $region33: #{gnn_forward.4} parent=0 // pred_fallthru
    _
  // Predicated region
  $region34: #{gnn_forward.4} parent=0 // pred_check
    _
  $region35: #{gnn_forward.4} parent=0 // pred_check_branch
    %32 = sbr.rel (0) target = $region37
  $region36: #{gnn_forward.4} parent=0 // pred_region
    _
  $region37: #{gnn_forward.4} parent=0 // pred_fallthru
    _
  // Predicated region
  $region38: #{gnn_forward.4} parent=0 // pred_check
    _
  $region39: #{gnn_forward.4} parent=0 // pred_check_branch
    %34 = sbr.rel (0) target = $region41
  $region40: #{gnn_forward.4} parent=0 // pred_region
    _
  $region41: #{gnn_forward.4} parent=0 // pred_fallthru
    _
  %p35 = scmp.eq.s32.totalorder 0, 0
  // Predicated region
  $region42: #{gnn_forward.4} parent=0 // pred_check
    %p36 = pneg %p35
  $region43: #{gnn_forward.4} parent=0 // pred_check_branch
    %38 = sbr.rel (%p36) target = $region45
  $region44: #{gnn_forward.4} parent=0 // pred_region
    %39 = vst [vmem:[#allocation2] sm:$0xff] 0.0
    %40 = vst [vmem:[#allocation2 + $0x8] sm:$0xff] 0.0
    %vm41 = vcmask 7168
    %42 = vst.msk [vmem:[#allocation3] sm:$0xff] %vm41, -1e+30
    %43 = vst.msk [vmem:[#allocation3 + $0x8] sm:$0xff] %vm41, -1e+30
    %44 = vst.msk [vmem:[#allocation4] sm:$0xff] %vm41, 0.0
    %45 = vst.msk [vmem:[#allocation4 + $0x8] sm:$0xff] %vm41, 0.0
  $region45: #{gnn_forward.4} parent=0 // pred_fallthru
    _
  %v46 = vld [vmem:[%s2] sm:$0xf]
  %v47 = vld [vmem:[%s2 + $0x4] sm:$0xf]
  %v48 = vld [vmem:[%s2 + $0x8] sm:$0xf]
  %v49 = vld [vmem:[%s2 + $0xc] sm:$0xf]
  %v50 = vld [vmem:[%s2 + $0x10] sm:$0xf]
  %v51 = vld [vmem:[%s2 + $0x14] sm:$0xf]
  %v52 = vld [vmem:[%s2 + $0x18] sm:$0xf]
  %v53 = vld [vmem:[%s2 + $0x1c] sm:$0xf]
  %v54 = vld [vmem:[%s2 + $0x20] sm:$0xf]
  %v55 = vld [vmem:[%s2 + $0x24] sm:$0xf]
  %v56 = vld [vmem:[%s2 + $0x28] sm:$0xf]
  %v57 = vld [vmem:[%s2 + $0x2c] sm:$0xf]
  %v58 = vld [vmem:[%s2 + $0x30] sm:$0xf]
  %v59 = vld [vmem:[%s2 + $0x34] sm:$0xf]
  %v60 = vld [vmem:[%s2 + $0x38] sm:$0xf]
  %v61 = vld [vmem:[%s2 + $0x3c] sm:$0xf]
  %v62 = vld [vmem:[%s2 + $0x40] sm:$0xf]
  %v63 = vld [vmem:[%s2 + $0x44] sm:$0xf]
  %v64 = vld [vmem:[%s2 + $0x48] sm:$0xf]
  %v65 = vld [vmem:[%s2 + $0x4c] sm:$0xf]
  %v66 = vld [vmem:[%s2 + $0x50] sm:$0xf]
  %v67 = vld [vmem:[%s2 + $0x54] sm:$0xf]
  %v68 = vld [vmem:[%s2 + $0x58] sm:$0xf]
  %v69 = vld [vmem:[%s2 + $0x5c] sm:$0xf]
  %v70 = vld [vmem:[%s2 + $0x60] sm:$0xf]
  %v71 = vld [vmem:[%s2 + $0x64] sm:$0xf]
  %v72 = vld [vmem:[%s2 + $0x68] sm:$0xf]
  %v73 = vld [vmem:[%s2 + $0x6c] sm:$0xf]
  %v74 = vld [vmem:[%s2 + $0x70] sm:$0xf]
  %v75 = vld [vmem:[%s2 + $0x74] sm:$0xf]
  %v76 = vld [vmem:[%s2 + $0x78] sm:$0xf]
  %v77 = vld [vmem:[%s2 + $0x7c] sm:$0xf]
  %v78 = vld [vmem:[%s3] sm:$0xf]
  %v79 = vld [vmem:[%s3 + $0x4] sm:$0xf]
  %v80 = vld [vmem:[%s3 + $0x8] sm:$0xf]
  %v81 = vld [vmem:[%s3 + $0xc] sm:$0xf]
  %v82 = vld [vmem:[%s3 + $0x10] sm:$0xf]
  %v83 = vld [vmem:[%s3 + $0x14] sm:$0xf]
  %v84 = vld [vmem:[%s3 + $0x18] sm:$0xf]
  %v85 = vld [vmem:[%s3 + $0x1c] sm:$0xf]
  %v86 = vld [vmem:[%s3 + $0x20] sm:$0xf]
  %v87 = vld [vmem:[%s3 + $0x24] sm:$0xf]
  %v88 = vld [vmem:[%s3 + $0x28] sm:$0xf]
  %v89 = vld [vmem:[%s3 + $0x2c] sm:$0xf]
  %v90 = vld [vmem:[%s3 + $0x30] sm:$0xf]
  %v91 = vld [vmem:[%s3 + $0x34] sm:$0xf]
  %v92 = vld [vmem:[%s3 + $0x38] sm:$0xf]
  %v93 = vld [vmem:[%s3 + $0x3c] sm:$0xf]
  %v94 = vld [vmem:[%s3 + $0x40] sm:$0xf]
  %v95 = vld [vmem:[%s3 + $0x44] sm:$0xf]
  %v96 = vld [vmem:[%s3 + $0x48] sm:$0xf]
  %v97 = vld [vmem:[%s3 + $0x4c] sm:$0xf]
  %v98 = vld [vmem:[%s3 + $0x50] sm:$0xf]
  %v99 = vld [vmem:[%s3 + $0x54] sm:$0xf]
  %v100 = vld [vmem:[%s3 + $0x58] sm:$0xf]
  %v101 = vld [vmem:[%s3 + $0x5c] sm:$0xf]
  %v102 = vld [vmem:[%s3 + $0x60] sm:$0xf]
  %v103 = vld [vmem:[%s3 + $0x64] sm:$0xf]
  %v104 = vld [vmem:[%s3 + $0x68] sm:$0xf]
  %v105 = vld [vmem:[%s3 + $0x6c] sm:$0xf]
  %v106 = vld [vmem:[%s3 + $0x70] sm:$0xf]
  %v107 = vld [vmem:[%s3 + $0x74] sm:$0xf]
  %v108 = vld [vmem:[%s3 + $0x78] sm:$0xf]
  %v109 = vld [vmem:[%s3 + $0x7c] sm:$0xf]
  %v110 = vld [vmem:[%s0] sm:$0x3]
  %v111 = vld [vmem:[%s4] sm:$0xf]
  %v112 = vld [vmem:[%s4 + $0x4] sm:$0xf]
  %v113 = vld [vmem:[%s4 + $0x8] sm:$0xf]
  %v114 = vld [vmem:[%s4 + $0xc] sm:$0xf]
  %v115 = vld [vmem:[%s4 + $0x10] sm:$0xf]
  %v116 = vld [vmem:[%s4 + $0x14] sm:$0xf]
  %v117 = vld [vmem:[%s4 + $0x18] sm:$0xf]
  %v118 = vld [vmem:[%s4 + $0x1c] sm:$0xf]
  %v119 = vld [vmem:[%s4 + $0x20] sm:$0xf]
  %v120 = vld [vmem:[%s4 + $0x24] sm:$0xf]
  %v121 = vld [vmem:[%s4 + $0x28] sm:$0xf]
  %v122 = vld [vmem:[%s4 + $0x2c] sm:$0xf]
  %v123 = vld [vmem:[%s4 + $0x30] sm:$0xf]
  %v124 = vld [vmem:[%s4 + $0x34] sm:$0xf]
  %v125 = vld [vmem:[%s4 + $0x38] sm:$0xf]
  %v126 = vld [vmem:[%s4 + $0x3c] sm:$0xf]
  %v127 = vld [vmem:[%s5] sm:$0xf]
  %v128 = vld [vmem:[%s5 + $0x4] sm:$0xf]
  %v129 = vld [vmem:[%s5 + $0x8] sm:$0xf]
  %v130 = vld [vmem:[%s5 + $0xc] sm:$0xf]
  %v131 = vld [vmem:[%s5 + $0x10] sm:$0xf]
  %v132 = vld [vmem:[%s5 + $0x14] sm:$0xf]
  %v133 = vld [vmem:[%s5 + $0x18] sm:$0xf]
  %v134 = vld [vmem:[%s5 + $0x1c] sm:$0xf]
  %v135 = vld [vmem:[%s5 + $0x20] sm:$0xf]
  %v136 = vld [vmem:[%s5 + $0x24] sm:$0xf]
  %v137 = vld [vmem:[%s5 + $0x28] sm:$0xf]
  %v138 = vld [vmem:[%s5 + $0x2c] sm:$0xf]
  %v139 = vld [vmem:[%s5 + $0x30] sm:$0xf]
  %v140 = vld [vmem:[%s5 + $0x34] sm:$0xf]
  %v141 = vld [vmem:[%s5 + $0x38] sm:$0xf]
  %v142 = vld [vmem:[%s5 + $0x3c] sm:$0xf]
  %v175 = vunpack.c.l.b16 %v78
  %v176 = vunpack.c.l.b16 %v79
  %v177 = vunpack.c.l.b16 %v80
  %v178 = vunpack.c.l.b16 %v81
  %v179 = vunpack.c.l.b16 %v82
  %v180 = vunpack.c.l.b16 %v83
  %v181 = vunpack.c.l.b16 %v84
  %v182 = vunpack.c.l.b16 %v85
  %v183 = vunpack.c.l.b16 %v86
  %v184 = vunpack.c.l.b16 %v87
  %v185 = vunpack.c.l.b16 %v88
  %v186 = vunpack.c.l.b16 %v89
  %v187 = vunpack.c.l.b16 %v90
  %v188 = vunpack.c.l.b16 %v91
  %v189 = vunpack.c.l.b16 %v92
  %v190 = vunpack.c.l.b16 %v93
  %v191 = vunpack.c.l.b16 %v94
  %v192 = vunpack.c.l.b16 %v95
  %v193 = vunpack.c.l.b16 %v96
  %v194 = vunpack.c.l.b16 %v97
  %v195 = vunpack.c.l.b16 %v98
  %v196 = vunpack.c.l.b16 %v99
  %v197 = vunpack.c.l.b16 %v100
  %v198 = vunpack.c.l.b16 %v101
  %v199 = vunpack.c.l.b16 %v102
  %v200 = vunpack.c.l.b16 %v103
  %v201 = vunpack.c.l.b16 %v104
  %v202 = vunpack.c.l.b16 %v105
  %v203 = vunpack.c.l.b16 %v106
  %v204 = vunpack.c.l.b16 %v107
  %v205 = vunpack.c.l.b16 %v108
  %v206 = vunpack.c.l.b16 %v109
  %v207 = vpack.c.b16 %v176, %v175
  %v208 = vpack.c.b16 %v178, %v177
  %v209 = vpack.c.b16 %v180, %v179
  %v210 = vpack.c.b16 %v182, %v181
  %v211 = vpack.c.b16 %v184, %v183
  %v212 = vpack.c.b16 %v186, %v185
  %v213 = vpack.c.b16 %v188, %v187
  %v214 = vpack.c.b16 %v190, %v189
  %v215 = vpack.c.b16 %v192, %v191
  %v216 = vpack.c.b16 %v194, %v193
  %v217 = vpack.c.b16 %v196, %v195
  %v218 = vpack.c.b16 %v198, %v197
  %v219 = vpack.c.b16 %v200, %v199
  %v220 = vpack.c.b16 %v202, %v201
  %v221 = vpack.c.b16 %v204, %v203
  %v222 = vpack.c.b16 %v206, %v205
  %v255 = vunpack.c.l.b16 %v127
  %v256 = vunpack.c.l.b16 %v128
  %v257 = vunpack.c.l.b16 %v129
  %v258 = vunpack.c.l.b16 %v130
  %v259 = vunpack.c.l.b16 %v131
  %v260 = vunpack.c.l.b16 %v132
  %v261 = vunpack.c.l.b16 %v133
  %v262 = vunpack.c.l.b16 %v134
  %v263 = vunpack.c.l.b16 %v135
  %v264 = vunpack.c.l.b16 %v136
  %v265 = vunpack.c.l.b16 %v137
  %v266 = vunpack.c.l.b16 %v138
  %v267 = vunpack.c.l.b16 %v139
  %v268 = vunpack.c.l.b16 %v140
  %v269 = vunpack.c.l.b16 %v141
  %v270 = vunpack.c.l.b16 %v142
  %v271 = vpack.c.b16 %v256, %v255
  %v272 = vpack.c.b16 %v258, %v257
  %v273 = vpack.c.b16 %v260, %v259
  %v274 = vpack.c.b16 %v262, %v261
  %v275 = vpack.c.b16 %v264, %v263
  %v276 = vpack.c.b16 %v266, %v265
  %v277 = vpack.c.b16 %v268, %v267
  %v278 = vpack.c.b16 %v270, %v269
  %287 = vmatpush.bf16.msra.mxu0 %v278
  %288 = vmatpush.bf16.msra.mxu0 %v277
  %289 = vmatpush.bf16.msra.mxu0 %v276
  %290 = vmatpush.bf16.msra.mxu0 %v275
  %291 = vmatpush.bf16.msra.mxu0 %v274
  %292 = vmatpush.bf16.msra.mxu0 %v273
  %293 = vmatpush.bf16.msra.mxu0 %v272
  %294 = vmatpush.bf16.msra.mxu0 %v271
  %295 = vmatmul.bf16.gmra.mxu0 %v207
  %v296 = vpop.f32.mrf.mxu0
  %v297 = vadd.f32 0.0, %v296
  %v298 = vpop.f32.mrf.mxu0
  %v299 = vadd.f32 0.0, %v298
  %300 = vmatmul.bf16.gmra.mxu0 %v208
  %v301 = vpop.f32.mrf.mxu0
  %v302 = vadd.f32 0.0, %v301
  %v303 = vpop.f32.mrf.mxu0
  %v304 = vadd.f32 0.0, %v303
  %305 = vmatmul.bf16.gmra.mxu0 %v209
  %v306 = vpop.f32.mrf.mxu0
  %v307 = vadd.f32 0.0, %v306
  %v308 = vpop.f32.mrf.mxu0
  %v309 = vadd.f32 0.0, %v308
  %310 = vmatmul.bf16.gmra.mxu0 %v210
  %v311 = vpop.f32.mrf.mxu0
  %v312 = vadd.f32 0.0, %v311
  %v313 = vpop.f32.mrf.mxu0
  %v314 = vadd.f32 0.0, %v313
  %315 = vmatmul.bf16.gmra.mxu0 %v211
  %v316 = vpop.f32.mrf.mxu0
  %v317 = vadd.f32 0.0, %v316
  %v318 = vpop.f32.mrf.mxu0
  %v319 = vadd.f32 0.0, %v318
  %320 = vmatmul.bf16.gmra.mxu0 %v212
  %v321 = vpop.f32.mrf.mxu0
  %v322 = vadd.f32 0.0, %v321
  %v323 = vpop.f32.mrf.mxu0
  %v324 = vadd.f32 0.0, %v323
  %325 = vmatmul.bf16.gmra.mxu0 %v213
  %v326 = vpop.f32.mrf.mxu0
  %v327 = vadd.f32 0.0, %v326
  %v328 = vpop.f32.mrf.mxu0
  %v329 = vadd.f32 0.0, %v328
  %330 = vmatmul.bf16.gmra.mxu0 %v214
  %v331 = vpop.f32.mrf.mxu0
  %v332 = vadd.f32 0.0, %v331
  %v333 = vpop.f32.mrf.mxu0
  %v334 = vadd.f32 0.0, %v333
  %335 = vmatmul.bf16.gmra.mxu0 %v215
  %v336 = vpop.f32.mrf.mxu0
  %v337 = vadd.f32 0.0, %v336
  %v338 = vpop.f32.mrf.mxu0
  %v339 = vadd.f32 0.0, %v338
  %340 = vmatmul.bf16.gmra.mxu0 %v216
  %v341 = vpop.f32.mrf.mxu0
  %v342 = vadd.f32 0.0, %v341
  %v343 = vpop.f32.mrf.mxu0
  %v344 = vadd.f32 0.0, %v343
  %345 = vmatmul.bf16.gmra.mxu0 %v217
  %v346 = vpop.f32.mrf.mxu0
  %v347 = vadd.f32 0.0, %v346
  %v348 = vpop.f32.mrf.mxu0
  %v349 = vadd.f32 0.0, %v348
  %350 = vmatmul.bf16.gmra.mxu0 %v218
  %v351 = vpop.f32.mrf.mxu0
  %v352 = vadd.f32 0.0, %v351
  %v353 = vpop.f32.mrf.mxu0
  %v354 = vadd.f32 0.0, %v353
  %355 = vmatmul.bf16.gmra.mxu0 %v219
  %v356 = vpop.f32.mrf.mxu0
  %v357 = vadd.f32 0.0, %v356
  %v358 = vpop.f32.mrf.mxu0
  %v359 = vadd.f32 0.0, %v358
  %360 = vmatmul.bf16.gmra.mxu0 %v220
  %v361 = vpop.f32.mrf.mxu0
  %v362 = vadd.f32 0.0, %v361
  %v363 = vpop.f32.mrf.mxu0
  %v364 = vadd.f32 0.0, %v363
  %365 = vmatmul.bf16.gmra.mxu0 %v221
  %v366 = vpop.f32.mrf.mxu0
  %v367 = vadd.f32 0.0, %v366
  %v368 = vpop.f32.mrf.mxu0
  %v369 = vadd.f32 0.0, %v368
  %370 = vmatmul.bf16.gmra.mxu0 %v222
  %v371 = vpop.f32.mrf.mxu0
  %v372 = vadd.f32 0.0, %v371
  %v373 = vpop.f32.mrf.mxu0
  %v374 = vadd.f32 0.0, %v373
  %375 = vdwg.mxu0
  %v408 = vunpack.c.l.b16 %v46
  %v409 = vunpack.c.l.b16 %v47
  %v410 = vunpack.c.l.b16 %v48
  %v411 = vunpack.c.l.b16 %v49
  %v412 = vunpack.c.l.b16 %v50
  %v413 = vunpack.c.l.b16 %v51
  %v414 = vunpack.c.l.b16 %v52
  %v415 = vunpack.c.l.b16 %v53
  %v416 = vunpack.c.l.b16 %v54
  %v417 = vunpack.c.l.b16 %v55
  %v418 = vunpack.c.l.b16 %v56
  %v419 = vunpack.c.l.b16 %v57
  %v420 = vunpack.c.l.b16 %v58
  %v421 = vunpack.c.l.b16 %v59
  %v422 = vunpack.c.l.b16 %v60
  %v423 = vunpack.c.l.b16 %v61
  %v424 = vunpack.c.l.b16 %v62
  %v425 = vunpack.c.l.b16 %v63
  %v426 = vunpack.c.l.b16 %v64
  %v427 = vunpack.c.l.b16 %v65
  %v428 = vunpack.c.l.b16 %v66
  %v429 = vunpack.c.l.b16 %v67
  %v430 = vunpack.c.l.b16 %v68
  %v431 = vunpack.c.l.b16 %v69
  %v432 = vunpack.c.l.b16 %v70
  %v433 = vunpack.c.l.b16 %v71
  %v434 = vunpack.c.l.b16 %v72
  %v435 = vunpack.c.l.b16 %v73
  %v436 = vunpack.c.l.b16 %v74
  %v437 = vunpack.c.l.b16 %v75
  %v438 = vunpack.c.l.b16 %v76
  %v439 = vunpack.c.l.b16 %v77
  %v440 = vpack.c.b16 %v409, %v408
  %v441 = vpack.c.b16 %v411, %v410
  %v442 = vpack.c.b16 %v413, %v412
  %v443 = vpack.c.b16 %v415, %v414
  %v444 = vpack.c.b16 %v417, %v416
  %v445 = vpack.c.b16 %v419, %v418
  %v446 = vpack.c.b16 %v421, %v420
  %v447 = vpack.c.b16 %v423, %v422
  %v448 = vpack.c.b16 %v425, %v424
  %v449 = vpack.c.b16 %v427, %v426
  %v450 = vpack.c.b16 %v429, %v428
  %v451 = vpack.c.b16 %v431, %v430
  %v452 = vpack.c.b16 %v433, %v432
  %v453 = vpack.c.b16 %v435, %v434
  %v454 = vpack.c.b16 %v437, %v436
  %v455 = vpack.c.b16 %v439, %v438
  %v488 = vunpack.c.l.b16 %v111
  %v489 = vunpack.c.l.b16 %v112
  %v490 = vunpack.c.l.b16 %v113
  %v491 = vunpack.c.l.b16 %v114
  %v492 = vunpack.c.l.b16 %v115
  %v493 = vunpack.c.l.b16 %v116
  %v494 = vunpack.c.l.b16 %v117
  %v495 = vunpack.c.l.b16 %v118
  %v496 = vunpack.c.l.b16 %v119
  %v497 = vunpack.c.l.b16 %v120
  %v498 = vunpack.c.l.b16 %v121
  %v499 = vunpack.c.l.b16 %v122
  %v500 = vunpack.c.l.b16 %v123
  %v501 = vunpack.c.l.b16 %v124
  %v502 = vunpack.c.l.b16 %v125
  %v503 = vunpack.c.l.b16 %v126
  %v504 = vpack.c.b16 %v489, %v488
  %v505 = vpack.c.b16 %v491, %v490
  %v506 = vpack.c.b16 %v493, %v492
  %v507 = vpack.c.b16 %v495, %v494
  %v508 = vpack.c.b16 %v497, %v496
  %v509 = vpack.c.b16 %v499, %v498
  %v510 = vpack.c.b16 %v501, %v500
  %v511 = vpack.c.b16 %v503, %v502
  %520 = vmatpush.bf16.msra.mxu0 %v511
  %521 = vmatpush.bf16.msra.mxu0 %v510
  %522 = vmatpush.bf16.msra.mxu0 %v509
  %523 = vmatpush.bf16.msra.mxu0 %v508
  %524 = vmatpush.bf16.msra.mxu0 %v507
  %525 = vmatpush.bf16.msra.mxu0 %v506
  %526 = vmatpush.bf16.msra.mxu0 %v505
  %527 = vmatpush.bf16.msra.mxu0 %v504
  %528 = vmatmul.bf16.gmra.mxu0 %v440
  %v529 = vpop.f32.mrf.mxu0
  %v530 = vadd.f32 %v297, %v529
  %v531 = vpop.f32.mrf.mxu0
  %v532 = vadd.f32 %v299, %v531
  %533 = vmatmul.bf16.gmra.mxu0 %v441
  %v534 = vpop.f32.mrf.mxu0
  %v535 = vadd.f32 %v302, %v534
  %v536 = vpop.f32.mrf.mxu0
  %v537 = vadd.f32 %v304, %v536
  %538 = vmatmul.bf16.gmra.mxu0 %v442
  %v539 = vpop.f32.mrf.mxu0
  %v540 = vadd.f32 %v307, %v539
  %v541 = vpop.f32.mrf.mxu0
  %v542 = vadd.f32 %v309, %v541
  %543 = vmatmul.bf16.gmra.mxu0 %v443
  %v544 = vpop.f32.mrf.mxu0
  %v545 = vadd.f32 %v312, %v544
  %v546 = vpop.f32.mrf.mxu0
  %v547 = vadd.f32 %v314, %v546
  %548 = vmatmul.bf16.gmra.mxu0 %v444
  %v549 = vpop.f32.mrf.mxu0
  %v550 = vadd.f32 %v317, %v549
  %v551 = vpop.f32.mrf.mxu0
  %v552 = vadd.f32 %v319, %v551
  %553 = vmatmul.bf16.gmra.mxu0 %v445
  %v554 = vpop.f32.mrf.mxu0
  %v555 = vadd.f32 %v322, %v554
  %v556 = vpop.f32.mrf.mxu0
  %v557 = vadd.f32 %v324, %v556
  %558 = vmatmul.bf16.gmra.mxu0 %v446
  %v559 = vpop.f32.mrf.mxu0
  %v560 = vadd.f32 %v327, %v559
  %v561 = vpop.f32.mrf.mxu0
  %v562 = vadd.f32 %v329, %v561
  %563 = vmatmul.bf16.gmra.mxu0 %v447
  %v564 = vpop.f32.mrf.mxu0
  %v565 = vadd.f32 %v332, %v564
  %v566 = vpop.f32.mrf.mxu0
  %v567 = vadd.f32 %v334, %v566
  %568 = vmatmul.bf16.gmra.mxu0 %v448
  %v569 = vpop.f32.mrf.mxu0
  %v570 = vadd.f32 %v337, %v569
  %v571 = vpop.f32.mrf.mxu0
  %v572 = vadd.f32 %v339, %v571
  %573 = vmatmul.bf16.gmra.mxu0 %v449
  %v574 = vpop.f32.mrf.mxu0
  %v575 = vadd.f32 %v342, %v574
  %v576 = vpop.f32.mrf.mxu0
  %v577 = vadd.f32 %v344, %v576
  %578 = vmatmul.bf16.gmra.mxu0 %v450
  %v579 = vpop.f32.mrf.mxu0
  %v580 = vadd.f32 %v347, %v579
  %v581 = vpop.f32.mrf.mxu0
  %v582 = vadd.f32 %v349, %v581
  %583 = vmatmul.bf16.gmra.mxu0 %v451
  %v584 = vpop.f32.mrf.mxu0
  %v585 = vadd.f32 %v352, %v584
  %v586 = vpop.f32.mrf.mxu0
  %v587 = vadd.f32 %v354, %v586
  %588 = vmatmul.bf16.gmra.mxu0 %v452
  %v589 = vpop.f32.mrf.mxu0
  %v590 = vadd.f32 %v357, %v589
  %v591 = vpop.f32.mrf.mxu0
  %v592 = vadd.f32 %v359, %v591
  %593 = vmatmul.bf16.gmra.mxu0 %v453
  %v594 = vpop.f32.mrf.mxu0
  %v595 = vadd.f32 %v362, %v594
  %v596 = vpop.f32.mrf.mxu0
  %v597 = vadd.f32 %v364, %v596
  %598 = vmatmul.bf16.gmra.mxu0 %v454
  %v599 = vpop.f32.mrf.mxu0
  %v600 = vadd.f32 %v367, %v599
  %v601 = vpop.f32.mrf.mxu0
  %v602 = vadd.f32 %v369, %v601
  %603 = vmatmul.bf16.gmra.mxu0 %v455
  %v604 = vpop.f32.mrf.mxu0
  %v605 = vadd.f32 %v372, %v604
  %v606 = vpop.f32.mrf.mxu0
  %v607 = vadd.f32 %v374, %v606
  %608 = vdwg.mxu0
  %vm609 = vcmp.gt.f32.partialorder %v530, 0.0
  %vm610 = vcmp.gt.f32.partialorder %v532, 0.0
  %vm611 = vcmp.gt.f32.partialorder %v535, 0.0
  %vm612 = vcmp.gt.f32.partialorder %v537, 0.0
  %vm613 = vcmp.gt.f32.partialorder %v540, 0.0
  %vm614 = vcmp.gt.f32.partialorder %v542, 0.0
  %vm615 = vcmp.gt.f32.partialorder %v545, 0.0
  %vm616 = vcmp.gt.f32.partialorder %v547, 0.0
  %vm617 = vcmp.gt.f32.partialorder %v550, 0.0
  %vm618 = vcmp.gt.f32.partialorder %v552, 0.0
  %vm619 = vcmp.gt.f32.partialorder %v555, 0.0
  %vm620 = vcmp.gt.f32.partialorder %v557, 0.0
  %vm621 = vcmp.gt.f32.partialorder %v560, 0.0
  %vm622 = vcmp.gt.f32.partialorder %v562, 0.0
  %vm623 = vcmp.gt.f32.partialorder %v565, 0.0
  %vm624 = vcmp.gt.f32.partialorder %v567, 0.0
  %vm625 = vcmp.gt.f32.partialorder %v570, 0.0
  %vm626 = vcmp.gt.f32.partialorder %v572, 0.0
  %vm627 = vcmp.gt.f32.partialorder %v575, 0.0
  %vm628 = vcmp.gt.f32.partialorder %v577, 0.0
  %vm629 = vcmp.gt.f32.partialorder %v580, 0.0
  %vm630 = vcmp.gt.f32.partialorder %v582, 0.0
  %vm631 = vcmp.gt.f32.partialorder %v585, 0.0
  %vm632 = vcmp.gt.f32.partialorder %v587, 0.0
  %vm633 = vcmp.gt.f32.partialorder %v590, 0.0
  %vm634 = vcmp.gt.f32.partialorder %v592, 0.0
  %vm635 = vcmp.gt.f32.partialorder %v595, 0.0
  %vm636 = vcmp.gt.f32.partialorder %v597, 0.0
  %vm637 = vcmp.gt.f32.partialorder %v600, 0.0
  %vm638 = vcmp.gt.f32.partialorder %v602, 0.0
  %vm639 = vcmp.gt.f32.partialorder %v605, 0.0
  %vm640 = vcmp.gt.f32.partialorder %v607, 0.0
  %v641 = vmul.f32 %v530, 0.01
  %v642 = vmul.f32 %v532, 0.01
  %v643 = vmul.f32 %v535, 0.01
  %v644 = vmul.f32 %v537, 0.01
  %v645 = vmul.f32 %v540, 0.01
  %v646 = vmul.f32 %v542, 0.01
  %v647 = vmul.f32 %v545, 0.01
  %v648 = vmul.f32 %v547, 0.01
  %v649 = vmul.f32 %v550, 0.01
  %v650 = vmul.f32 %v552, 0.01
  %v651 = vmul.f32 %v555, 0.01
  %v652 = vmul.f32 %v557, 0.01
  %v653 = vmul.f32 %v560, 0.01
  %v654 = vmul.f32 %v562, 0.01
  %v655 = vmul.f32 %v565, 0.01
  %v656 = vmul.f32 %v567, 0.01
  %v657 = vmul.f32 %v570, 0.01
  %v658 = vmul.f32 %v572, 0.01
  %v659 = vmul.f32 %v575, 0.01
  %v660 = vmul.f32 %v577, 0.01
  %v661 = vmul.f32 %v580, 0.01
  %v662 = vmul.f32 %v582, 0.01
  %v663 = vmul.f32 %v585, 0.01
  %v664 = vmul.f32 %v587, 0.01
  %v665 = vmul.f32 %v590, 0.01
  %v666 = vmul.f32 %v592, 0.01
  %v667 = vmul.f32 %v595, 0.01
  %v668 = vmul.f32 %v597, 0.01
  %v669 = vmul.f32 %v600, 0.01
  %v670 = vmul.f32 %v602, 0.01
  %v671 = vmul.f32 %v605, 0.01
  %v672 = vmul.f32 %v607, 0.01
  %v673 = vsel %vm609, %v530, %v641
  %v674 = vsel %vm610, %v532, %v642
  %v675 = vsel %vm611, %v535, %v643
  %v676 = vsel %vm612, %v537, %v644
  %v677 = vsel %vm613, %v540, %v645
  %v678 = vsel %vm614, %v542, %v646
  %v679 = vsel %vm615, %v545, %v647
  %v680 = vsel %vm616, %v547, %v648
  %v681 = vsel %vm617, %v550, %v649
  %v682 = vsel %vm618, %v552, %v650
  %v683 = vsel %vm619, %v555, %v651
  %v684 = vsel %vm620, %v557, %v652
  %v685 = vsel %vm621, %v560, %v653
  %v686 = vsel %vm622, %v562, %v654
  %v687 = vsel %vm623, %v565, %v655
  %v688 = vsel %vm624, %v567, %v656
  %v689 = vsel %vm625, %v570, %v657
  %v690 = vsel %vm626, %v572, %v658
  %v691 = vsel %vm627, %v575, %v659
  %v692 = vsel %vm628, %v577, %v660
  %v693 = vsel %vm629, %v580, %v661
  %v694 = vsel %vm630, %v582, %v662
  %v695 = vsel %vm631, %v585, %v663
  %v696 = vsel %vm632, %v587, %v664
  %v697 = vsel %vm633, %v590, %v665
  %v698 = vsel %vm634, %v592, %v666
  %v699 = vsel %vm635, %v595, %v667
  %v700 = vsel %vm636, %v597, %v668
  %v701 = vsel %vm637, %v600, %v669
  %v702 = vsel %vm638, %v602, %v670
  %v703 = vsel %vm639, %v605, %v671
  %v704 = vsel %vm640, %v607, %v672
  %v705 = vpack.c.bf16 %v674, %v673
  %v706 = vpack.c.bf16 %v676, %v675
  %v707 = vpack.c.bf16 %v678, %v677
  %v708 = vpack.c.bf16 %v680, %v679
  %v709 = vpack.c.bf16 %v682, %v681
  %v710 = vpack.c.bf16 %v684, %v683
  %v711 = vpack.c.bf16 %v686, %v685
  %v712 = vpack.c.bf16 %v688, %v687
  %v713 = vpack.c.bf16 %v690, %v689
  %v714 = vpack.c.bf16 %v692, %v691
  %v715 = vpack.c.bf16 %v694, %v693
  %v716 = vpack.c.bf16 %v696, %v695
  %v717 = vpack.c.bf16 %v698, %v697
  %v718 = vpack.c.bf16 %v700, %v699
  %v719 = vpack.c.bf16 %v702, %v701
  %v720 = vpack.c.bf16 %v704, %v703
  %v721 = vld [vmem:[%s6] sm:$0xf]
  %v722 = vld [vmem:[%s6 + $0x4] sm:$0xf]
  %v723 = vld [vmem:[%s6 + $0x8] sm:$0xf]
  %v724 = vld [vmem:[%s6 + $0xc] sm:$0xf]
  %v725 = vld [vmem:[%s6 + $0x10] sm:$0xf]
  %v726 = vld [vmem:[%s6 + $0x14] sm:$0xf]
  %v727 = vld [vmem:[%s6 + $0x18] sm:$0xf]
  %v728 = vld [vmem:[%s6 + $0x1c] sm:$0xf]
  %v729 = vld [vmem:[%s6 + $0x20] sm:$0xf]
  %v730 = vld [vmem:[%s6 + $0x24] sm:$0xf]
  %v731 = vld [vmem:[%s6 + $0x28] sm:$0xf]
  %v732 = vld [vmem:[%s6 + $0x2c] sm:$0xf]
  %v733 = vld [vmem:[%s6 + $0x30] sm:$0xf]
  %v734 = vld [vmem:[%s6 + $0x34] sm:$0xf]
  %v735 = vld [vmem:[%s6 + $0x38] sm:$0xf]
  %v736 = vld [vmem:[%s6 + $0x3c] sm:$0xf]
  %v753 = vunpack.c.l.b16 %v721
  %v754 = vunpack.c.l.b16 %v722
  %v755 = vunpack.c.l.b16 %v723
  %v756 = vunpack.c.l.b16 %v724
  %v757 = vunpack.c.l.b16 %v725
  %v758 = vunpack.c.l.b16 %v726
  %v759 = vunpack.c.l.b16 %v727
  %v760 = vunpack.c.l.b16 %v728
  %v761 = vunpack.c.l.b16 %v729
  %v762 = vunpack.c.l.b16 %v730
  %v763 = vunpack.c.l.b16 %v731
  %v764 = vunpack.c.l.b16 %v732
  %v765 = vunpack.c.l.b16 %v733
  %v766 = vunpack.c.l.b16 %v734
  %v767 = vunpack.c.l.b16 %v735
  %v768 = vunpack.c.l.b16 %v736
  %v769 = vpack.c.b16 %v754, %v753
  %v770 = vpack.c.b16 %v756, %v755
  %v771 = vpack.c.b16 %v758, %v757
  %v772 = vpack.c.b16 %v760, %v759
  %v773 = vpack.c.b16 %v762, %v761
  %v774 = vpack.c.b16 %v764, %v763
  %v775 = vpack.c.b16 %v766, %v765
  %v776 = vpack.c.b16 %v768, %v767
  %785 = vmatpush.bf16.msra.mxu0 %v776
  %786 = vmatpush.bf16.msra.mxu0 %v775
  %787 = vmatpush.bf16.msra.mxu0 %v774
  %788 = vmatpush.bf16.msra.mxu0 %v773
  %789 = vmatpush.bf16.msra.mxu0 %v772
  %790 = vmatpush.bf16.msra.mxu0 %v771
  %791 = vmatpush.bf16.msra.mxu0 %v770
  %792 = vmatpush.bf16.msra.mxu0 %v769
  %793 = vmatmul.bf16.gmra.mxu0 %v705
  %v794 = vpop.f32.mrf.mxu0
  %v795 = vadd.f32 0.0, %v794
  %v796 = vpop.f32.mrf.mxu0
  %v797 = vadd.f32 0.0, %v796
  %798 = vmatmul.bf16.gmra.mxu0 %v706
  %v799 = vpop.f32.mrf.mxu0
  %v800 = vadd.f32 0.0, %v799
  %v801 = vpop.f32.mrf.mxu0
  %v802 = vadd.f32 0.0, %v801
  %803 = vmatmul.bf16.gmra.mxu0 %v707
  %v804 = vpop.f32.mrf.mxu0
  %v805 = vadd.f32 0.0, %v804
  %v806 = vpop.f32.mrf.mxu0
  %v807 = vadd.f32 0.0, %v806
  %808 = vmatmul.bf16.gmra.mxu0 %v708
  %v809 = vpop.f32.mrf.mxu0
  %v810 = vadd.f32 0.0, %v809
  %v811 = vpop.f32.mrf.mxu0
  %v812 = vadd.f32 0.0, %v811
  %813 = vmatmul.bf16.gmra.mxu0 %v709
  %v814 = vpop.f32.mrf.mxu0
  %v815 = vadd.f32 0.0, %v814
  %v816 = vpop.f32.mrf.mxu0
  %v817 = vadd.f32 0.0, %v816
  %818 = vmatmul.bf16.gmra.mxu0 %v710
  %v819 = vpop.f32.mrf.mxu0
  %v820 = vadd.f32 0.0, %v819
  %v821 = vpop.f32.mrf.mxu0
  %v822 = vadd.f32 0.0, %v821
  %823 = vmatmul.bf16.gmra.mxu0 %v711
  %v824 = vpop.f32.mrf.mxu0
  %v825 = vadd.f32 0.0, %v824
  %v826 = vpop.f32.mrf.mxu0
  %v827 = vadd.f32 0.0, %v826
  %828 = vmatmul.bf16.gmra.mxu0 %v712
  %v829 = vpop.f32.mrf.mxu0
  %v830 = vadd.f32 0.0, %v829
  %v831 = vpop.f32.mrf.mxu0
  %v832 = vadd.f32 0.0, %v831
  %833 = vmatmul.bf16.gmra.mxu0 %v713
  %v834 = vpop.f32.mrf.mxu0
  %v835 = vadd.f32 0.0, %v834
  %v836 = vpop.f32.mrf.mxu0
  %v837 = vadd.f32 0.0, %v836
  %838 = vmatmul.bf16.gmra.mxu0 %v714
  %v839 = vpop.f32.mrf.mxu0
  %v840 = vadd.f32 0.0, %v839
  %v841 = vpop.f32.mrf.mxu0
  %v842 = vadd.f32 0.0, %v841
  %843 = vmatmul.bf16.gmra.mxu0 %v715
  %v844 = vpop.f32.mrf.mxu0
  %v845 = vadd.f32 0.0, %v844
  %v846 = vpop.f32.mrf.mxu0
  %v847 = vadd.f32 0.0, %v846
  %848 = vmatmul.bf16.gmra.mxu0 %v716
  %v849 = vpop.f32.mrf.mxu0
  %v850 = vadd.f32 0.0, %v849
  %v851 = vpop.f32.mrf.mxu0
  %v852 = vadd.f32 0.0, %v851
  %853 = vmatmul.bf16.gmra.mxu0 %v717
  %v854 = vpop.f32.mrf.mxu0
  %v855 = vadd.f32 0.0, %v854
  %v856 = vpop.f32.mrf.mxu0
  %v857 = vadd.f32 0.0, %v856
  %858 = vmatmul.bf16.gmra.mxu0 %v718
  %v859 = vpop.f32.mrf.mxu0
  %v860 = vadd.f32 0.0, %v859
  %v861 = vpop.f32.mrf.mxu0
  %v862 = vadd.f32 0.0, %v861
  %863 = vmatmul.bf16.gmra.mxu0 %v719
  %v864 = vpop.f32.mrf.mxu0
  %v865 = vadd.f32 0.0, %v864
  %v866 = vpop.f32.mrf.mxu0
  %v867 = vadd.f32 0.0, %v866
  %868 = vmatmul.bf16.gmra.mxu0 %v720
  %v869 = vpop.f32.mrf.mxu0
  %v870 = vadd.f32 0.0, %v869
  %v871 = vpop.f32.mrf.mxu0
  %v872 = vadd.f32 0.0, %v871
  %873 = vdwg.mxu0
  %v874 = vld [vmem:[%s7] sm:$0x1]
  %vm875 = vcmp.ge.s32.totalorder %v110, 0
  %v876 = vld [vmem:[%s1] sm:$0x3]
  %v878 = vperm.slane %v876, 0
  %v879 = vperm.slane %v876, 1
  %882 = vmatpush.xpose.msra.mxu0 %v688
  %883 = vmatpush.xpose.msra.mxu0 %v687
  %884 = vmatpush.xpose.msra.mxu0 %v686
  %885 = vmatpush.xpose.msra.mxu0 %v685
  %886 = vmatpush.xpose.msra.mxu0 %v684
  %887 = vmatpush.xpose.msra.mxu0 %v683
  %888 = vmatpush.xpose.msra.mxu0 %v682
  %889 = vmatpush.xpose.msra.mxu0 %v681
  %890 = vmatpush.xpose.msra.mxu0 %v680
  %891 = vmatpush.xpose.msra.mxu0 %v679
  %892 = vmatpush.xpose.msra.mxu0 %v678
  %893 = vmatpush.xpose.msra.mxu0 %v677
  %894 = vmatpush.xpose.msra.mxu0 %v676
  %895 = vmatpush.xpose.msra.mxu0 %v675
  %896 = vmatpush.xpose.msra.mxu0 %v674
  %897 = vmatpush.xpose.msra.mxu0 %v673
  %898 = vmatmul.f32.gmra.mxu0 %v874
  %v899 = vpop.f32.mrf.mxu0
  %v900 = vadd.f32 %v878, %v899
  %901 = vdwg.mxu0
  %902 = vmatpush.xpose.msra.mxu0 %v704
  %903 = vmatpush.xpose.msra.mxu0 %v703
  %904 = vmatpush.xpose.msra.mxu0 %v702
  %905 = vmatpush.xpose.msra.mxu0 %v701
  %906 = vmatpush.xpose.msra.mxu0 %v700
  %907 = vmatpush.xpose.msra.mxu0 %v699
  %908 = vmatpush.xpose.msra.mxu0 %v698
  %909 = vmatpush.xpose.msra.mxu0 %v697
  %910 = vmatpush.xpose.msra.mxu0 %v696
  %911 = vmatpush.xpose.msra.mxu0 %v695
  %912 = vmatpush.xpose.msra.mxu0 %v694
  %913 = vmatpush.xpose.msra.mxu0 %v693
  %914 = vmatpush.xpose.msra.mxu0 %v692
  %915 = vmatpush.xpose.msra.mxu0 %v691
  %916 = vmatpush.xpose.msra.mxu0 %v690
  %917 = vmatpush.xpose.msra.mxu0 %v689
  %918 = vmatmul.f32.gmra.mxu0 %v874
  %v919 = vpop.f32.mrf.mxu0
  %v920 = vadd.f32 %v879, %v919
  %921 = vdwg.mxu0
  %vm922 = vcmp.gt.f32.partialorder %v900, 0.0
  %vm923 = vcmp.gt.f32.partialorder %v920, 0.0
  %v924 = vmul.f32 %v900, 0.01
  %v925 = vmul.f32 %v920, 0.01
  %v926 = vsel %vm922, %v900, %v924
  %v927 = vsel %vm923, %v920, %v925
  %v930 = vrot.slane %v927, 7
  %vm931 = vcmask 1040384
  %v932 = vsel %vm931, %v926, %v930
  %v934 = vsel %vm875, %v932, -1e+30
  %v935 = vlaneseq
  %v936 = vshrl.u32 %v935, 7
  %v937 = vadd.s32 %v936, 8
  %v938 = vperm.slane %v110, 0
  %v939 = vperm.slane %v110, 1
  %vm940 = vcmp.eq.s32.totalorder %v938, %v936
  %vm941 = vcmp.eq.s32.totalorder %v939, %v936
  %vm942 = vcmp.eq.s32.totalorder %v938, %v937
  %vm943 = vcmp.eq.s32.totalorder %v939, %v937
  %v945 = vperm.slane %v934, 0
  %v946 = vperm.slane %v934, 1
  %v949 = vsel %vm940, %v945, -1e+30
  %v950 = vsel %vm941, %v946, -1e+30
  %v951 = vsel %vm942, %v945, -1e+30
  %v952 = vsel %vm943, %v946, -1e+30
  %v953 = vmax.f32 %v949, %v950
  %954 = vmax.xlane.f32.xlu0 %v953
  %v955 = vpop.xlane.xlu0 %954
  %v956 = vmax.f32 %v951, %v952
  %957 = vmax.xlane.f32.xlu0 %v956
  %v958 = vpop.xlane.xlu0 %957
  %v959 = vld [vmem:[#allocation3] sm:$0xff]
  %v960 = vld [vmem:[#allocation3 + $0x8] sm:$0xff]
  %v961 = vmax.f32 %v959, %v955
  %v962 = vmax.f32 %v960, %v958
  %v963 = vsub.f32 %v959, %v961
  %v964 = vsub.f32 %v960, %v962
  %v965 = vmul.f32 %v963, 1.442695
  %v966 = vpow.pop %v965
  %v967 = vmul.f32 %v964, 1.442695
  %v968 = vpow.pop %v967
  %970 = vset.pattern.permute.xlu0 0
  %971 = vperm.xlu0 %970, %v961
  %v972 = vpop.permute.xlu0 %971
  %975 = vset.pattern.permute.xlu0 0
  %976 = vperm.xlu0 %975, %v962
  %v977 = vpop.permute.xlu0 %976
  %v979 = vsel %vm940, %v972, -1e+30
  %v980 = vsel %vm941, %v972, -1e+30
  %v981 = vsel %vm942, %v977, -1e+30
  %v982 = vsel %vm943, %v977, -1e+30
  %v983 = vmax.f32 %v979, %v981
  %v984 = vrot.slane %v983, 4
  %v985 = vmax.f32 %v983, %v984
  %v986 = vrot.slane %v985, 2
  %v987 = vmax.f32 %v985, %v986
  %v988 = vrot.slane %v987, 1
  %v989 = vmax.f32 %v987, %v988
  %v990 = vmax.f32 %v980, %v982
  %v991 = vrot.slane %v990, 4
  %v992 = vmax.f32 %v990, %v991
  %v993 = vrot.slane %v992, 2
  %v994 = vmax.f32 %v992, %v993
  %v995 = vrot.slane %v994, 1
  %v996 = vmax.f32 %v994, %v995
  %v999 = vrot.slane %v996, 7
  %v1000 = vsel %vm931, %v989, %v999
  %v1002 = vsub.f32 %v934, %v1000
  %v1003 = vmul.f32 %v1002, 1.442695
  %v1004 = vpow.pop %v1003
  %v1006 = vperm.slane %v1004, 0
  %v1007 = vperm.slane %v1004, 1
  %v1010 = vsel %vm940, %v1006, 0.0
  %v1011 = vsel %vm941, %v1007, 0.0
  %v1012 = vsel %vm942, %v1006, 0.0
  %v1013 = vsel %vm943, %v1007, 0.0
  %v1014 = vld [vmem:[#allocation4] sm:$0xff]
  %v1015 = vld [vmem:[#allocation4 + $0x8] sm:$0xff]
  %v1016 = vmul.f32 %v966, %v1014
  %v1017 = vmul.f32 %v968, %v1015
  %v1018 = vadd.f32 %v1010, %v1011
  %1019 = vadd.xlane.f32.xlu0 %v1018
  %v1020 = vpop.xlane.xlu0 %1019
  %v1021 = vadd.f32 %v1012, %v1013
  %1022 = vadd.xlane.f32.xlu0 %v1021
  %v1023 = vpop.xlane.xlu0 %1022
  %v1024 = vadd.f32 %v1016, %v1020
  %v1025 = vadd.f32 %v1017, %v1023
  %vm1026 = vcmask 7168
  %1027 = vst.msk [vmem:[#allocation4] sm:$0xff] %vm1026, %v1024
  %1028 = vst.msk [vmem:[#allocation4 + $0x8] sm:$0xff] %vm1026, %v1025
  %v1029 = vld [vmem:[#allocation2] sm:$0xff]
  %v1030 = vld [vmem:[#allocation2 + $0x8] sm:$0xff]
  %1032 = vset.pattern.permute.xlu0 0
  %1033 = vperm.xlu0 %1032, %v966
  %v1034 = vpop.permute.xlu0 %1033
  %1037 = vset.pattern.permute.xlu0 0
  %1038 = vperm.xlu0 %1037, %v968
  %v1039 = vpop.permute.xlu0 %1038
  %v1041 = vmul.f32 %v1034, %v1029
  %v1042 = vmul.f32 %v1039, %v1030
  %v1043 = vpack.c.bf16 %v1012, %v1010
  %v1044 = vpack.c.bf16 %v1013, %v1011
  %v1045 = vpack.c.bf16 %v797, %v795
  %v1046 = vpack.c.bf16 %v802, %v800
  %v1047 = vpack.c.bf16 %v807, %v805
  %v1048 = vpack.c.bf16 %v812, %v810
  %v1049 = vpack.c.bf16 %v817, %v815
  %v1050 = vpack.c.bf16 %v822, %v820
  %v1051 = vpack.c.bf16 %v827, %v825
  %v1052 = vpack.c.bf16 %v832, %v830
  %v1053 = vpack.c.bf16 %v837, %v835
  %v1054 = vpack.c.bf16 %v842, %v840
  %v1055 = vpack.c.bf16 %v847, %v845
  %v1056 = vpack.c.bf16 %v852, %v850
  %v1057 = vpack.c.bf16 %v857, %v855
  %v1058 = vpack.c.bf16 %v862, %v860
  %v1059 = vpack.c.bf16 %v867, %v865
  %v1060 = vpack.c.bf16 %v872, %v870
  %1061 = vmatpush.bf16.msra.mxu0 %v1052
  %1062 = vmatpush.bf16.msra.mxu0 %v1051
  %1063 = vmatpush.bf16.msra.mxu0 %v1050
  %1064 = vmatpush.bf16.msra.mxu0 %v1049
  %1065 = vmatpush.bf16.msra.mxu0 %v1048
  %1066 = vmatpush.bf16.msra.mxu0 %v1047
  %1067 = vmatpush.bf16.msra.mxu0 %v1046
  %1068 = vmatpush.bf16.msra.mxu0 %v1045
  %1069 = vmatmul.bf16.gmra.mxu0 %v1043
  %v1070 = vpop.f32.mrf.mxu0
  %v1071 = vadd.f32 0.0, %v1070
  %v1072 = vpop.f32.mrf.mxu0
  %v1073 = vadd.f32 0.0, %v1072
  %1074 = vdwg.mxu0
  %1075 = vmatpush.bf16.msra.mxu0 %v1060
  %1076 = vmatpush.bf16.msra.mxu0 %v1059
  %1077 = vmatpush.bf16.msra.mxu0 %v1058
  %1078 = vmatpush.bf16.msra.mxu0 %v1057
  %1079 = vmatpush.bf16.msra.mxu0 %v1056
  %1080 = vmatpush.bf16.msra.mxu0 %v1055
  %1081 = vmatpush.bf16.msra.mxu0 %v1054
  %1082 = vmatpush.bf16.msra.mxu0 %v1053
  %1083 = vmatmul.bf16.gmra.mxu0 %v1044
  %v1084 = vpop.f32.mrf.mxu0
  %v1085 = vadd.f32 %v1071, %v1084
  %v1086 = vpop.f32.mrf.mxu0
  %v1087 = vadd.f32 %v1073, %v1086
  %1088 = vdwg.mxu0
  %v1089 = vadd.f32 %v1041, %v1085
  %v1090 = vadd.f32 %v1042, %v1087
  %1091 = vst [vmem:[#allocation2] sm:$0xff] %v1089
  %1092 = vst [vmem:[#allocation2 + $0x8] sm:$0xff] %v1090
  %1093 = vst.msk [vmem:[#allocation3] sm:$0xff] %vm1026, %v961
  %1094 = vst.msk [vmem:[#allocation3 + $0x8] sm:$0xff] %vm1026, %v962
  // Predicated region
  $region46: #{gnn_forward.4} parent=0 // pred_check
    %p1095 = pneg %p35
  $region47: #{gnn_forward.4} parent=0 // pred_check_branch
    %1097 = sbr.rel (%p1095) target = $region49
  $region48: #{gnn_forward.4} parent=0 // pred_region
    %v1098 = vld [vmem:[#allocation4] sm:$0xff]
    %v1099 = vld [vmem:[#allocation4 + $0x8] sm:$0xff]
    %vm1100 = vcmp.gt.f32.partialorder %v1098, 0.0
    %vm1101 = vcmp.gt.f32.partialorder %v1099, 0.0
    %v1102 = vsel %vm1100, %v1098, 1.0
    %v1103 = vsel %vm1101, %v1099, 1.0
    %v1104 = vld [vmem:[#allocation2] sm:$0xff]
    %v1105 = vld [vmem:[#allocation2 + $0x8] sm:$0xff]
    %1107 = vset.pattern.permute.xlu0 0
    %1108 = vperm.xlu0 %1107, %v1102
    %v1109 = vpop.permute.xlu0 %1108
    %1112 = vset.pattern.permute.xlu0 0
    %1113 = vperm.xlu0 %1112, %v1103
    %v1114 = vpop.permute.xlu0 %1113
    %v1116 = vrcp.pop %v1109
    %v1117 = vmul.f32 %v1109, %v1116
    %v1118 = vsub.f32 1.0, %v1117
    %v1119 = vmul.f32 %v1116, %v1118
    %v1120 = vadd.f32 %v1116, %v1119
    %vm1121 = vweird.f32 %v1109
    %vm1122 = vweird.f32 %v1116
    %vm1123 = vmor %vm1121, %vm1122
    %v1124 = vsel %vm1123, %v1116, %v1120
    %v1125 = vand.u32 2147483647, %v1109
    %vm1126 = vcmp.eq.f32.partialorder %v1125, 8.507059e+37
    %v1127 = vand.u32 %v1109, 2147483648
    %v1128 = vor.u32 1.1754944e-38, %v1127
    %v1129 = vsel %vm1126, %v1128, %v1124
    %v1130 = vmul.f32 %v1104, %v1129
    %v1131 = vrcp.pop %v1114
    %v1132 = vmul.f32 %v1114, %v1131
    %v1133 = vsub.f32 1.0, %v1132
    %v1134 = vmul.f32 %v1131, %v1133
    %v1135 = vadd.f32 %v1131, %v1134
    %vm1136 = vweird.f32 %v1114
    %vm1137 = vweird.f32 %v1131
    %vm1138 = vmor %vm1136, %vm1137
    %v1139 = vsel %vm1138, %v1131, %v1135
    %v1140 = vand.u32 2147483647, %v1114
    %vm1141 = vcmp.eq.f32.partialorder %v1140, 8.507059e+37
    %v1142 = vand.u32 %v1114, 2147483648
    %v1143 = vor.u32 1.1754944e-38, %v1142
    %v1144 = vsel %vm1141, %v1143, %v1139
    %v1145 = vmul.f32 %v1105, %v1144
    %v1146 = vld [vmem:[%s8] sm:$0x1]
    %v1148 = vperm.slane %v1146, 0
    %v1150 = vadd.f32 %v1130, %v1148
    %v1151 = vadd.f32 %v1145, %v1148
    %vm1152 = vcmp.gt.f32.partialorder %v1150, 0.0
    %vm1153 = vcmp.gt.f32.partialorder %v1151, 0.0
    %v1154 = vmin.f32 %v1150, 0.0
    %v1155 = vmin.f32 %v1151, 0.0
    %v1156 = vmul.f32 %v1154, 1.442695
    %v1157 = vpow.pop %v1156
    %v1158 = vmul.f32 %v1155, 1.442695
    %v1159 = vpow.pop %v1158
    %v1160 = vsub.f32 %v1157, 1.0
    %v1161 = vsub.f32 %v1159, 1.0
    %v1162 = vsel %vm1152, %v1150, %v1160
    %v1163 = vsel %vm1153, %v1151, %v1161
    %v1164 = vld [vmem:[%s9] sm:$0xff]
    %v1165 = vld [vmem:[%s9 + $0x8] sm:$0xff]
    %v1166 = vadd.f32 %v1164, %v1162
    %v1167 = vadd.f32 %v1165, %v1163
    %v1168 = vmax.f32 %v1166, 0.0
    %v1169 = vmax.f32 %v1167, 0.0
    %vm1170 = vcmp.lt.s32.totalorder %v936, 12
    %vm1171 = vcmp.lt.s32.totalorder %v937, 12
    %v1172 = vsel %vm1170, %v1168, 0.0
    %v1173 = vsel %vm1171, %v1169, 0.0
    %1174 = vst [vmem:[%s10] sm:$0xff] %v1172
    %1175 = vst [vmem:[%s10 + $0x8] sm:$0xff] %v1173
  $region49: #{gnn_forward.4} parent=0 // pred_fallthru
    _
  // Predicated region
  $region50: #{gnn_forward.4} parent=0 // pred_check
    _
  $region51: #{gnn_forward.4} parent=0 // pred_check_branch
    %1177 = sbr.rel (0) target = $region53
  $region52: #{gnn_forward.4} parent=0 // pred_region
    _
  $region53: #{gnn_forward.4} parent=0 // pred_fallthru
    _
  // Predicated region
  $region54: #{gnn_forward.4} parent=0 // pred_check
    _
  $region55: #{gnn_forward.4} parent=0 // pred_check_branch
    %1179 = sbr.rel (0) target = $region57
  $region56: #{gnn_forward.4} parent=0 // pred_region
    _
  $region57: #{gnn_forward.4} parent=0 // pred_fallthru
    _

// kernel: gnn_forward.5
$region0: #{gnn_forward.5}
  #allocation0 [shape = 'u32[]', space=smem, size = 0x4, offset = 0x4, fixed_abs, tag = 'smem constant byte address 0x4 - core index']
  #allocation1 [shape = 'u32[72,128]{1,0:T(1,128)}', space=vmem, size = 0x9000, scoped, tag = 'internal scratch']
  %s0 = inlined_call_operand.vmem [shape: f32[16,128], index: 0, kind: input, shape index: {}]
  %s1 = inlined_call_operand.vmem [shape: s32[1,16], index: 1, kind: input, shape index: {}]
  %s2 = inlined_call_operand.vmem [shape: bf16[128,128], index: 2, kind: input, shape index: {}]
  %s3 = inlined_call_operand.vmem [shape: f32[1,128], index: 3, kind: input, shape index: {}]
  %s4 = inlined_call_operand.vmem [shape: f32[1,128], index: 4, kind: input, shape index: {}]
  %s5 = inlined_call_operand.vmem [shape: f32[1,128], index: 5, kind: input, shape index: {}]
  %s6 = inlined_call_operand.vmem [shape: bf16[128,384], index: 6, kind: input, shape index: {}]
  %s7 = inlined_call_operand.vmem [shape: bf16[128,384], index: 7, kind: input, shape index: {}]
  %s8 = inlined_call_operand.vmem [shape: f32[1,384], index: 8, kind: input, shape index: {}]
  %s9 = inlined_call_operand.vmem [shape: f32[1,384], index: 9, kind: input, shape index: {}]
  %s10 = inlined_call_operand.vmem [shape: bf16[128,128], index: 10, kind: input, shape index: {}]
  %s11 = inlined_call_operand.vmem [shape: f32[1,128], index: 11, kind: input, shape index: {}]
  %s12 = inlined_call_operand.vmem [shape: f32[8,128], index: 12, kind: output, shape index: {0}]
  %s13 = inlined_call_operand.vmem [shape: f32[8,128], index: 13, kind: output, shape index: {1}]
  %14 = xla_tuple %s12, %s13
  %s15 = sld [smem:[#allocation0]]
  $region66: #{gnn_forward.5} parent=0
    _
  %s17 = ssub.s32 1, %s15
  %s18 = scalar_select 0, %s17, %s15
  // Predicated region
  $region2: #{gnn_forward.5} parent=0 // pred_check
    _
  $region3: #{gnn_forward.5} parent=0 // pred_check_branch
    %20 = sbr.rel (0) target = $region5
  $region4: #{gnn_forward.5} parent=0 // pred_region
    _
  $region5: #{gnn_forward.5} parent=0 // pred_fallthru
    _
  // Predicated region
  $region6: #{gnn_forward.5} parent=0 // pred_check
    _
  $region7: #{gnn_forward.5} parent=0 // pred_check_branch
    %22 = sbr.rel (0) target = $region9
  $region8: #{gnn_forward.5} parent=0 // pred_region
    _
  $region9: #{gnn_forward.5} parent=0 // pred_fallthru
    _
  // Predicated region
  $region10: #{gnn_forward.5} parent=0 // pred_check
    _
  $region11: #{gnn_forward.5} parent=0 // pred_check_branch
    %24 = sbr.rel (0) target = $region13
  $region12: #{gnn_forward.5} parent=0 // pred_region
    _
  $region13: #{gnn_forward.5} parent=0 // pred_fallthru
    _
  // Predicated region
  $region14: #{gnn_forward.5} parent=0 // pred_check
    _
  $region15: #{gnn_forward.5} parent=0 // pred_check_branch
    %26 = sbr.rel (0) target = $region17
  $region16: #{gnn_forward.5} parent=0 // pred_region
    _
  $region17: #{gnn_forward.5} parent=0 // pred_fallthru
    _
  // Predicated region
  $region18: #{gnn_forward.5} parent=0 // pred_check
    _
  $region19: #{gnn_forward.5} parent=0 // pred_check_branch
    %28 = sbr.rel (0) target = $region21
  $region20: #{gnn_forward.5} parent=0 // pred_region
    _
  $region21: #{gnn_forward.5} parent=0 // pred_fallthru
    _
  // Predicated region
  $region22: #{gnn_forward.5} parent=0 // pred_check
    _
  $region23: #{gnn_forward.5} parent=0 // pred_check_branch
    %30 = sbr.rel (0) target = $region25
  $region24: #{gnn_forward.5} parent=0 // pred_region
    _
  $region25: #{gnn_forward.5} parent=0 // pred_fallthru
    _
  // Predicated region
  $region26: #{gnn_forward.5} parent=0 // pred_check
    _
  $region27: #{gnn_forward.5} parent=0 // pred_check_branch
    %32 = sbr.rel (0) target = $region29
  $region28: #{gnn_forward.5} parent=0 // pred_region
    _
  $region29: #{gnn_forward.5} parent=0 // pred_fallthru
    _
  // Predicated region
  $region30: #{gnn_forward.5} parent=0 // pred_check
    _
  $region31: #{gnn_forward.5} parent=0 // pred_check_branch
    %34 = sbr.rel (0) target = $region33
  $region32: #{gnn_forward.5} parent=0 // pred_region
    _
  $region33: #{gnn_forward.5} parent=0 // pred_fallthru
    _
  // Predicated region
  $region34: #{gnn_forward.5} parent=0 // pred_check
    _
  $region35: #{gnn_forward.5} parent=0 // pred_check_branch
    %36 = sbr.rel (0) target = $region37
  $region36: #{gnn_forward.5} parent=0 // pred_region
    _
  $region37: #{gnn_forward.5} parent=0 // pred_fallthru
    _
  // Predicated region
  $region38: #{gnn_forward.5} parent=0 // pred_check
    _
  $region39: #{gnn_forward.5} parent=0 // pred_check_branch
    %38 = sbr.rel (0) target = $region41
  $region40: #{gnn_forward.5} parent=0 // pred_region
    _
  $region41: #{gnn_forward.5} parent=0 // pred_fallthru
    _
  // Predicated region
  $region42: #{gnn_forward.5} parent=0 // pred_check
    _
  $region43: #{gnn_forward.5} parent=0 // pred_check_branch
    %40 = sbr.rel (0) target = $region45
  $region44: #{gnn_forward.5} parent=0 // pred_region
    _
  $region45: #{gnn_forward.5} parent=0 // pred_fallthru
    _
  // Predicated region
  $region46: #{gnn_forward.5} parent=0 // pred_check
    _
  $region47: #{gnn_forward.5} parent=0 // pred_check_branch
    %42 = sbr.rel (0) target = $region49
  $region48: #{gnn_forward.5} parent=0 // pred_region
    _
  $region49: #{gnn_forward.5} parent=0 // pred_fallthru
    _
  %v44 = vld [vmem:[%s0] sm:$0xff]
  %v45 = vld [vmem:[%s0 + $0x8] sm:$0xff]
  %v46 = vld [vmem:[%s2] sm:$0xf]
  %v47 = vld [vmem:[%s2 + $0x4] sm:$0xf]
  %v48 = vld [vmem:[%s2 + $0x8] sm:$0xf]
  %v49 = vld [vmem:[%s2 + $0xc] sm:$0xf]
  %v50 = vld [vmem:[%s2 + $0x10] sm:$0xf]
  %v51 = vld [vmem:[%s2 + $0x14] sm:$0xf]
  %v52 = vld [vmem:[%s2 + $0x18] sm:$0xf]
  %v53 = vld [vmem:[%s2 + $0x1c] sm:$0xf]
  %v54 = vld [vmem:[%s2 + $0x20] sm:$0xf]
  %v55 = vld [vmem:[%s2 + $0x24] sm:$0xf]
  %v56 = vld [vmem:[%s2 + $0x28] sm:$0xf]
  %v57 = vld [vmem:[%s2 + $0x2c] sm:$0xf]
  %v58 = vld [vmem:[%s2 + $0x30] sm:$0xf]
  %v59 = vld [vmem:[%s2 + $0x34] sm:$0xf]
  %v60 = vld [vmem:[%s2 + $0x38] sm:$0xf]
  %v61 = vld [vmem:[%s2 + $0x3c] sm:$0xf]
  %v62 = vld [vmem:[%s4] sm:$0x1]
  %v63 = vld [vmem:[%s5] sm:$0x1]
  %v64 = vld [vmem:[%s6] sm:$0xff]
  %v65 = vld [vmem:[%s6 + $0x8] sm:$0xf]
  %v66 = vld [vmem:[%s6 + $0xc] sm:$0xff]
  %v67 = vld [vmem:[%s6 + $0x14] sm:$0xf]
  %v68 = vld [vmem:[%s6 + $0x18] sm:$0xff]
  %v69 = vld [vmem:[%s6 + $0x20] sm:$0xf]
  %v70 = vld [vmem:[%s6 + $0x24] sm:$0xff]
  %v71 = vld [vmem:[%s6 + $0x2c] sm:$0xf]
  %v72 = vld [vmem:[%s6 + $0x30] sm:$0xff]
  %v73 = vld [vmem:[%s6 + $0x38] sm:$0xf]
  %v74 = vld [vmem:[%s6 + $0x3c] sm:$0xff]
  %v75 = vld [vmem:[%s6 + $0x44] sm:$0xf]
  %v76 = vld [vmem:[%s6 + $0x48] sm:$0xff]
  %v77 = vld [vmem:[%s6 + $0x50] sm:$0xf]
  %v78 = vld [vmem:[%s6 + $0x54] sm:$0xff]
  %v79 = vld [vmem:[%s6 + $0x5c] sm:$0xf]
  %v80 = vld [vmem:[%s6 + $0x60] sm:$0xff]
  %v81 = vld [vmem:[%s6 + $0x68] sm:$0xf]
  %v82 = vld [vmem:[%s6 + $0x6c] sm:$0xff]
  %v83 = vld [vmem:[%s6 + $0x74] sm:$0xf]
  %v84 = vld [vmem:[%s6 + $0x78] sm:$0xff]
  %v85 = vld [vmem:[%s6 + $0x80] sm:$0xf]
  %v86 = vld [vmem:[%s6 + $0x84] sm:$0xff]
  %v87 = vld [vmem:[%s6 + $0x8c] sm:$0xf]
  %v88 = vld [vmem:[%s6 + $0x90] sm:$0xff]
  %v89 = vld [vmem:[%s6 + $0x98] sm:$0xf]
  %v90 = vld [vmem:[%s6 + $0x9c] sm:$0xff]
  %v91 = vld [vmem:[%s6 + $0xa4] sm:$0xf]
  %v92 = vld [vmem:[%s6 + $0xa8] sm:$0xff]
  %v93 = vld [vmem:[%s6 + $0xb0] sm:$0xf]
  %v94 = vld [vmem:[%s6 + $0xb4] sm:$0xff]
  %v95 = vld [vmem:[%s6 + $0xbc] sm:$0xf]
  %v96 = vld [vmem:[%s7] sm:$0xff]
  %v97 = vld [vmem:[%s7 + $0x8] sm:$0xf]
  %v98 = vld [vmem:[%s7 + $0xc] sm:$0xff]
  %v99 = vld [vmem:[%s7 + $0x14] sm:$0xf]
  %v100 = vld [vmem:[%s7 + $0x18] sm:$0xff]
  %v101 = vld [vmem:[%s7 + $0x20] sm:$0xf]
  %v102 = vld [vmem:[%s7 + $0x24] sm:$0xff]
  %v103 = vld [vmem:[%s7 + $0x2c] sm:$0xf]
  %v104 = vld [vmem:[%s7 + $0x30] sm:$0xff]
  %v105 = vld [vmem:[%s7 + $0x38] sm:$0xf]
  %v106 = vld [vmem:[%s7 + $0x3c] sm:$0xff]
  %v107 = vld [vmem:[%s7 + $0x44] sm:$0xf]
  %v108 = vld [vmem:[%s7 + $0x48] sm:$0xff]
  %v109 = vld [vmem:[%s7 + $0x50] sm:$0xf]
  %v110 = vld [vmem:[%s7 + $0x54] sm:$0xff]
  %v111 = vld [vmem:[%s7 + $0x5c] sm:$0xf]
  %v112 = vld [vmem:[%s7 + $0x60] sm:$0xff]
  %v113 = vld [vmem:[%s7 + $0x68] sm:$0xf]
  %v114 = vld [vmem:[%s7 + $0x6c] sm:$0xff]
  %v115 = vld [vmem:[%s7 + $0x74] sm:$0xf]
  %v116 = vld [vmem:[%s7 + $0x78] sm:$0xff]
  %v117 = vld [vmem:[%s7 + $0x80] sm:$0xf]
  %v118 = vld [vmem:[%s7 + $0x84] sm:$0xff]
  %v119 = vld [vmem:[%s7 + $0x8c] sm:$0xf]
  %v120 = vld [vmem:[%s7 + $0x90] sm:$0xff]
  %v121 = vld [vmem:[%s7 + $0x98] sm:$0xf]
  %v122 = vld [vmem:[%s7 + $0x9c] sm:$0xff]
  %v123 = vld [vmem:[%s7 + $0xa4] sm:$0xf]
  %v124 = vld [vmem:[%s7 + $0xa8] sm:$0xff]
  %v125 = vld [vmem:[%s7 + $0xb0] sm:$0xf]
  %v126 = vld [vmem:[%s7 + $0xb4] sm:$0xff]
  %v127 = vld [vmem:[%s7 + $0xbc] sm:$0xf]
  %v128 = vld [vmem:[%s8] sm:$0x7]
  %v129 = vld [vmem:[%s9] sm:$0x7]
  %v130 = vlaneseq
  %v131 = vshrl.u32 %v130, 7
  %v132 = vld [vmem:[%s1] sm:$0x1]
  %v133 = vperm.slane %v132, 0
  %vm134 = vcmp.eq.s32.totalorder %v133, %v131
  %v135 = vsel %vm134, 1, 0
  %v136 = vcvt.s32.f32 %v135
  %vm137 = vcmp.ge.s32.totalorder %v132, 0
  %v138 = vpack.c.bf16 %v136, %v136
  %v139 = vpack.c.bf16 %v45, %v44
  %vm140 = vcmask 130048
  %v142 = vsel %vm140, %v138, 0
  %144 = vmatpush.bf16.msra.mxu0 0
  %145 = vmatpush.bf16.msra.mxu0 0
  %146 = vmatpush.bf16.msra.mxu0 0
  %147 = vmatpush.bf16.msra.mxu0 0
  %148 = vmatpush.bf16.msra.mxu0 0
  %149 = vmatpush.bf16.msra.mxu0 0
  %150 = vmatpush.bf16.msra.mxu0 0
  %151 = vmatpush.bf16.msra.mxu0 %v139
  %152 = vmatmul.bf16.gmra.mxu0 %v142
  %v153 = vpop.f32.mrf.mxu0
  %v154 = vadd.f32 0.0, %v153
  %v155 = vpop.f32.mrf.mxu0
  %156 = vdwg.mxu0
  %v157 = vmax.f32 %v154, 0.0
  %v174 = vunpack.c.l.b16 %v46
  %v175 = vunpack.c.l.b16 %v47
  %v176 = vunpack.c.l.b16 %v48
  %v177 = vunpack.c.l.b16 %v49
  %v178 = vunpack.c.l.b16 %v50
  %v179 = vunpack.c.l.b16 %v51
  %v180 = vunpack.c.l.b16 %v52
  %v181 = vunpack.c.l.b16 %v53
  %v182 = vunpack.c.l.b16 %v54
  %v183 = vunpack.c.l.b16 %v55
  %v184 = vunpack.c.l.b16 %v56
  %v185 = vunpack.c.l.b16 %v57
  %v186 = vunpack.c.l.b16 %v58
  %v187 = vunpack.c.l.b16 %v59
  %v188 = vunpack.c.l.b16 %v60
  %v189 = vunpack.c.l.b16 %v61
  %v190 = vpack.c.b16 %v175, %v174
  %v191 = vpack.c.b16 %v177, %v176
  %v192 = vpack.c.b16 %v179, %v178
  %v193 = vpack.c.b16 %v181, %v180
  %v194 = vpack.c.b16 %v183, %v182
  %v195 = vpack.c.b16 %v185, %v184
  %v196 = vpack.c.b16 %v187, %v186
  %v197 = vpack.c.b16 %v189, %v188
  %206 = vmatpush.bf16.msra.mxu0 %v197
  %207 = vmatpush.bf16.msra.mxu0 %v196
  %208 = vmatpush.bf16.msra.mxu0 %v195
  %209 = vmatpush.bf16.msra.mxu0 %v194
  %210 = vmatpush.bf16.msra.mxu0 %v193
  %211 = vmatpush.bf16.msra.mxu0 %v192
  %212 = vmatpush.bf16.msra.mxu0 %v191
  %213 = vmatpush.bf16.msra.mxu0 %v190
  %214 = vmatmul.bf16.gmra.mxu0 %v139
  %v215 = vpop.f32.mrf.mxu0
  %v216 = vadd.f32 0.0, %v215
  %v217 = vpop.f32.mrf.mxu0
  %v218 = vadd.f32 0.0, %v217
  %219 = vdwg.mxu0
  %v220 = vld [vmem:[%s3] sm:$0x1]
  %221 = vmatpush.xpose.msra.mxu0 0.0
  %222 = vmatpush.xpose.msra.mxu0 0.0
  %223 = vmatpush.xpose.msra.mxu0 0.0
  %224 = vmatpush.xpose.msra.mxu0 0.0
  %225 = vmatpush.xpose.msra.mxu0 0.0
  %226 = vmatpush.xpose.msra.mxu0 0.0
  %227 = vmatpush.xpose.msra.mxu0 0.0
  %228 = vmatpush.xpose.msra.mxu0 0.0
  %229 = vmatpush.xpose.msra.mxu0 0.0
  %230 = vmatpush.xpose.msra.mxu0 0.0
  %231 = vmatpush.xpose.msra.mxu0 0.0
  %232 = vmatpush.xpose.msra.mxu0 0.0
  %233 = vmatpush.xpose.msra.mxu0 0.0
  %234 = vmatpush.xpose.msra.mxu0 0.0
  %235 = vmatpush.xpose.msra.mxu0 %v218
  %236 = vmatpush.xpose.msra.mxu0 %v216
  %237 = vmatmul.f32.gmra.mxu0 %v220
  %v238 = vpop.f32.mrf.mxu0
  %v239 = vadd.f32 0.0, %v238
  %240 = vdwg.mxu0
  %v241 = vpack.c.bf16 %v218, %v216
  %v242 = vpack.c.bf16 %v157, %v157
  %243 = vmatpush.bf16.msra.mxu0 %v197
  %244 = vmatpush.bf16.msra.mxu0 %v196
  %245 = vmatpush.bf16.msra.mxu0 %v195
  %246 = vmatpush.bf16.msra.mxu0 %v194
  %247 = vmatpush.bf16.msra.mxu0 %v193
  %248 = vmatpush.bf16.msra.mxu0 %v192
  %249 = vmatpush.bf16.msra.mxu0 %v191
  %250 = vmatpush.bf16.msra.mxu0 %v190
  %251 = vmatmul.bf16.gmra.mxu0 %v242
  %v252 = vpop.f32.mrf.mxu0
  %v253 = vadd.f32 0.0, %v252
  %v254 = vpop.f32.mrf.mxu0
  %255 = vdwg.mxu0
  %v257 = vperm.slane %v62, 0
  %v259 = vmul.f32 %v253, %v257
  %260 = vadd.xlane.f32.xlu0 %v259
  %v261 = vpop.xlane.xlu0 %260
  %v262 = vmul.f32 %v136, %v261
  %v263 = vsel %vm140, %v262, 0.0
  %v264 = vrot.slane %v263, 4
  %v265 = vadd.f32 %v263, %v264
  %v266 = vrot.slane %v265, 2
  %v267 = vadd.f32 %v265, %v266
  %v268 = vrot.slane %v267, 1
  %v269 = vadd.f32 %v267, %v268
  %v270 = vadd.f32 %v239, %v269
  %vm271 = vcmp.gt.f32.partialorder %v270, 0.0
  %v272 = vmul.f32 %v270, 0.01
  %v273 = vsel %vm271, %v270, %v272
  %v274 = vsel %vm137, %v273, -1e+30
  %v276 = vperm.slane %v274, 0
  %v278 = vsel %vm134, %v276, -1e+30
  %v279 = vsel %vm140, %v278, -inf
  %280 = vmax.xlane.f32.xlu0 %v279
  %v281 = vpop.xlane.xlu0 %280
  %v282 = vsel %vm134, %v281, -1e+30
  %v283 = vsel %vm140, %v282, -inf
  %v284 = vrot.slane %v283, 4
  %v285 = vmax.f32 %v283, %v284
  %v286 = vrot.slane %v285, 2
  %v287 = vmax.f32 %v285, %v286
  %v288 = vrot.slane %v287, 1
  %v289 = vmax.f32 %v287, %v288
  %v290 = vsub.f32 %v274, %v289
  %v291 = vmul.f32 %v290, 1.442695
  %v292 = vpow.pop %v291
  %v294 = vperm.slane %v292, 0
  %v296 = vsel %vm134, %v294, 0.0
  %v297 = vsel %vm140, %v296, 0.0
  %298 = vadd.xlane.f32.xlu0 %v297
  %v299 = vpop.xlane.xlu0 %298
  %vm300 = vcmp.gt.f32.partialorder %v299, 0.0
  %v301 = vsel %vm300, %v299, 1.0
  %v302 = vpack.c.bf16 %v296, %v296
  %v304 = vsel %vm140, %v302, 0
  %306 = vmatpush.bf16.msra.mxu0 0
  %307 = vmatpush.bf16.msra.mxu0 0
  %308 = vmatpush.bf16.msra.mxu0 0
  %309 = vmatpush.bf16.msra.mxu0 0
  %310 = vmatpush.bf16.msra.mxu0 0
  %311 = vmatpush.bf16.msra.mxu0 0
  %312 = vmatpush.bf16.msra.mxu0 0
  %313 = vmatpush.bf16.msra.mxu0 %v241
  %314 = vmatmul.bf16.gmra.mxu0 %v304
  %v315 = vpop.f32.mrf.mxu0
  %v316 = vadd.f32 0.0, %v315
  %v317 = vpop.f32.mrf.mxu0
  %318 = vdwg.mxu0
  %v319 = vrcp.pop %v301
  %v320 = vmul.f32 %v301, %v319
  %v321 = vsub.f32 1.0, %v320
  %v322 = vmul.f32 %v319, %v321
  %v323 = vadd.f32 %v319, %v322
  %vm324 = vweird.f32 %v301
  %vm325 = vweird.f32 %v319
  %vm326 = vmor %vm324, %vm325
  %v327 = vsel %vm326, %v319, %v323
  %v328 = vand.u32 2147483647, %v301
  %vm329 = vcmp.eq.f32.partialorder %v328, 8.507059e+37
  %v330 = vand.u32 %v301, 2147483648
  %v331 = vor.u32 1.1754944e-38, %v330
  %v332 = vsel %vm329, %v331, %v327
  %v333 = vmul.f32 %v316, %v332
  %v335 = vperm.slane %v63, 0
  %v337 = vadd.f32 %v333, %v335
  %vm338 = vcmp.gt.f32.partialorder %v337, 0.0
  %v339 = vmin.f32 %v337, 0.0
  %v340 = vmul.f32 %v339, 1.442695
  %v341 = vpow.pop %v340
  %v342 = vsub.f32 %v341, 1.0
  %v343 = vsel %vm338, %v337, %v342
  %v344 = vpack.c.bf16 %v343, %v343
  %v346 = vperm.slane %v128, 0
  %v347 = vperm.slane %v128, 1
  %v348 = vperm.slane %v128, 2
  %v384 = vunpack.c.l.b16 %v64
  %v385 = vunpack.c.h.b16 %v64
  %v386 = vunpack.c.l.b16 %v65
  %v387 = vunpack.c.l.b16 %v66
  %v388 = vunpack.c.h.b16 %v66
  %v389 = vunpack.c.l.b16 %v67
  %v390 = vunpack.c.l.b16 %v68
  %v391 = vunpack.c.h.b16 %v68
  %v392 = vunpack.c.l.b16 %v69
  %v393 = vunpack.c.l.b16 %v70
  %v394 = vunpack.c.h.b16 %v70
  %v395 = vunpack.c.l.b16 %v71
  %v396 = vunpack.c.l.b16 %v72
  %v397 = vunpack.c.h.b16 %v72
  %v398 = vunpack.c.l.b16 %v73
  %v399 = vunpack.c.l.b16 %v74
  %v400 = vunpack.c.h.b16 %v74
  %v401 = vunpack.c.l.b16 %v75
  %v402 = vunpack.c.l.b16 %v76
  %v403 = vunpack.c.h.b16 %v76
  %v404 = vunpack.c.l.b16 %v77
  %v405 = vunpack.c.l.b16 %v78
  %v406 = vunpack.c.h.b16 %v78
  %v407 = vunpack.c.l.b16 %v79
  %v408 = vunpack.c.l.b16 %v80
  %v409 = vunpack.c.h.b16 %v80
  %v410 = vunpack.c.l.b16 %v81
  %v411 = vunpack.c.l.b16 %v82
  %v412 = vunpack.c.h.b16 %v82
  %v413 = vunpack.c.l.b16 %v83
  %v414 = vunpack.c.l.b16 %v84
  %v415 = vunpack.c.h.b16 %v84
  %v416 = vunpack.c.l.b16 %v85
  %v417 = vunpack.c.l.b16 %v86
  %v418 = vunpack.c.h.b16 %v86
  %v419 = vunpack.c.l.b16 %v87
  %v420 = vunpack.c.l.b16 %v88
  %v421 = vunpack.c.h.b16 %v88
  %v422 = vunpack.c.l.b16 %v89
  %v423 = vunpack.c.l.b16 %v90
  %v424 = vunpack.c.h.b16 %v90
  %v425 = vunpack.c.l.b16 %v91
  %v426 = vunpack.c.l.b16 %v92
  %v427 = vunpack.c.h.b16 %v92
  %v428 = vunpack.c.l.b16 %v93
  %v429 = vunpack.c.l.b16 %v94
  %v430 = vunpack.c.h.b16 %v94
  %v431 = vunpack.c.l.b16 %v95
  %v432 = vpack.c.b16 %v387, %v384
  %v433 = vpack.c.b16 %v388, %v385
  %v434 = vpack.c.b16 %v389, %v386
  %v435 = vpack.c.b16 %v393, %v390
  %v436 = vpack.c.b16 %v394, %v391
  %v437 = vpack.c.b16 %v395, %v392
  %v438 = vpack.c.b16 %v399, %v396
  %v439 = vpack.c.b16 %v400, %v397
  %v440 = vpack.c.b16 %v401, %v398
  %v441 = vpack.c.b16 %v405, %v402
  %v442 = vpack.c.b16 %v406, %v403
  %v443 = vpack.c.b16 %v407, %v404
  %v444 = vpack.c.b16 %v411, %v408
  %v445 = vpack.c.b16 %v412, %v409
  %v446 = vpack.c.b16 %v413, %v410
  %v447 = vpack.c.b16 %v417, %v414
  %v448 = vpack.c.b16 %v418, %v415
  %v449 = vpack.c.b16 %v419, %v416
  %v450 = vpack.c.b16 %v423, %v420
  %v451 = vpack.c.b16 %v424, %v421
  %v452 = vpack.c.b16 %v425, %v422
  %v453 = vpack.c.b16 %v429, %v426
  %v454 = vpack.c.b16 %v430, %v427
  %v455 = vpack.c.b16 %v431, %v428
  %480 = vmatpush.bf16.msra.mxu0 %v453
  %481 = vmatpush.bf16.msra.mxu0 %v450
  %482 = vmatpush.bf16.msra.mxu0 %v447
  %483 = vmatpush.bf16.msra.mxu0 %v444
  %484 = vmatpush.bf16.msra.mxu0 %v441
  %485 = vmatpush.bf16.msra.mxu0 %v438
  %486 = vmatpush.bf16.msra.mxu0 %v435
  %487 = vmatpush.bf16.msra.mxu0 %v432
  %488 = vmatmul.bf16.gmra.mxu0 %v344
  %v489 = vpop.f32.mrf.mxu0
  %v490 = vadd.f32 %v346, %v489
  %v491 = vpop.f32.mrf.mxu0
  %492 = vdwg.mxu0
  %493 = vmatpush.bf16.msra.mxu0 %v454
  %494 = vmatpush.bf16.msra.mxu0 %v451
  %495 = vmatpush.bf16.msra.mxu0 %v448
  %496 = vmatpush.bf16.msra.mxu0 %v445
  %497 = vmatpush.bf16.msra.mxu0 %v442
  %498 = vmatpush.bf16.msra.mxu0 %v439
  %499 = vmatpush.bf16.msra.mxu0 %v436
  %500 = vmatpush.bf16.msra.mxu0 %v433
  %501 = vmatmul.bf16.gmra.mxu0 %v344
  %v502 = vpop.f32.mrf.mxu0
  %v503 = vadd.f32 %v347, %v502
  %v504 = vpop.f32.mrf.mxu0
  %505 = vdwg.mxu0
  %506 = vmatpush.bf16.msra.mxu0 %v455
  %507 = vmatpush.bf16.msra.mxu0 %v452
  %508 = vmatpush.bf16.msra.mxu0 %v449
  %509 = vmatpush.bf16.msra.mxu0 %v446
  %510 = vmatpush.bf16.msra.mxu0 %v443
  %511 = vmatpush.bf16.msra.mxu0 %v440
  %512 = vmatpush.bf16.msra.mxu0 %v437
  %513 = vmatpush.bf16.msra.mxu0 %v434
  %514 = vmatmul.bf16.gmra.mxu0 %v344
  %v515 = vpop.f32.mrf.mxu0
  %v516 = vadd.f32 %v348, %v515
  %v517 = vpop.f32.mrf.mxu0
  %518 = vdwg.mxu0
  %v520 = vperm.slane %v129, 0
  %v521 = vperm.slane %v129, 1
  %v522 = vperm.slane %v129, 2
  %v558 = vunpack.c.l.b16 %v96
  %v559 = vunpack.c.h.b16 %v96
  %v560 = vunpack.c.l.b16 %v97
  %v561 = vunpack.c.l.b16 %v98
  %v562 = vunpack.c.h.b16 %v98
  %v563 = vunpack.c.l.b16 %v99
  %v564 = vunpack.c.l.b16 %v100
  %v565 = vunpack.c.h.b16 %v100
  %v566 = vunpack.c.l.b16 %v101
  %v567 = vunpack.c.l.b16 %v102
  %v568 = vunpack.c.h.b16 %v102
  %v569 = vunpack.c.l.b16 %v103
  %v570 = vunpack.c.l.b16 %v104
  %v571 = vunpack.c.h.b16 %v104
  %v572 = vunpack.c.l.b16 %v105
  %v573 = vunpack.c.l.b16 %v106
  %v574 = vunpack.c.h.b16 %v106
  %v575 = vunpack.c.l.b16 %v107
  %v576 = vunpack.c.l.b16 %v108
  %v577 = vunpack.c.h.b16 %v108
  %v578 = vunpack.c.l.b16 %v109
  %v579 = vunpack.c.l.b16 %v110
  %v580 = vunpack.c.h.b16 %v110
  %v581 = vunpack.c.l.b16 %v111
  %v582 = vunpack.c.l.b16 %v112
  %v583 = vunpack.c.h.b16 %v112
  %v584 = vunpack.c.l.b16 %v113
  %v585 = vunpack.c.l.b16 %v114
  %v586 = vunpack.c.h.b16 %v114
  %v587 = vunpack.c.l.b16 %v115
  %v588 = vunpack.c.l.b16 %v116
  %v589 = vunpack.c.h.b16 %v116
  %v590 = vunpack.c.l.b16 %v117
  %v591 = vunpack.c.l.b16 %v118
  %v592 = vunpack.c.h.b16 %v118
  %v593 = vunpack.c.l.b16 %v119
  %v594 = vunpack.c.l.b16 %v120
  %v595 = vunpack.c.h.b16 %v120
  %v596 = vunpack.c.l.b16 %v121
  %v597 = vunpack.c.l.b16 %v122
  %v598 = vunpack.c.h.b16 %v122
  %v599 = vunpack.c.l.b16 %v123
  %v600 = vunpack.c.l.b16 %v124
  %v601 = vunpack.c.h.b16 %v124
  %v602 = vunpack.c.l.b16 %v125
  %v603 = vunpack.c.l.b16 %v126
  %v604 = vunpack.c.h.b16 %v126
  %v605 = vunpack.c.l.b16 %v127
  %v606 = vpack.c.b16 %v561, %v558
  %v607 = vpack.c.b16 %v562, %v559
  %v608 = vpack.c.b16 %v563, %v560
  %v609 = vpack.c.b16 %v567, %v564
  %v610 = vpack.c.b16 %v568, %v565
  %v611 = vpack.c.b16 %v569, %v566
  %v612 = vpack.c.b16 %v573, %v570
  %v613 = vpack.c.b16 %v574, %v571
  %v614 = vpack.c.b16 %v575, %v572
  %v615 = vpack.c.b16 %v579, %v576
  %v616 = vpack.c.b16 %v580, %v577
  %v617 = vpack.c.b16 %v581, %v578
  %v618 = vpack.c.b16 %v585, %v582
  %v619 = vpack.c.b16 %v586, %v583
  %v620 = vpack.c.b16 %v587, %v584
  %v621 = vpack.c.b16 %v591, %v588
  %v622 = vpack.c.b16 %v592, %v589
  %v623 = vpack.c.b16 %v593, %v590
  %v624 = vpack.c.b16 %v597, %v594
  %v625 = vpack.c.b16 %v598, %v595
  %v626 = vpack.c.b16 %v599, %v596
  %v627 = vpack.c.b16 %v603, %v600
  %v628 = vpack.c.b16 %v604, %v601
  %v629 = vpack.c.b16 %v605, %v602
  %654 = vmatpush.bf16.msra.mxu0 %v627
  %655 = vmatpush.bf16.msra.mxu0 %v624
  %656 = vmatpush.bf16.msra.mxu0 %v621
  %657 = vmatpush.bf16.msra.mxu0 %v618
  %658 = vmatpush.bf16.msra.mxu0 %v615
  %659 = vmatpush.bf16.msra.mxu0 %v612
  %660 = vmatpush.bf16.msra.mxu0 %v609
  %661 = vmatpush.bf16.msra.mxu0 %v606
  %662 = vmatmul.bf16.gmra.mxu0 %v242
  %v663 = vpop.f32.mrf.mxu0
  %v664 = vadd.f32 %v520, %v663
  %v665 = vpop.f32.mrf.mxu0
  %666 = vdwg.mxu0
  %667 = vmatpush.bf16.msra.mxu0 %v628
  %668 = vmatpush.bf16.msra.mxu0 %v625
  %669 = vmatpush.bf16.msra.mxu0 %v622
  %670 = vmatpush.bf16.msra.mxu0 %v619
  %671 = vmatpush.bf16.msra.mxu0 %v616
  %672 = vmatpush.bf16.msra.mxu0 %v613
  %673 = vmatpush.bf16.msra.mxu0 %v610
  %674 = vmatpush.bf16.msra.mxu0 %v607
  %675 = vmatmul.bf16.gmra.mxu0 %v242
  %v676 = vpop.f32.mrf.mxu0
  %v677 = vadd.f32 %v521, %v676
  %v678 = vpop.f32.mrf.mxu0
  %679 = vdwg.mxu0
  %680 = vmatpush.bf16.msra.mxu0 %v629
  %681 = vmatpush.bf16.msra.mxu0 %v626
  %682 = vmatpush.bf16.msra.mxu0 %v623
  %683 = vmatpush.bf16.msra.mxu0 %v620
  %684 = vmatpush.bf16.msra.mxu0 %v617
  %685 = vmatpush.bf16.msra.mxu0 %v614
  %686 = vmatpush.bf16.msra.mxu0 %v611
  %687 = vmatpush.bf16.msra.mxu0 %v608
  %688 = vmatmul.bf16.gmra.mxu0 %v242
  %v689 = vpop.f32.mrf.mxu0
  %v690 = vadd.f32 %v522, %v689
  %v691 = vpop.f32.mrf.mxu0
  %692 = vdwg.mxu0
  %v693 = vadd.f32 %v490, %v664
  %v694 = vxor.u32 %v693, 2147483648
  %v695 = vmul.f32 %v694, 1.442695
  %v696 = vpow.pop %v695
  %v697 = vadd.f32 %v696, 1.0
  %v698 = vrcp.pop %v697
  %v699 = vmul.f32 %v697, %v698
  %v700 = vsub.f32 1.0, %v699
  %v701 = vmul.f32 %v698, %v700
  %v702 = vadd.f32 %v698, %v701
  %vm703 = vweird.f32 %v697
  %vm704 = vweird.f32 %v698
  %vm705 = vmor %vm703, %vm704
  %v706 = vsel %vm705, %v698, %v702
  %v707 = vand.u32 2147483647, %v697
  %vm708 = vcmp.eq.f32.partialorder %v707, 8.507059e+37
  %v709 = vand.u32 %v697, 2147483648
  %v710 = vor.u32 1.1754944e-38, %v709
  %v711 = vsel %vm708, %v710, %v706
  %v712 = vmul.f32 1.0, %v711
  %v713 = vadd.f32 %v503, %v677
  %v714 = vxor.u32 %v713, 2147483648
  %v715 = vmul.f32 %v714, 1.442695
  %v716 = vpow.pop %v715
  %v717 = vadd.f32 %v716, 1.0
  %v718 = vrcp.pop %v717
  %v719 = vmul.f32 %v717, %v718
  %v720 = vsub.f32 1.0, %v719
  %v721 = vmul.f32 %v718, %v720
  %v722 = vadd.f32 %v718, %v721
  %vm723 = vweird.f32 %v717
  %vm724 = vweird.f32 %v718
  %vm725 = vmor %vm723, %vm724
  %v726 = vsel %vm725, %v718, %v722
  %v727 = vand.u32 2147483647, %v717
  %vm728 = vcmp.eq.f32.partialorder %v727, 8.507059e+37
  %v729 = vand.u32 %v717, 2147483648
  %v730 = vor.u32 1.1754944e-38, %v729
  %v731 = vsel %vm728, %v730, %v726
  %v732 = vmul.f32 1.0, %v731
  %v733 = vmul.f32 %v712, %v690
  %v734 = vadd.f32 %v516, %v733
  %v735 = vtanh.pop %v734
  %v736 = vsub.f32 1.0, %v732
  %v737 = vmul.f32 %v736, %v735
  %v738 = vmul.f32 %v732, %v157
  %v739 = vadd.f32 %v737, %v738
  %v740 = vmax.f32 %v739, 0.0
  %v741 = vpack.c.bf16 %v740, %v740
  %742 = vmatpush.bf16.msra.mxu0 %v197
  %743 = vmatpush.bf16.msra.mxu0 %v196
  %744 = vmatpush.bf16.msra.mxu0 %v195
  %745 = vmatpush.bf16.msra.mxu0 %v194
  %746 = vmatpush.bf16.msra.mxu0 %v193
  %747 = vmatpush.bf16.msra.mxu0 %v192
  %748 = vmatpush.bf16.msra.mxu0 %v191
  %749 = vmatpush.bf16.msra.mxu0 %v190
  %750 = vmatmul.bf16.gmra.mxu0 %v741
  %v751 = vpop.f32.mrf.mxu0
  %v752 = vadd.f32 0.0, %v751
  %v753 = vpop.f32.mrf.mxu0
  %754 = vdwg.mxu0
  %v755 = vmul.f32 %v752, %v257
  %756 = vadd.xlane.f32.xlu0 %v755
  %v757 = vpop.xlane.xlu0 %756
  %v758 = vmul.f32 %v136, %v757
  %v759 = vsel %vm140, %v758, 0.0
  %v760 = vrot.slane %v759, 4
  %v761 = vadd.f32 %v759, %v760
  %v762 = vrot.slane %v761, 2
  %v763 = vadd.f32 %v761, %v762
  %v764 = vrot.slane %v763, 1
  %v765 = vadd.f32 %v763, %v764
  %v766 = vadd.f32 %v239, %v765
  %vm767 = vcmp.gt.f32.partialorder %v766, 0.0
  %v768 = vmul.f32 %v766, 0.01
  %v769 = vsel %vm767, %v766, %v768
  %v770 = vsel %vm137, %v769, -1e+30
  %v772 = vperm.slane %v770, 0
  %v774 = vsel %vm134, %v772, -1e+30
  %v775 = vsel %vm140, %v774, -inf
  %776 = vmax.xlane.f32.xlu0 %v775
  %v777 = vpop.xlane.xlu0 %776
  %v778 = vsel %vm134, %v777, -1e+30
  %v779 = vsel %vm140, %v778, -inf
  %v780 = vrot.slane %v779, 4
  %v781 = vmax.f32 %v779, %v780
  %v782 = vrot.slane %v781, 2
  %v783 = vmax.f32 %v781, %v782
  %v784 = vrot.slane %v783, 1
  %v785 = vmax.f32 %v783, %v784
  %v786 = vsub.f32 %v770, %v785
  %v787 = vmul.f32 %v786, 1.442695
  %v788 = vpow.pop %v787
  %v790 = vperm.slane %v788, 0
  %v792 = vsel %vm134, %v790, 0.0
  %v793 = vsel %vm140, %v792, 0.0
  %794 = vadd.xlane.f32.xlu0 %v793
  %v795 = vpop.xlane.xlu0 %794
  %vm796 = vcmp.gt.f32.partialorder %v795, 0.0
  %v797 = vsel %vm796, %v795, 1.0
  %v798 = vpack.c.bf16 %v792, %v792
  %v800 = vsel %vm140, %v798, 0
  %802 = vmatpush.bf16.msra.mxu0 0
  %803 = vmatpush.bf16.msra.mxu0 0
  %804 = vmatpush.bf16.msra.mxu0 0
  %805 = vmatpush.bf16.msra.mxu0 0
  %806 = vmatpush.bf16.msra.mxu0 0
  %807 = vmatpush.bf16.msra.mxu0 0
  %808 = vmatpush.bf16.msra.mxu0 0
  %809 = vmatpush.bf16.msra.mxu0 %v241
  %810 = vmatmul.bf16.gmra.mxu0 %v800
  %v811 = vpop.f32.mrf.mxu0
  %v812 = vadd.f32 0.0, %v811
  %v813 = vpop.f32.mrf.mxu0
  %814 = vdwg.mxu0
  %v815 = vrcp.pop %v797
  %v816 = vmul.f32 %v797, %v815
  %v817 = vsub.f32 1.0, %v816
  %v818 = vmul.f32 %v815, %v817
  %v819 = vadd.f32 %v815, %v818
  %vm820 = vweird.f32 %v797
  %vm821 = vweird.f32 %v815
  %vm822 = vmor %vm820, %vm821
  %v823 = vsel %vm822, %v815, %v819
  %v824 = vand.u32 2147483647, %v797
  %vm825 = vcmp.eq.f32.partialorder %v824, 8.507059e+37
  %v826 = vand.u32 %v797, 2147483648
  %v827 = vor.u32 1.1754944e-38, %v826
  %v828 = vsel %vm825, %v827, %v823
  %v829 = vmul.f32 %v812, %v828
  %v830 = vadd.f32 %v829, %v335
  %vm831 = vcmp.gt.f32.partialorder %v830, 0.0
  %v832 = vmin.f32 %v830, 0.0
  %v833 = vmul.f32 %v832, 1.442695
  %v834 = vpow.pop %v833
  %v835 = vsub.f32 %v834, 1.0
  %v836 = vsel %vm831, %v830, %v835
  %v837 = vpack.c.bf16 %v836, %v836
  %838 = vmatpush.bf16.msra.mxu0 %v453
  %839 = vmatpush.bf16.msra.mxu0 %v450
  %840 = vmatpush.bf16.msra.mxu0 %v447
  %841 = vmatpush.bf16.msra.mxu0 %v444
  %842 = vmatpush.bf16.msra.mxu0 %v441
  %843 = vmatpush.bf16.msra.mxu0 %v438
  %844 = vmatpush.bf16.msra.mxu0 %v435
  %845 = vmatpush.bf16.msra.mxu0 %v432
  %846 = vmatmul.bf16.gmra.mxu0 %v837
  %v847 = vpop.f32.mrf.mxu0
  %v848 = vadd.f32 %v346, %v847
  %v849 = vpop.f32.mrf.mxu0
  %850 = vdwg.mxu0
  %851 = vmatpush.bf16.msra.mxu0 %v454
  %852 = vmatpush.bf16.msra.mxu0 %v451
  %853 = vmatpush.bf16.msra.mxu0 %v448
  %854 = vmatpush.bf16.msra.mxu0 %v445
  %855 = vmatpush.bf16.msra.mxu0 %v442
  %856 = vmatpush.bf16.msra.mxu0 %v439
  %857 = vmatpush.bf16.msra.mxu0 %v436
  %858 = vmatpush.bf16.msra.mxu0 %v433
  %859 = vmatmul.bf16.gmra.mxu0 %v837
  %v860 = vpop.f32.mrf.mxu0
  %v861 = vadd.f32 %v347, %v860
  %v862 = vpop.f32.mrf.mxu0
  %863 = vdwg.mxu0
  %864 = vmatpush.bf16.msra.mxu0 %v455
  %865 = vmatpush.bf16.msra.mxu0 %v452
  %866 = vmatpush.bf16.msra.mxu0 %v449
  %867 = vmatpush.bf16.msra.mxu0 %v446
  %868 = vmatpush.bf16.msra.mxu0 %v443
  %869 = vmatpush.bf16.msra.mxu0 %v440
  %870 = vmatpush.bf16.msra.mxu0 %v437
  %871 = vmatpush.bf16.msra.mxu0 %v434
  %872 = vmatmul.bf16.gmra.mxu0 %v837
  %v873 = vpop.f32.mrf.mxu0
  %v874 = vadd.f32 %v348, %v873
  %v875 = vpop.f32.mrf.mxu0
  %876 = vdwg.mxu0
  %877 = vmatpush.bf16.msra.mxu0 %v627
  %878 = vmatpush.bf16.msra.mxu0 %v624
  %879 = vmatpush.bf16.msra.mxu0 %v621
  %880 = vmatpush.bf16.msra.mxu0 %v618
  %881 = vmatpush.bf16.msra.mxu0 %v615
  %882 = vmatpush.bf16.msra.mxu0 %v612
  %883 = vmatpush.bf16.msra.mxu0 %v609
  %884 = vmatpush.bf16.msra.mxu0 %v606
  %885 = vmatmul.bf16.gmra.mxu0 %v741
  %v886 = vpop.f32.mrf.mxu0
  %v887 = vadd.f32 %v520, %v886
  %v888 = vpop.f32.mrf.mxu0
  %889 = vdwg.mxu0
  %890 = vmatpush.bf16.msra.mxu0 %v628
  %891 = vmatpush.bf16.msra.mxu0 %v625
  %892 = vmatpush.bf16.msra.mxu0 %v622
  %893 = vmatpush.bf16.msra.mxu0 %v619
  %894 = vmatpush.bf16.msra.mxu0 %v616
  %895 = vmatpush.bf16.msra.mxu0 %v613
  %896 = vmatpush.bf16.msra.mxu0 %v610
  %897 = vmatpush.bf16.msra.mxu0 %v607
  %898 = vmatmul.bf16.gmra.mxu0 %v741
  %v899 = vpop.f32.mrf.mxu0
  %v900 = vadd.f32 %v521, %v899
  %v901 = vpop.f32.mrf.mxu0
  %902 = vdwg.mxu0
  %903 = vmatpush.bf16.msra.mxu0 %v629
  %904 = vmatpush.bf16.msra.mxu0 %v626
  %905 = vmatpush.bf16.msra.mxu0 %v623
  %906 = vmatpush.bf16.msra.mxu0 %v620
  %907 = vmatpush.bf16.msra.mxu0 %v617
  %908 = vmatpush.bf16.msra.mxu0 %v614
  %909 = vmatpush.bf16.msra.mxu0 %v611
  %910 = vmatpush.bf16.msra.mxu0 %v608
  %911 = vmatmul.bf16.gmra.mxu0 %v741
  %v912 = vpop.f32.mrf.mxu0
  %v913 = vadd.f32 %v522, %v912
  %v914 = vpop.f32.mrf.mxu0
  %915 = vdwg.mxu0
  %v916 = vadd.f32 %v848, %v887
  %v917 = vxor.u32 %v916, 2147483648
  %v918 = vmul.f32 %v917, 1.442695
  %v919 = vpow.pop %v918
  %v920 = vadd.f32 %v919, 1.0
  %v921 = vrcp.pop %v920
  %v922 = vmul.f32 %v920, %v921
  %v923 = vsub.f32 1.0, %v922
  %v924 = vmul.f32 %v921, %v923
  %v925 = vadd.f32 %v921, %v924
  %vm926 = vweird.f32 %v920
  %vm927 = vweird.f32 %v921
  %vm928 = vmor %vm926, %vm927
  %v929 = vsel %vm928, %v921, %v925
  %v930 = vand.u32 2147483647, %v920
  %vm931 = vcmp.eq.f32.partialorder %v930, 8.507059e+37
  %v932 = vand.u32 %v920, 2147483648
  %v933 = vor.u32 1.1754944e-38, %v932
  %v934 = vsel %vm931, %v933, %v929
  %v935 = vmul.f32 1.0, %v934
  %v936 = vadd.f32 %v861, %v900
  %v937 = vxor.u32 %v936, 2147483648
  %v938 = vmul.f32 %v937, 1.442695
  %v939 = vpow.pop %v938
  %v940 = vadd.f32 %v939, 1.0
  %v941 = vrcp.pop %v940
  %v942 = vmul.f32 %v940, %v941
  %v943 = vsub.f32 1.0, %v942
  %v944 = vmul.f32 %v941, %v943
  %v945 = vadd.f32 %v941, %v944
  %vm946 = vweird.f32 %v940
  %vm947 = vweird.f32 %v941
  %vm948 = vmor %vm946, %vm947
  %v949 = vsel %vm948, %v941, %v945
  %v950 = vand.u32 2147483647, %v940
  %vm951 = vcmp.eq.f32.partialorder %v950, 8.507059e+37
  %v952 = vand.u32 %v940, 2147483648
  %v953 = vor.u32 1.1754944e-38, %v952
  %v954 = vsel %vm951, %v953, %v949
  %v955 = vmul.f32 1.0, %v954
  %v956 = vmul.f32 %v935, %v913
  %v957 = vadd.f32 %v874, %v956
  %v958 = vtanh.pop %v957
  %v959 = vsub.f32 1.0, %v955
  %v960 = vmul.f32 %v959, %v958
  %v961 = vmul.f32 %v955, %v740
  %v962 = vadd.f32 %v960, %v961
  %v963 = vmax.f32 %v962, 0.0
  %964 = vst [vmem:[%s12] sm:$0xff] %v963
  %v965 = vpack.c.bf16 %v963, %v963
  %v966 = vld [vmem:[%s10] sm:$0xf]
  %v967 = vld [vmem:[%s10 + $0x4] sm:$0xf]
  %v968 = vld [vmem:[%s10 + $0x8] sm:$0xf]
  %v969 = vld [vmem:[%s10 + $0xc] sm:$0xf]
  %v970 = vld [vmem:[%s10 + $0x10] sm:$0xf]
  %v971 = vld [vmem:[%s10 + $0x14] sm:$0xf]
  %v972 = vld [vmem:[%s10 + $0x18] sm:$0xf]
  %v973 = vld [vmem:[%s10 + $0x1c] sm:$0xf]
  %v974 = vld [vmem:[%s10 + $0x20] sm:$0xf]
  %v975 = vld [vmem:[%s10 + $0x24] sm:$0xf]
  %v976 = vld [vmem:[%s10 + $0x28] sm:$0xf]
  %v977 = vld [vmem:[%s10 + $0x2c] sm:$0xf]
  %v978 = vld [vmem:[%s10 + $0x30] sm:$0xf]
  %v979 = vld [vmem:[%s10 + $0x34] sm:$0xf]
  %v980 = vld [vmem:[%s10 + $0x38] sm:$0xf]
  %v981 = vld [vmem:[%s10 + $0x3c] sm:$0xf]
  %v982 = vld [vmem:[%s11] sm:$0x1]
  %v984 = vperm.slane %v982, 0
  %v1002 = vunpack.c.l.b16 %v966
  %v1003 = vunpack.c.l.b16 %v967
  %v1004 = vunpack.c.l.b16 %v968
  %v1005 = vunpack.c.l.b16 %v969
  %v1006 = vunpack.c.l.b16 %v970
  %v1007 = vunpack.c.l.b16 %v971
  %v1008 = vunpack.c.l.b16 %v972
  %v1009 = vunpack.c.l.b16 %v973
  %v1010 = vunpack.c.l.b16 %v974
  %v1011 = vunpack.c.l.b16 %v975
  %v1012 = vunpack.c.l.b16 %v976
  %v1013 = vunpack.c.l.b16 %v977
  %v1014 = vunpack.c.l.b16 %v978
  %v1015 = vunpack.c.l.b16 %v979
  %v1016 = vunpack.c.l.b16 %v980
  %v1017 = vunpack.c.l.b16 %v981
  %v1018 = vpack.c.b16 %v1003, %v1002
  %v1019 = vpack.c.b16 %v1005, %v1004
  %v1020 = vpack.c.b16 %v1007, %v1006
  %v1021 = vpack.c.b16 %v1009, %v1008
  %v1022 = vpack.c.b16 %v1011, %v1010
  %v1023 = vpack.c.b16 %v1013, %v1012
  %v1024 = vpack.c.b16 %v1015, %v1014
  %v1025 = vpack.c.b16 %v1017, %v1016
  %1034 = vmatpush.bf16.msra.mxu0 %v1025
  %1035 = vmatpush.bf16.msra.mxu0 %v1024
  %1036 = vmatpush.bf16.msra.mxu0 %v1023
  %1037 = vmatpush.bf16.msra.mxu0 %v1022
  %1038 = vmatpush.bf16.msra.mxu0 %v1021
  %1039 = vmatpush.bf16.msra.mxu0 %v1020
  %1040 = vmatpush.bf16.msra.mxu0 %v1019
  %1041 = vmatpush.bf16.msra.mxu0 %v1018
  %1042 = vmatmul.bf16.gmra.mxu0 %v965
  %v1043 = vpop.f32.mrf.mxu0
  %v1044 = vadd.f32 %v984, %v1043
  %v1045 = vpop.f32.mrf.mxu0
  %1046 = vdwg.mxu0
  %1047 = vst [vmem:[%s13] sm:$0xff] %v1044
  // Predicated region
  $region50: #{gnn_forward.5} parent=0 // pred_check
    _
  $region51: #{gnn_forward.5} parent=0 // pred_check_branch
    %1049 = sbr.rel (0) target = $region53
  $region52: #{gnn_forward.5} parent=0 // pred_region
    _
  $region53: #{gnn_forward.5} parent=0 // pred_fallthru
    _
  // Predicated region
  $region54: #{gnn_forward.5} parent=0 // pred_check
    _
  $region55: #{gnn_forward.5} parent=0 // pred_check_branch
    %1051 = sbr.rel (0) target = $region57
  $region56: #{gnn_forward.5} parent=0 // pred_region
    _
  $region57: #{gnn_forward.5} parent=0 // pred_fallthru
    _
  // Predicated region
  $region58: #{gnn_forward.5} parent=0 // pred_check
    _
  $region59: #{gnn_forward.5} parent=0 // pred_check_branch
    %1053 = sbr.rel (0) target = $region61
  $region60: #{gnn_forward.5} parent=0 // pred_region
    _
  $region61: #{gnn_forward.5} parent=0 // pred_fallthru
    _
  // Predicated region
  $region62: #{gnn_forward.5} parent=0 // pred_check
    _
  $region63: #{gnn_forward.5} parent=0 // pred_check_branch
    %1055 = sbr.rel (0) target = $region65
  $region64: #{gnn_forward.5} parent=0 // pred_region
    _
  $region65: #{gnn_forward.5} parent=0 // pred_fallthru
    _

</llo_original>
